<compile_context>
chip_gen: v7x
topology: tpu7x:2x2x1
jax: 0.10.0
libtpu: 0.0.40
codegen_flags: <defaults>
</compile_context>

<pallas_src>
import numpy as np
import jax
import jax.numpy as jnp
from jax.experimental import pallas as pl
from jax.experimental.pallas import tpu as pltpu

# ----------------------------- configuration --------------------------------
L, H = 2.0, 2.0
N_COL, N_ROW = 2, 2
N_SUB = N_COL * N_ROW
NUM_LAYERS = 2          # FNN: [in] + 2*[hidden] + [out]  -> 3 linear layers
INPUT_DIM = 2
HIDDEN_DIM = 128
OUTPUT_DIM = 1
XMIN = (-L / 2.0, -H / 2.0)

N = 256                 # number of collocation points

# subdomain boxes, indexed s = i * N_COL + j
LOWER = []
UPPER = []
for i in range(N_ROW):
    for j in range(N_COL):
        LOWER.append((L * j / N_COL + XMIN[0], H * i / N_ROW + XMIN[1]))
        UPPER.append((L * (j + 1) / N_COL + XMIN[0], H * (i + 1) / N_ROW + XMIN[1]))

# directed neighbour pairs in the exact order the torch forward appends them
NEIGHBOR_PAIRS = []
for i in range(N_ROW):
    for j in range(N_COL):
        for di, dj in ((0, -1), (0, 1), (-1, 0), (1, 0)):
            ii, jj = i + di, j + dj
            if 0 <= ii < N_ROW and 0 <= jj < N_COL:
                NEIGHBOR_PAIRS.append((i * N_COL + j, ii * N_COL + jj))
N_INTER = len(NEIGHBOR_PAIRS)
OUT_WIDTH = OUTPUT_DIM + N_INTER


# ------------------------------- kernel --------------------------------------
def xpinn_kernel(x_ref, w0_ref, b0_ref, w1_ref, b1_ref, w2p_ref, b2p_ref,
                 bounds_ref, dmat_ref, out_ref):
    tile_n = x_ref.shape[0]
    x = x_ref[...].astype(jnp.float32)          # (tile_n, INPUT_DIM)
    sx0 = x[:, 0:1]                             # (tile_n, 1)
    sx1 = x[:, 1:2]

    # all subdomain scalar outputs packed into adjacent lanes: (tile_n, N_SUB)
    u = jnp.zeros((tile_n, N_SUB), jnp.float32)

    # per-subdomain MLP (unrolled: N_SUB is tiny & static)
    for s in range(N_SUB):
        w0s = w0_ref[s]                                            # (2, HIDDEN)
        # layer 0: K=2 contraction done as two VPU broadcast FMAs (no MXU waste)
        h = jnp.tanh(sx0 * w0s[0:1, :] + sx1 * w0s[1:2, :] + b0_ref[s])
        # hidden layer: full (tile_n, H) @ (H, H) MXU matmul
        h = jnp.tanh(jnp.dot(h, w1_ref[s], preferred_element_type=jnp.float32)
                     + b1_ref[s])
        # output head: w2p[s] has only column s nonzero, so this accumulates
        # u_s directly into lane s; h dies right after the matmul.
        u = u + jnp.dot(h, w2p_ref[s], preferred_element_type=jnp.float32)
    u = u + b2p_ref[...]                                           # (tile_n, N_SUB)

    # box indicator for all subdomains at once: (tile_n, N_SUB)
    bnd = bounds_ref[...]                                          # (4, N_SUB)
    ind = ((sx0 >= bnd[0:1, :]) & (sx0 <= bnd[1:2, :]) &
           (sx1 >= bnd[2:3, :]) & (sx1 <= bnd[3:4, :])).astype(jnp.float32)
    tot = jnp.sum(ind * u, axis=1, keepdims=True)                  # (tile_n, 1)

    # interface residuals.  pde_fn(x,u) = u*u - (x0+x1): the x-term cancels in
    # pde_a - pde_b, so sub_pde is never materialized (d_pde = (u_a^2-u_b^2)^2).
    # dmat[:, k] has +1 at a_k and -1 at b_k -> one tiny matmul gives all pair
    # differences lane-packed, no (tile_n,1) column juggling.
    dmat = dmat_ref[...]                                           # (N_SUB, N_INTER)
    diff = jnp.dot(u, dmat, preferred_element_type=jnp.float32)        # u_a - u_b
    sqdiff = jnp.dot(u * u, dmat, preferred_element_type=jnp.float32)  # u_a^2 - u_b^2
    inter = jnp.sqrt(0.25 * diff * diff + sqdiff * sqdiff)         # (tile_n, N_INTER)

    # stream results straight into the output block (no 9-way concatenate)
    out_ref[:, 0:OUTPUT_DIM] = tot
    out_ref[:, OUTPUT_DIM:OUT_WIDTH] = inter


def _pick_tile(n):
    kind = ""
    try:
        kind = jax.devices()[0].device_kind.lower()
    except Exception:
        pass
    # v6e: single TensorCore with a 256-row MXU -> fill it when possible.
    # v5e (128x128 MXU) and v7x (2 TCs share the parallel grid axis) keep 128.
    if "v6" in kind and n % 256 == 0:
        return 256
    if n % 128 == 0:
        return 128
    return n


def xpinn_forward(x, params):
    w0, b0, w1, b1, w2, b2 = params
    n = x.shape[0]
    tile = _pick_tile(n)
    assert n % tile == 0

    # pack the (HIDDEN, 1) heads: w2p[s, :, s] = w2[s, :, 0]
    w2p = jnp.zeros((N_SUB, HIDDEN_DIM, N_SUB), jnp.float32)
    for s in range(N_SUB):
        w2p = w2p.at[s, :, s].set(w2[s, :, 0])
    b2p = b2[:, 0, 0].reshape(1, N_SUB)

    bounds = jnp.asarray(
        [[LOWER[s][0] for s in range(N_SUB)],
         [UPPER[s][0] for s in range(N_SUB)],
         [LOWER[s][1] for s in range(N_SUB)],
         [UPPER[s][1] for s in range(N_SUB)]], jnp.float32)        # (4, N_SUB)

    dmat_np = np.zeros((N_SUB, N_INTER), np.float32)
    for k, (a, b) in enumerate(NEIGHBOR_PAIRS):
        dmat_np[a, k] += 1.0
        dmat_np[b, k] -= 1.0
    dmat = jnp.asarray(dmat_np)                                    # (N_SUB, N_INTER)

    full = lambda shape: pl.BlockSpec(shape, lambda i: (0,) * len(shape))
    return pl.pallas_call(
        xpinn_kernel,
        out_shape=jax.ShapeDtypeStruct((n, OUT_WIDTH), jnp.float32),
        grid=(n // tile,),
        in_specs=[
            pl.BlockSpec((tile, INPUT_DIM), lambda i: (i, 0)),
            full((N_SUB, INPUT_DIM, HIDDEN_DIM)),
            full((N_SUB, 1, HIDDEN_DIM)),
            full((N_SUB, HIDDEN_DIM, HIDDEN_DIM)),
            full((N_SUB, 1, HIDDEN_DIM)),
            full((N_SUB, HIDDEN_DIM, N_SUB)),
            full((1, N_SUB)),
            full((4, N_SUB)),
            full((N_SUB, N_INTER)),
        ],
        out_specs=pl.BlockSpec((tile, OUT_WIDTH), lambda i: (i, 0)),
        compiler_params=pltpu.CompilerParams(
            dimension_semantics=("parallel",)),
    )(x, w0, b0, w1, b1, w2p, b2p, bounds, dmat)


# --------------------------- pure-JAX reference -------------------------------
def xpinn_reference(x, params):
    w0, b0, w1, b1, w2, b2 = params
    sx = x[:, :2]
    tot = jnp.zeros((x.shape[0], OUTPUT_DIM), jnp.float32)
    sub_res, sub_pde = [], []
    for s in range(N_SUB):
        h = jnp.tanh(x @ w0[s] + b0[s])
        h = jnp.tanh(h @ w1[s] + b1[s])
        u = h @ w2[s] + b2[s]
        lo = jnp.asarray(LOWER[s]); up = jnp.asarray(UPPER[s])
        ind = jnp.prod(((lo <= sx) & (sx <= up)).astype(jnp.float32),
                       axis=1, keepdims=True)
        tot = tot + ind * u
        sub_res.append(u)
        sub_pde.append(u * u - (x[:, 0:1] + x[:, 1:2]))
    cols = [tot]
    for a_idx, b_idx in NEIGHBOR_PAIRS:
        a, b = sub_res[a_idx], sub_res[b_idx]
        pa, pb = sub_pde[a_idx], sub_pde[b_idx]
        d1 = jnp.sum((a - (a + b) / 2) ** 2, axis=1, keepdims=True)
        d2 = jnp.sum((pa - pb) ** 2, axis=1, keepdims=True)
        cols.append(jnp.sqrt(d1 + d2))
    return jnp.concatenate(cols, axis=1)


# ------------------------------ param init ------------------------------------
def glorot_normal(key, shape):
    fan_in, fan_out = shape[-2], shape[-1]
    std = np.sqrt(2.0 / (fan_in + fan_out))
    return jax.random.normal(key, shape, jnp.float32) * std


def init_params(key):
    k0, k1, k2 = jax.random.split(key, 3)
    w0 = glorot_normal(k0, (N_SUB, INPUT_DIM, HIDDEN_DIM))
    w1 = glorot_normal(k1, (N_SUB, HIDDEN_DIM, HIDDEN_DIM))
    w2 = glorot_normal(k2, (N_SUB, HIDDEN_DIM, OUTPUT_DIM))
    b0 = jnp.zeros((N_SUB, 1, HIDDEN_DIM), jnp.float32)   # deepxde FNN: zero bias
    b1 = jnp.zeros((N_SUB, 1, HIDDEN_DIM), jnp.float32)
    b2 = jnp.zeros((N_SUB, 1, OUTPUT_DIM), jnp.float32)
    return (w0, b0, w1, b1, w2, b2)


# --------------------------------- main ---------------------------------------
if __name__ == "__main__":
    key = jax.random.PRNGKey(0)
    kx, kp = jax.random.split(key)

    # collocation points in [-1, 1]^2 (input_dim = 2)
    x = jax.random.uniform(kx, (N, INPUT_DIM), jnp.float32, minval=-1.0, maxval=1.0)
    params = init_params(kp)

    out = xpinn_forward(x, params)
    out = jax.block_until_ready(out)

    ref = xpinn_reference(x, params)
    np.testing.assert_allclose(np.asarray(out), np.asarray(ref),
                               rtol=5e-5, atol=5e-5)
    assert out.shape == (N, OUT_WIDTH)
    print("KERNEL_OK")
</pallas_src>

<mosaic_0001>
module attributes {stable_mosaic.version = 11 : i64} {
  func.func @xpinn_kernel(%arg0: i32, %arg1: memref<128x2xf32, #tpu.memory_space<vmem>>, %arg2: memref<4x2x128xf32, #tpu.memory_space<vmem>>, %arg3: memref<4x1x128xf32, #tpu.memory_space<vmem>>, %arg4: memref<4x128x128xf32, #tpu.memory_space<vmem>>, %arg5: memref<4x1x128xf32, #tpu.memory_space<vmem>>, %arg6: memref<4x128x4xf32, #tpu.memory_space<vmem>>, %arg7: memref<1x4xf32, #tpu.memory_space<vmem>>, %arg8: memref<4x4xf32, #tpu.memory_space<vmem>>, %arg9: memref<4x8xf32, #tpu.memory_space<vmem>>, %arg10: memref<128x9xf32, #tpu.memory_space<vmem>>) attributes {dimension_semantics = [#tpu.dimension_semantics<parallel>], iteration_bounds = array<i64: 2>, scalar_prefetch = 0 : i64, scratch_operands = 0 : i64, tpu.core_type = #tpu.core_type<tc>, window_params = [{transform_indices = @transform_0, window_bounds = array<i64: 128, 2>}, {pipeline_mode = #tpu.pipeline_mode<synchronous>, transform_indices = @transform_1, window_bounds = array<i64: 4, 2, 128>}, {pipeline_mode = #tpu.pipeline_mode<synchronous>, transform_indices = @transform_2, window_bounds = array<i64: 4, 1, 128>}, {pipeline_mode = #tpu.pipeline_mode<synchronous>, transform_indices = @transform_3, window_bounds = array<i64: 4, 128, 128>}, {pipeline_mode = #tpu.pipeline_mode<synchronous>, transform_indices = @transform_4, window_bounds = array<i64: 4, 1, 128>}, {pipeline_mode = #tpu.pipeline_mode<synchronous>, transform_indices = @transform_5, window_bounds = array<i64: 4, 128, 4>}, {pipeline_mode = #tpu.pipeline_mode<synchronous>, transform_indices = @transform_6, window_bounds = array<i64: 1, 4>}, {pipeline_mode = #tpu.pipeline_mode<synchronous>, transform_indices = @transform_7, window_bounds = array<i64: 4, 4>}, {pipeline_mode = #tpu.pipeline_mode<synchronous>, transform_indices = @transform_8, window_bounds = array<i64: 4, 8>}, {transform_indices = @transform_9, window_bounds = array<i64: 128, 9>}]} {
    %c0 = arith.constant 0 : index
    %c0_0 = arith.constant 0 : index
    %0 = vector.load %arg1[%c0, %c0_0] : memref<128x2xf32, #tpu.memory_space<vmem>>, vector<128x2xf32>
    %1 = vector.extract_strided_slice %0 {offsets = [0, 0], sizes = [128, 1], strides = [1, 1]} : vector<128x2xf32> to vector<128x1xf32>
    %2 = vector.extract_strided_slice %0 {offsets = [0, 1], sizes = [128, 1], strides = [1, 1]} : vector<128x2xf32> to vector<128x1xf32>
    %cst = arith.constant 0.000000e+00 : f32
    %3 = vector.broadcast %cst : f32 to vector<128x4xf32>
    %c0_1 = arith.constant 0 : index
    %c0_2 = arith.constant 0 : index
    %c0_3 = arith.constant 0 : index
    %4 = vector.load %arg2[%c0_1, %c0_2, %c0_3] : memref<4x2x128xf32, #tpu.memory_space<vmem>>, vector<1x2x128xf32>
    %5 = vector.shape_cast %4 : vector<1x2x128xf32> to vector<2x128xf32>
    %6 = vector.extract_strided_slice %5 {offsets = [0, 0], sizes = [1, 128], strides = [1, 1]} : vector<2x128xf32> to vector<1x128xf32>
    %7 = vector.broadcast %1 : vector<128x1xf32> to vector<128x128xf32>
    %8 = vector.broadcast %6 : vector<1x128xf32> to vector<128x128xf32>
    %9 = arith.mulf %7, %8 : vector<128x128xf32>
    %10 = vector.extract_strided_slice %5 {offsets = [1, 0], sizes = [1, 128], strides = [1, 1]} : vector<2x128xf32> to vector<1x128xf32>
    %11 = vector.broadcast %2 : vector<128x1xf32> to vector<128x128xf32>
    %12 = vector.broadcast %10 : vector<1x128xf32> to vector<128x128xf32>
    %13 = arith.mulf %11, %12 : vector<128x128xf32>
    %14 = arith.addf %9, %13 : vector<128x128xf32>
    %c0_4 = arith.constant 0 : index
    %c0_5 = arith.constant 0 : index
    %c0_6 = arith.constant 0 : index
    %15 = vector.load %arg3[%c0_4, %c0_5, %c0_6] : memref<4x1x128xf32, #tpu.memory_space<vmem>>, vector<1x1x128xf32>
    %16 = vector.shape_cast %15 : vector<1x1x128xf32> to vector<1x128xf32>
    %17 = vector.broadcast %16 : vector<1x128xf32> to vector<128x128xf32>
    %18 = arith.addf %14, %17 : vector<128x128xf32>
    %19 = math.tanh %18 : vector<128x128xf32>
    %c0_7 = arith.constant 0 : index
    %c0_8 = arith.constant 0 : index
    %c0_9 = arith.constant 0 : index
    %20 = vector.load %arg4[%c0_7, %c0_8, %c0_9] : memref<4x128x128xf32, #tpu.memory_space<vmem>>, vector<1x128x128xf32>
    %21 = vector.shape_cast %20 : vector<1x128x128xf32> to vector<128x128xf32>
    %cst_10 = arith.constant dense<0.000000e+00> : vector<128x128xf32>
    %22 = tpu.matmul %19, %21, %cst_10 {dimension_numbers = #tpu.dot_dimension_numbers<[1], [0], [0], [1], [0, 0, 1, 1], [], []>} : vector<128x128xf32>, vector<128x128xf32>, vector<128x128xf32> -> vector<128x128xf32>
    %c0_11 = arith.constant 0 : index
    %c0_12 = arith.constant 0 : index
    %c0_13 = arith.constant 0 : index
    %23 = vector.load %arg5[%c0_11, %c0_12, %c0_13] : memref<4x1x128xf32, #tpu.memory_space<vmem>>, vector<1x1x128xf32>
    %24 = vector.shape_cast %23 : vector<1x1x128xf32> to vector<1x128xf32>
    %25 = vector.broadcast %24 : vector<1x128xf32> to vector<128x128xf32>
    %26 = arith.addf %22, %25 : vector<128x128xf32>
    %27 = math.tanh %26 : vector<128x128xf32>
    %c0_14 = arith.constant 0 : index
    %c0_15 = arith.constant 0 : index
    %c0_16 = arith.constant 0 : index
    %28 = vector.load %arg6[%c0_14, %c0_15, %c0_16] : memref<4x128x4xf32, #tpu.memory_space<vmem>>, vector<1x128x4xf32>
    %29 = vector.shape_cast %28 : vector<1x128x4xf32> to vector<128x4xf32>
    %cst_17 = arith.constant dense<0.000000e+00> : vector<128x4xf32>
    %30 = tpu.matmul %27, %29, %cst_17 {dimension_numbers = #tpu.dot_dimension_numbers<[1], [0], [0], [1], [0, 0, 1, 1], [], []>} : vector<128x128xf32>, vector<128x4xf32>, vector<128x4xf32> -> vector<128x4xf32>
    %31 = arith.addf %3, %30 : vector<128x4xf32>
    %c1 = arith.constant 1 : index
    %c0_18 = arith.constant 0 : index
    %c0_19 = arith.constant 0 : index
    %32 = vector.load %arg2[%c1, %c0_18, %c0_19] : memref<4x2x128xf32, #tpu.memory_space<vmem>>, vector<1x2x128xf32>
    %33 = vector.shape_cast %32 : vector<1x2x128xf32> to vector<2x128xf32>
    %34 = vector.extract_strided_slice %33 {offsets = [0, 0], sizes = [1, 128], strides = [1, 1]} : vector<2x128xf32> to vector<1x128xf32>
    %35 = vector.broadcast %1 : vector<128x1xf32> to vector<128x128xf32>
    %36 = vector.broadcast %34 : vector<1x128xf32> to vector<128x128xf32>
    %37 = arith.mulf %35, %36 : vector<128x128xf32>
    %38 = vector.extract_strided_slice %33 {offsets = [1, 0], sizes = [1, 128], strides = [1, 1]} : vector<2x128xf32> to vector<1x128xf32>
    %39 = vector.broadcast %2 : vector<128x1xf32> to vector<128x128xf32>
    %40 = vector.broadcast %38 : vector<1x128xf32> to vector<128x128xf32>
    %41 = arith.mulf %39, %40 : vector<128x128xf32>
    %42 = arith.addf %37, %41 : vector<128x128xf32>
    %c1_20 = arith.constant 1 : index
    %c0_21 = arith.constant 0 : index
    %c0_22 = arith.constant 0 : index
    %43 = vector.load %arg3[%c1_20, %c0_21, %c0_22] : memref<4x1x128xf32, #tpu.memory_space<vmem>>, vector<1x1x128xf32>
    %44 = vector.shape_cast %43 : vector<1x1x128xf32> to vector<1x128xf32>
    %45 = vector.broadcast %44 : vector<1x128xf32> to vector<128x128xf32>
    %46 = arith.addf %42, %45 : vector<128x128xf32>
    %47 = math.tanh %46 : vector<128x128xf32>
    %c1_23 = arith.constant 1 : index
    %c0_24 = arith.constant 0 : index
    %c0_25 = arith.constant 0 : index
    %48 = vector.load %arg4[%c1_23, %c0_24, %c0_25] : memref<4x128x128xf32, #tpu.memory_space<vmem>>, vector<1x128x128xf32>
    %49 = vector.shape_cast %48 : vector<1x128x128xf32> to vector<128x128xf32>
    %cst_26 = arith.constant dense<0.000000e+00> : vector<128x128xf32>
    %50 = tpu.matmul %47, %49, %cst_26 {dimension_numbers = #tpu.dot_dimension_numbers<[1], [0], [0], [1], [0, 0, 1, 1], [], []>} : vector<128x128xf32>, vector<128x128xf32>, vector<128x128xf32> -> vector<128x128xf32>
    %c1_27 = arith.constant 1 : index
    %c0_28 = arith.constant 0 : index
    %c0_29 = arith.constant 0 : index
    %51 = vector.load %arg5[%c1_27, %c0_28, %c0_29] : memref<4x1x128xf32, #tpu.memory_space<vmem>>, vector<1x1x128xf32>
    %52 = vector.shape_cast %51 : vector<1x1x128xf32> to vector<1x128xf32>
    %53 = vector.broadcast %52 : vector<1x128xf32> to vector<128x128xf32>
    %54 = arith.addf %50, %53 : vector<128x128xf32>
    %55 = math.tanh %54 : vector<128x128xf32>
    %c1_30 = arith.constant 1 : index
    %c0_31 = arith.constant 0 : index
    %c0_32 = arith.constant 0 : index
    %56 = vector.load %arg6[%c1_30, %c0_31, %c0_32] : memref<4x128x4xf32, #tpu.memory_space<vmem>>, vector<1x128x4xf32>
    %57 = vector.shape_cast %56 : vector<1x128x4xf32> to vector<128x4xf32>
    %cst_33 = arith.constant dense<0.000000e+00> : vector<128x4xf32>
    %58 = tpu.matmul %55, %57, %cst_33 {dimension_numbers = #tpu.dot_dimension_numbers<[1], [0], [0], [1], [0, 0, 1, 1], [], []>} : vector<128x128xf32>, vector<128x4xf32>, vector<128x4xf32> -> vector<128x4xf32>
    %59 = arith.addf %31, %58 : vector<128x4xf32>
    %c2 = arith.constant 2 : index
    %c0_34 = arith.constant 0 : index
    %c0_35 = arith.constant 0 : index
    %60 = vector.load %arg2[%c2, %c0_34, %c0_35] : memref<4x2x128xf32, #tpu.memory_space<vmem>>, vector<1x2x128xf32>
    %61 = vector.shape_cast %60 : vector<1x2x128xf32> to vector<2x128xf32>
    %62 = vector.extract_strided_slice %61 {offsets = [0, 0], sizes = [1, 128], strides = [1, 1]} : vector<2x128xf32> to vector<1x128xf32>
    %63 = vector.broadcast %1 : vector<128x1xf32> to vector<128x128xf32>
    %64 = vector.broadcast %62 : vector<1x128xf32> to vector<128x128xf32>
    %65 = arith.mulf %63, %64 : vector<128x128xf32>
    %66 = vector.extract_strided_slice %61 {offsets = [1, 0], sizes = [1, 128], strides = [1, 1]} : vector<2x128xf32> to vector<1x128xf32>
    %67 = vector.broadcast %2 : vector<128x1xf32> to vector<128x128xf32>
    %68 = vector.broadcast %66 : vector<1x128xf32> to vector<128x128xf32>
    %69 = arith.mulf %67, %68 : vector<128x128xf32>
    %70 = arith.addf %65, %69 : vector<128x128xf32>
    %c2_36 = arith.constant 2 : index
    %c0_37 = arith.constant 0 : index
    %c0_38 = arith.constant 0 : index
    %71 = vector.load %arg3[%c2_36, %c0_37, %c0_38] : memref<4x1x128xf32, #tpu.memory_space<vmem>>, vector<1x1x128xf32>
    %72 = vector.shape_cast %71 : vector<1x1x128xf32> to vector<1x128xf32>
    %73 = vector.broadcast %72 : vector<1x128xf32> to vector<128x128xf32>
    %74 = arith.addf %70, %73 : vector<128x128xf32>
    %75 = math.tanh %74 : vector<128x128xf32>
    %c2_39 = arith.constant 2 : index
    %c0_40 = arith.constant 0 : index
    %c0_41 = arith.constant 0 : index
    %76 = vector.load %arg4[%c2_39, %c0_40, %c0_41] : memref<4x128x128xf32, #tpu.memory_space<vmem>>, vector<1x128x128xf32>
    %77 = vector.shape_cast %76 : vector<1x128x128xf32> to vector<128x128xf32>
    %cst_42 = arith.constant dense<0.000000e+00> : vector<128x128xf32>
    %78 = tpu.matmul %75, %77, %cst_42 {dimension_numbers = #tpu.dot_dimension_numbers<[1], [0], [0], [1], [0, 0, 1, 1], [], []>} : vector<128x128xf32>, vector<128x128xf32>, vector<128x128xf32> -> vector<128x128xf32>
    %c2_43 = arith.constant 2 : index
    %c0_44 = arith.constant 0 : index
    %c0_45 = arith.constant 0 : index
    %79 = vector.load %arg5[%c2_43, %c0_44, %c0_45] : memref<4x1x128xf32, #tpu.memory_space<vmem>>, vector<1x1x128xf32>
    %80 = vector.shape_cast %79 : vector<1x1x128xf32> to vector<1x128xf32>
    %81 = vector.broadcast %80 : vector<1x128xf32> to vector<128x128xf32>
    %82 = arith.addf %78, %81 : vector<128x128xf32>
    %83 = math.tanh %82 : vector<128x128xf32>
    %c2_46 = arith.constant 2 : index
    %c0_47 = arith.constant 0 : index
    %c0_48 = arith.constant 0 : index
    %84 = vector.load %arg6[%c2_46, %c0_47, %c0_48] : memref<4x128x4xf32, #tpu.memory_space<vmem>>, vector<1x128x4xf32>
    %85 = vector.shape_cast %84 : vector<1x128x4xf32> to vector<128x4xf32>
    %cst_49 = arith.constant dense<0.000000e+00> : vector<128x4xf32>
    %86 = tpu.matmul %83, %85, %cst_49 {dimension_numbers = #tpu.dot_dimension_numbers<[1], [0], [0], [1], [0, 0, 1, 1], [], []>} : vector<128x128xf32>, vector<128x4xf32>, vector<128x4xf32> -> vector<128x4xf32>
    %87 = arith.addf %59, %86 : vector<128x4xf32>
    %c3 = arith.constant 3 : index
    %c0_50 = arith.constant 0 : index
    %c0_51 = arith.constant 0 : index
    %88 = vector.load %arg2[%c3, %c0_50, %c0_51] : memref<4x2x128xf32, #tpu.memory_space<vmem>>, vector<1x2x128xf32>
    %89 = vector.shape_cast %88 : vector<1x2x128xf32> to vector<2x128xf32>
    %90 = vector.extract_strided_slice %89 {offsets = [0, 0], sizes = [1, 128], strides = [1, 1]} : vector<2x128xf32> to vector<1x128xf32>
    %91 = vector.broadcast %1 : vector<128x1xf32> to vector<128x128xf32>
    %92 = vector.broadcast %90 : vector<1x128xf32> to vector<128x128xf32>
    %93 = arith.mulf %91, %92 : vector<128x128xf32>
    %94 = vector.extract_strided_slice %89 {offsets = [1, 0], sizes = [1, 128], strides = [1, 1]} : vector<2x128xf32> to vector<1x128xf32>
    %95 = vector.broadcast %2 : vector<128x1xf32> to vector<128x128xf32>
    %96 = vector.broadcast %94 : vector<1x128xf32> to vector<128x128xf32>
    %97 = arith.mulf %95, %96 : vector<128x128xf32>
    %98 = arith.addf %93, %97 : vector<128x128xf32>
    %c3_52 = arith.constant 3 : index
    %c0_53 = arith.constant 0 : index
    %c0_54 = arith.constant 0 : index
    %99 = vector.load %arg3[%c3_52, %c0_53, %c0_54] : memref<4x1x128xf32, #tpu.memory_space<vmem>>, vector<1x1x128xf32>
    %100 = vector.shape_cast %99 : vector<1x1x128xf32> to vector<1x128xf32>
    %101 = vector.broadcast %100 : vector<1x128xf32> to vector<128x128xf32>
    %102 = arith.addf %98, %101 : vector<128x128xf32>
    %103 = math.tanh %102 : vector<128x128xf32>
    %c3_55 = arith.constant 3 : index
    %c0_56 = arith.constant 0 : index
    %c0_57 = arith.constant 0 : index
    %104 = vector.load %arg4[%c3_55, %c0_56, %c0_57] : memref<4x128x128xf32, #tpu.memory_space<vmem>>, vector<1x128x128xf32>
    %105 = vector.shape_cast %104 : vector<1x128x128xf32> to vector<128x128xf32>
    %cst_58 = arith.constant dense<0.000000e+00> : vector<128x128xf32>
    %106 = tpu.matmul %103, %105, %cst_58 {dimension_numbers = #tpu.dot_dimension_numbers<[1], [0], [0], [1], [0, 0, 1, 1], [], []>} : vector<128x128xf32>, vector<128x128xf32>, vector<128x128xf32> -> vector<128x128xf32>
    %c3_59 = arith.constant 3 : index
    %c0_60 = arith.constant 0 : index
    %c0_61 = arith.constant 0 : index
    %107 = vector.load %arg5[%c3_59, %c0_60, %c0_61] : memref<4x1x128xf32, #tpu.memory_space<vmem>>, vector<1x1x128xf32>
    %108 = vector.shape_cast %107 : vector<1x1x128xf32> to vector<1x128xf32>
    %109 = vector.broadcast %108 : vector<1x128xf32> to vector<128x128xf32>
    %110 = arith.addf %106, %109 : vector<128x128xf32>
    %111 = math.tanh %110 : vector<128x128xf32>
    %c3_62 = arith.constant 3 : index
    %c0_63 = arith.constant 0 : index
    %c0_64 = arith.constant 0 : index
    %112 = vector.load %arg6[%c3_62, %c0_63, %c0_64] : memref<4x128x4xf32, #tpu.memory_space<vmem>>, vector<1x128x4xf32>
    %113 = vector.shape_cast %112 : vector<1x128x4xf32> to vector<128x4xf32>
    %cst_65 = arith.constant dense<0.000000e+00> : vector<128x4xf32>
    %114 = tpu.matmul %111, %113, %cst_65 {dimension_numbers = #tpu.dot_dimension_numbers<[1], [0], [0], [1], [0, 0, 1, 1], [], []>} : vector<128x128xf32>, vector<128x4xf32>, vector<128x4xf32> -> vector<128x4xf32>
    %115 = arith.addf %87, %114 : vector<128x4xf32>
    %c0_66 = arith.constant 0 : index
    %c0_67 = arith.constant 0 : index
    %116 = vector.load %arg7[%c0_66, %c0_67] : memref<1x4xf32, #tpu.memory_space<vmem>>, vector<1x4xf32>
    %117 = vector.broadcast %116 : vector<1x4xf32> to vector<128x4xf32>
    %118 = arith.addf %115, %117 : vector<128x4xf32>
    %c0_68 = arith.constant 0 : index
    %c0_69 = arith.constant 0 : index
    %119 = vector.load %arg8[%c0_68, %c0_69] : memref<4x4xf32, #tpu.memory_space<vmem>>, vector<4x4xf32>
    %120 = vector.extract_strided_slice %119 {offsets = [0, 0], sizes = [1, 4], strides = [1, 1]} : vector<4x4xf32> to vector<1x4xf32>
    %121 = vector.broadcast %1 : vector<128x1xf32> to vector<128x4xf32>
    %122 = vector.broadcast %120 : vector<1x4xf32> to vector<128x4xf32>
    %123 = arith.cmpf oge, %121, %122 : vector<128x4xf32>
    %124 = vector.extract_strided_slice %119 {offsets = [1, 0], sizes = [1, 4], strides = [1, 1]} : vector<4x4xf32> to vector<1x4xf32>
    %125 = vector.broadcast %1 : vector<128x1xf32> to vector<128x4xf32>
    %126 = vector.broadcast %124 : vector<1x4xf32> to vector<128x4xf32>
    %127 = arith.cmpf ole, %125, %126 : vector<128x4xf32>
    %128 = arith.andi %123, %127 : vector<128x4xi1>
    %129 = vector.extract_strided_slice %119 {offsets = [2, 0], sizes = [1, 4], strides = [1, 1]} : vector<4x4xf32> to vector<1x4xf32>
    %130 = vector.broadcast %2 : vector<128x1xf32> to vector<128x4xf32>
    %131 = vector.broadcast %129 : vector<1x4xf32> to vector<128x4xf32>
    %132 = arith.cmpf oge, %130, %131 : vector<128x4xf32>
    %133 = arith.andi %128, %132 : vector<128x4xi1>
    %134 = vector.extract_strided_slice %119 {offsets = [3, 0], sizes = [1, 4], strides = [1, 1]} : vector<4x4xf32> to vector<1x4xf32>
    %135 = vector.broadcast %2 : vector<128x1xf32> to vector<128x4xf32>
    %136 = vector.broadcast %134 : vector<1x4xf32> to vector<128x4xf32>
    %137 = arith.cmpf ole, %135, %136 : vector<128x4xf32>
    %138 = arith.andi %133, %137 : vector<128x4xi1>
    %139 = arith.extui %138 : vector<128x4xi1> to vector<128x4xi32>
    %140 = arith.sitofp %139 : vector<128x4xi32> to vector<128x4xf32>
    %141 = arith.mulf %140, %118 : vector<128x4xf32>
    %cst_70 = arith.constant dense<0.000000e+00> : vector<128xf32>
    %142 = vector.multi_reduction <add>, %141, %cst_70 [1] : vector<128x4xf32> to vector<128xf32>
    %143 = vector.shape_cast %142 : vector<128xf32> to vector<128x1xf32>
    %c0_71 = arith.constant 0 : index
    %c0_72 = arith.constant 0 : index
    %144 = vector.load %arg9[%c0_71, %c0_72] : memref<4x8xf32, #tpu.memory_space<vmem>>, vector<4x8xf32>
    %cst_73 = arith.constant dense<0.000000e+00> : vector<128x8xf32>
    %145 = tpu.matmul %118, %144, %cst_73 {dimension_numbers = #tpu.dot_dimension_numbers<[1], [0], [0], [1], [0, 0, 1, 1], [], []>} : vector<128x4xf32>, vector<4x8xf32>, vector<128x8xf32> -> vector<128x8xf32>
    %146 = arith.mulf %118, %118 : vector<128x4xf32>
    %cst_74 = arith.constant dense<0.000000e+00> : vector<128x8xf32>
    %147 = tpu.matmul %146, %144, %cst_74 {dimension_numbers = #tpu.dot_dimension_numbers<[1], [0], [0], [1], [0, 0, 1, 1], [], []>} : vector<128x4xf32>, vector<4x8xf32>, vector<128x8xf32> -> vector<128x8xf32>
    %cst_75 = arith.constant 2.500000e-01 : f32
    %148 = vector.broadcast %cst_75 : f32 to vector<128x8xf32>
    %149 = arith.mulf %148, %145 : vector<128x8xf32>
    %150 = arith.mulf %149, %145 : vector<128x8xf32>
    %151 = arith.mulf %147, %147 : vector<128x8xf32>
    %152 = arith.addf %150, %151 : vector<128x8xf32>
    %153 = math.sqrt %152 : vector<128x8xf32>
    %c0_76 = arith.constant 0 : index
    %c0_77 = arith.constant 0 : index
    %154 = vector.load %arg10[%c0_76, %c0_77] : memref<128x9xf32, #tpu.memory_space<vmem>>, vector<128x1xf32>
    tpu.vector_store %arg10[%c0_76, %c0_77], %143 {strides = array<i32>} : memref<128x9xf32, #tpu.memory_space<vmem>>, vector<128x1xf32>,
    %c0_78 = arith.constant 0 : index
    %c1_79 = arith.constant 1 : index
    %155 = vector.load %arg10[%c0_78, %c1_79] : memref<128x9xf32, #tpu.memory_space<vmem>>, vector<128x8xf32>
    tpu.vector_store %arg10[%c0_78, %c1_79], %153 {strides = array<i32>} : memref<128x9xf32, #tpu.memory_space<vmem>>, vector<128x8xf32>,
    return
  }
  func.func @transform_0(%arg0: i32) -> (i32, i32) {
    %c0_i32 = arith.constant 0 : i32
    %c0_i32_0 = arith.constant 0 : i32
    return %arg0, %c0_i32 : i32, i32
  }
  func.func @transform_1(%arg0: i32) -> (i32, i32, i32) {
    %c0_i32 = arith.constant 0 : i32
    %c0_i32_0 = arith.constant 0 : i32
    %c0_i32_1 = arith.constant 0 : i32
    %c0_i32_2 = arith.constant 0 : i32
    return %c0_i32, %c0_i32_0, %c0_i32_1 : i32, i32, i32
  }
  func.func @transform_2(%arg0: i32) -> (i32, i32, i32) {
    %c0_i32 = arith.constant 0 : i32
    %c0_i32_0 = arith.constant 0 : i32
    %c0_i32_1 = arith.constant 0 : i32
    %c0_i32_2 = arith.constant 0 : i32
    return %c0_i32, %c0_i32_0, %c0_i32_1 : i32, i32, i32
  }
  func.func @transform_3(%arg0: i32) -> (i32, i32, i32) {
    %c0_i32 = arith.constant 0 : i32
    %c0_i32_0 = arith.constant 0 : i32
    %c0_i32_1 = arith.constant 0 : i32
    %c0_i32_2 = arith.constant 0 : i32
    return %c0_i32, %c0_i32_0, %c0_i32_1 : i32, i32, i32
  }
  func.func @transform_4(%arg0: i32) -> (i32, i32, i32) {
    %c0_i32 = arith.constant 0 : i32
    %c0_i32_0 = arith.constant 0 : i32
    %c0_i32_1 = arith.constant 0 : i32
    %c0_i32_2 = arith.constant 0 : i32
    return %c0_i32, %c0_i32_0, %c0_i32_1 : i32, i32, i32
  }
  func.func @transform_5(%arg0: i32) -> (i32, i32, i32) {
    %c0_i32 = arith.constant 0 : i32
    %c0_i32_0 = arith.constant 0 : i32
    %c0_i32_1 = arith.constant 0 : i32
    %c0_i32_2 = arith.constant 0 : i32
    return %c0_i32, %c0_i32_0, %c0_i32_1 : i32, i32, i32
  }
  func.func @transform_6(%arg0: i32) -> (i32, i32) {
    %c0_i32 = arith.constant 0 : i32
    %c0_i32_0 = arith.constant 0 : i32
    %c0_i32_1 = arith.constant 0 : i32
    return %c0_i32, %c0_i32_0 : i32, i32
  }
  func.func @transform_7(%arg0: i32) -> (i32, i32) {
    %c0_i32 = arith.constant 0 : i32
    %c0_i32_0 = arith.constant 0 : i32
    %c0_i32_1 = arith.constant 0 : i32
    return %c0_i32, %c0_i32_0 : i32, i32
  }
  func.func @transform_8(%arg0: i32) -> (i32, i32) {
    %c0_i32 = arith.constant 0 : i32
    %c0_i32_0 = arith.constant 0 : i32
    %c0_i32_1 = arith.constant 0 : i32
    return %c0_i32, %c0_i32_0 : i32, i32
  }
  func.func @transform_9(%arg0: i32) -> (i32, i32) {
    %c0_i32 = arith.constant 0 : i32
    %c0_i32_0 = arith.constant 0 : i32
    return %arg0, %c0_i32 : i32, i32
  }
}

</mosaic_0001>

<llo_original>
// kernel: tpu_custom_call.1
$region0: #{tpu_custom_call.1}
  #allocation0 [shape = 'u32[]', space=smem, size = 0x4, offset = 0x4, fixed_abs, tag = 'smem constant byte address 0x4 - core index']
  #allocation1 [shape = 'u32[144,128]{1,0:T(1,128)}', space=vmem, size = 0x12000, scoped, tag = 'internal scratch']
  %s0 = inlined_call_operand.vmem [shape: f32[256,2], index: 0, kind: input, shape index: {}]
  %s1 = inlined_call_operand.vmem [shape: f32[4,2,128], index: 1, kind: input, shape index: {}]
  %s2 = inlined_call_operand.vmem [shape: f32[4,1,128], index: 2, kind: input, shape index: {}]
  %s3 = inlined_call_operand.vmem [shape: f32[4,128,128], index: 3, kind: input, shape index: {}]
  %s4 = inlined_call_operand.vmem [shape: f32[4,1,128], index: 4, kind: input, shape index: {}]
  %s5 = inlined_call_operand.vmem [shape: f32[4,128,4], index: 5, kind: input, shape index: {}]
  %s6 = inlined_call_operand.vmem [shape: f32[1,4], index: 6, kind: input, shape index: {}]
  %s7 = inlined_call_operand.vmem [shape: f32[4,4], index: 7, kind: input, shape index: {}]
  %s8 = inlined_call_operand.vmem [shape: f32[4,8], index: 8, kind: input, shape index: {}]
  %s9 = inlined_call_operand.vmem [shape: f32[256,9], index: 9, kind: output, shape index: {}]
  %s10 = sld [smem:[#allocation0]]
  $region69: #{tpu_custom_call.1} parent=0
    _
  %s12 = ssub.s32 1, %s10
  %s13 = scalar_select 0, %s12, %s10
  loop: start=0, step=1, limit=4
  $region2: #{tpu_custom_call.1} parent=0 // loop_pre_header
    _
  $region3: #{tpu_custom_call.1} parent=0 // loop_header
    %s15 = sphi 0, %s19
    %p16 = scmp.ge.s32.totalorder %s15, 4
    %s25 = sphi 0, %s27
    %s28 = sphi 0, %s25
    %s29 = sphi 0, %s28
    %s45 = sphi 0, %s29
    %s49 = sphi 0, %s49
    %s51 = sphi 0, %s49
    %s52 = sphi 0, %s51
    %s66 = sphi 0, %s52
    %s70 = sphi 0, %s70
    %s72 = sphi 0, %s70
    %s73 = sphi 0, %s72
    %s87 = sphi 0, %s73
    %s91 = sphi 0, %s91
    %s93 = sphi 0, %s91
    %s94 = sphi 0, %s93
    %s108 = sphi 0, %s94
    %s112 = sphi 0, %s112
    %s114 = sphi 0, %s112
    %s115 = sphi 0, %s114
    %s129 = sphi 0, %s115
    %s133 = sphi 0, %s133
    %s135 = sphi 0, %s133
    %s136 = sphi 0, %s135
    %s150 = sphi 0, %s136
    %s154 = sphi 0, %s154
    %s156 = sphi 0, %s154
    %s157 = sphi 0, %s156
    %s171 = sphi 0, %s157
    %s175 = sphi 0, %s175
    %s177 = sphi 0, %s175
    %s178 = sphi 0, %s177
    %s192 = sphi 0, %s178
    %s196 = sphi 0, %s196
    %s198 = sphi 0, %s196
    %s199 = sphi 0, %s198
    %s213 = sphi 0, %s199
    %s219 = sphi 0, %s221
    %s222 = sphi 0, %s219
    %s223 = sphi 0, %s222
    %s239 = sphi 0, %s223
  $region4: #{tpu_custom_call.1} parent=0 // loop_header_branch
    %18 = sbr.rel (%p16) target = $region8
  $region5: #{tpu_custom_call.1} parent=0 // loop_body
    %s20 = ssub.s32 %s15, 1
    %s21 = ssub.s32 %s15, 2
    %s22 = sadd.s32 %s15, 1
    %s23 = ssub.s32 %s15, %s22
    %p24 = scmp.eq.s32.totalorder %s23, 0
    %s26 = sadd.s32 %s25, 1
    %s27 = scalar_select %p24, %s25, %s26
    %p30 = pneg %p24
    %p31 = scmp.eq.s32.totalorder %s15, 1
    %p32 = por %p30, %p31
    %p33 = scmp.ne.s32.totalorder %s25, %s28
    %p34 = scmp.eq.s32.totalorder %s15, 0
    %p35 = por %p33, %p34
    %p36 = scmp.ne.s32.totalorder %s25, %s28
    %p37 = scmp.eq.s32.totalorder %s20, 1
    %p38 = por %p36, %p37
    %p39 = scmp.ne.s32.totalorder %s28, %s29
    %p40 = scmp.eq.s32.totalorder %s20, 0
    %p41 = por %p39, %p40
    %p42 = scmp.ne.s32.totalorder %s28, %s29
    %p43 = scmp.eq.s32.totalorder %s21, 1
    %p44 = por %p42, %p43
    %p46 = scmp.ne.s32.totalorder %s29, %s45
    %p47 = scmp.eq.s32.totalorder %s21, 0
    %p48 = por %p46, %p47
    %s50 = sadd.s32 %s49, 1
    %p53 = scmp.eq.s32.totalorder %s15, 1
    %p54 = scmp.ne.s32.totalorder %s49, %s51
    %p55 = scmp.eq.s32.totalorder %s15, 0
    %p56 = por %p54, %p55
    %p57 = scmp.ne.s32.totalorder %s49, %s51
    %p58 = scmp.eq.s32.totalorder %s20, 1
    %p59 = por %p57, %p58
    %p60 = scmp.ne.s32.totalorder %s51, %s52
    %p61 = scmp.eq.s32.totalorder %s20, 0
    %p62 = por %p60, %p61
    %p63 = scmp.ne.s32.totalorder %s51, %s52
    %p64 = scmp.eq.s32.totalorder %s21, 1
    %p65 = por %p63, %p64
    %p67 = scmp.ne.s32.totalorder %s52, %s66
    %p68 = scmp.eq.s32.totalorder %s21, 0
    %p69 = por %p67, %p68
    %s71 = sadd.s32 %s70, 1
    %p74 = scmp.eq.s32.totalorder %s15, 1
    %p75 = scmp.ne.s32.totalorder %s70, %s72
    %p76 = scmp.eq.s32.totalorder %s15, 0
    %p77 = por %p75, %p76
    %p78 = scmp.ne.s32.totalorder %s70, %s72
    %p79 = scmp.eq.s32.totalorder %s20, 1
    %p80 = por %p78, %p79
    %p81 = scmp.ne.s32.totalorder %s72, %s73
    %p82 = scmp.eq.s32.totalorder %s20, 0
    %p83 = por %p81, %p82
    %p84 = scmp.ne.s32.totalorder %s72, %s73
    %p85 = scmp.eq.s32.totalorder %s21, 1
    %p86 = por %p84, %p85
    %p88 = scmp.ne.s32.totalorder %s73, %s87
    %p89 = scmp.eq.s32.totalorder %s21, 0
    %p90 = por %p88, %p89
    %s92 = sadd.s32 %s91, 1
    %p95 = scmp.eq.s32.totalorder %s15, 1
    %p96 = scmp.ne.s32.totalorder %s91, %s93
    %p97 = scmp.eq.s32.totalorder %s15, 0
    %p98 = por %p96, %p97
    %p99 = scmp.ne.s32.totalorder %s91, %s93
    %p100 = scmp.eq.s32.totalorder %s20, 1
    %p101 = por %p99, %p100
    %p102 = scmp.ne.s32.totalorder %s93, %s94
    %p103 = scmp.eq.s32.totalorder %s20, 0
    %p104 = por %p102, %p103
    %p105 = scmp.ne.s32.totalorder %s93, %s94
    %p106 = scmp.eq.s32.totalorder %s21, 1
    %p107 = por %p105, %p106
    %p109 = scmp.ne.s32.totalorder %s94, %s108
    %p110 = scmp.eq.s32.totalorder %s21, 0
    %p111 = por %p109, %p110
    %s113 = sadd.s32 %s112, 1
    %p116 = scmp.eq.s32.totalorder %s15, 1
    %p117 = scmp.ne.s32.totalorder %s112, %s114
    %p118 = scmp.eq.s32.totalorder %s15, 0
    %p119 = por %p117, %p118
    %p120 = scmp.ne.s32.totalorder %s112, %s114
    %p121 = scmp.eq.s32.totalorder %s20, 1
    %p122 = por %p120, %p121
    %p123 = scmp.ne.s32.totalorder %s114, %s115
    %p124 = scmp.eq.s32.totalorder %s20, 0
    %p125 = por %p123, %p124
    %p126 = scmp.ne.s32.totalorder %s114, %s115
    %p127 = scmp.eq.s32.totalorder %s21, 1
    %p128 = por %p126, %p127
    %p130 = scmp.ne.s32.totalorder %s115, %s129
    %p131 = scmp.eq.s32.totalorder %s21, 0
    %p132 = por %p130, %p131
    %s134 = sadd.s32 %s133, 1
    %p137 = scmp.eq.s32.totalorder %s15, 1
    %p138 = scmp.ne.s32.totalorder %s133, %s135
    %p139 = scmp.eq.s32.totalorder %s15, 0
    %p140 = por %p138, %p139
    %p141 = scmp.ne.s32.totalorder %s133, %s135
    %p142 = scmp.eq.s32.totalorder %s20, 1
    %p143 = por %p141, %p142
    %p144 = scmp.ne.s32.totalorder %s135, %s136
    %p145 = scmp.eq.s32.totalorder %s20, 0
    %p146 = por %p144, %p145
    %p147 = scmp.ne.s32.totalorder %s135, %s136
    %p148 = scmp.eq.s32.totalorder %s21, 1
    %p149 = por %p147, %p148
    %p151 = scmp.ne.s32.totalorder %s136, %s150
    %p152 = scmp.eq.s32.totalorder %s21, 0
    %p153 = por %p151, %p152
    %s155 = sadd.s32 %s154, 1
    %p158 = scmp.eq.s32.totalorder %s15, 1
    %p159 = scmp.ne.s32.totalorder %s154, %s156
    %p160 = scmp.eq.s32.totalorder %s15, 0
    %p161 = por %p159, %p160
    %p162 = scmp.ne.s32.totalorder %s154, %s156
    %p163 = scmp.eq.s32.totalorder %s20, 1
    %p164 = por %p162, %p163
    %p165 = scmp.ne.s32.totalorder %s156, %s157
    %p166 = scmp.eq.s32.totalorder %s20, 0
    %p167 = por %p165, %p166
    %p168 = scmp.ne.s32.totalorder %s156, %s157
    %p169 = scmp.eq.s32.totalorder %s21, 1
    %p170 = por %p168, %p169
    %p172 = scmp.ne.s32.totalorder %s157, %s171
    %p173 = scmp.eq.s32.totalorder %s21, 0
    %p174 = por %p172, %p173
    %s176 = sadd.s32 %s175, 1
    %p179 = scmp.eq.s32.totalorder %s15, 1
    %p180 = scmp.ne.s32.totalorder %s175, %s177
    %p181 = scmp.eq.s32.totalorder %s15, 0
    %p182 = por %p180, %p181
    %p183 = scmp.ne.s32.totalorder %s175, %s177
    %p184 = scmp.eq.s32.totalorder %s20, 1
    %p185 = por %p183, %p184
    %p186 = scmp.ne.s32.totalorder %s177, %s178
    %p187 = scmp.eq.s32.totalorder %s20, 0
    %p188 = por %p186, %p187
    %p189 = scmp.ne.s32.totalorder %s177, %s178
    %p190 = scmp.eq.s32.totalorder %s21, 1
    %p191 = por %p189, %p190
    %p193 = scmp.ne.s32.totalorder %s178, %s192
    %p194 = scmp.eq.s32.totalorder %s21, 0
    %p195 = por %p193, %p194
    %s197 = sadd.s32 %s196, 1
    %p200 = scmp.eq.s32.totalorder %s15, 1
    %p201 = scmp.ne.s32.totalorder %s196, %s198
    %p202 = scmp.eq.s32.totalorder %s15, 0
    %p203 = por %p201, %p202
    %p204 = scmp.ne.s32.totalorder %s196, %s198
    %p205 = scmp.eq.s32.totalorder %s20, 1
    %p206 = por %p204, %p205
    %p207 = scmp.ne.s32.totalorder %s198, %s199
    %p208 = scmp.eq.s32.totalorder %s20, 0
    %p209 = por %p207, %p208
    %p210 = scmp.ne.s32.totalorder %s198, %s199
    %p211 = scmp.eq.s32.totalorder %s21, 1
    %p212 = por %p210, %p211
    %p214 = scmp.ne.s32.totalorder %s199, %s213
    %p215 = scmp.eq.s32.totalorder %s21, 0
    %p216 = por %p214, %p215
    %s217 = ssub.s32 %s15, %s22
    %p218 = scmp.eq.s32.totalorder %s217, 0
    %s220 = sadd.s32 %s219, 1
    %s221 = scalar_select %p218, %s219, %s220
    %p224 = pneg %p218
    %p225 = scmp.eq.s32.totalorder %s15, 1
    %p226 = por %p224, %p225
    %p227 = scmp.ne.s32.totalorder %s219, %s222
    %p228 = scmp.eq.s32.totalorder %s15, 0
    %p229 = por %p227, %p228
    %p230 = scmp.ne.s32.totalorder %s219, %s222
    %p231 = scmp.eq.s32.totalorder %s20, 1
    %p232 = por %p230, %p231
    %p233 = scmp.ne.s32.totalorder %s222, %s223
    %p234 = scmp.eq.s32.totalorder %s20, 0
    %p235 = por %p233, %p234
    %p236 = scmp.ne.s32.totalorder %s222, %s223
    %p237 = scmp.eq.s32.totalorder %s21, 1
    %p238 = por %p236, %p237
    %p240 = scmp.ne.s32.totalorder %s223, %s239
    %p241 = scmp.eq.s32.totalorder %s21, 0
    %p242 = por %p240, %p241
    %p243 = scmp.le.s32.totalorder 1, %s15
    %p244 = scmp.lt.s32.totalorder %s15, 3
    %p245 = pnand %p243, %p244
    %p246 = pneg %p245
    // Predicated region
    $region9: #{tpu_custom_call.1} parent=5 // pred_check
      _
    $region10: #{tpu_custom_call.1} parent=5 // pred_check_branch
      %248 = sbr.rel (%p245) target = $region12
    $region11: #{tpu_custom_call.1} parent=5 // pred_region
      %s249 = ssub.s32 %s15, 1
      // Predicated region
      $region13: #{tpu_custom_call.1} parent=11 // pred_check
        %p250 = pneg %p62
      $region14: #{tpu_custom_call.1} parent=11 // pred_check_branch
        %252 = sbr.rel (%p250) target = $region16
      $region15: #{tpu_custom_call.1} parent=11 // pred_region
        _
      $region16: #{tpu_custom_call.1} parent=11 // pred_fallthru
        _
      // Predicated region
      $region17: #{tpu_custom_call.1} parent=11 // pred_check
        %p253 = pneg %p83
      $region18: #{tpu_custom_call.1} parent=11 // pred_check_branch
        %255 = sbr.rel (%p253) target = $region20
      $region19: #{tpu_custom_call.1} parent=11 // pred_region
        _
      $region20: #{tpu_custom_call.1} parent=11 // pred_fallthru
        _
      // Predicated region
      $region21: #{tpu_custom_call.1} parent=11 // pred_check
        %p256 = pneg %p104
      $region22: #{tpu_custom_call.1} parent=11 // pred_check_branch
        %258 = sbr.rel (%p256) target = $region24
      $region23: #{tpu_custom_call.1} parent=11 // pred_region
        _
      $region24: #{tpu_custom_call.1} parent=11 // pred_fallthru
        _
      // Predicated region
      $region25: #{tpu_custom_call.1} parent=11 // pred_check
        %p259 = pneg %p125
      $region26: #{tpu_custom_call.1} parent=11 // pred_check_branch
        %261 = sbr.rel (%p259) target = $region28
      $region27: #{tpu_custom_call.1} parent=11 // pred_region
        _
      $region28: #{tpu_custom_call.1} parent=11 // pred_fallthru
        _
      // Predicated region
      $region29: #{tpu_custom_call.1} parent=11 // pred_check
        %p262 = pneg %p146
      $region30: #{tpu_custom_call.1} parent=11 // pred_check_branch
        %264 = sbr.rel (%p262) target = $region32
      $region31: #{tpu_custom_call.1} parent=11 // pred_region
        _
      $region32: #{tpu_custom_call.1} parent=11 // pred_fallthru
        _
      // Predicated region
      $region33: #{tpu_custom_call.1} parent=11 // pred_check
        %p265 = pneg %p167
      $region34: #{tpu_custom_call.1} parent=11 // pred_check_branch
        %267 = sbr.rel (%p265) target = $region36
      $region35: #{tpu_custom_call.1} parent=11 // pred_region
        _
      $region36: #{tpu_custom_call.1} parent=11 // pred_fallthru
        _
      // Predicated region
      $region37: #{tpu_custom_call.1} parent=11 // pred_check
        %p268 = pneg %p188
      $region38: #{tpu_custom_call.1} parent=11 // pred_check_branch
        %270 = sbr.rel (%p268) target = $region40
      $region39: #{tpu_custom_call.1} parent=11 // pred_region
        _
      $region40: #{tpu_custom_call.1} parent=11 // pred_fallthru
        _
      // Predicated region
      $region41: #{tpu_custom_call.1} parent=11 // pred_check
        %p271 = pneg %p209
      $region42: #{tpu_custom_call.1} parent=11 // pred_check_branch
        %273 = sbr.rel (%p271) target = $region44
      $region43: #{tpu_custom_call.1} parent=11 // pred_region
        _
      $region44: #{tpu_custom_call.1} parent=11 // pred_fallthru
        _
    $region12: #{tpu_custom_call.1} parent=5 // pred_fallthru
      _
    %p274 = scmp.lt.s32.totalorder %s15, 2
    // Predicated region
    $region45: #{tpu_custom_call.1} parent=5 // pred_check
      %p275 = pneg %p274
    $region46: #{tpu_custom_call.1} parent=5 // pred_check_branch
      %277 = sbr.rel (%p275) target = $region48
    $region47: #{tpu_custom_call.1} parent=5 // pred_region
      // Predicated region
      $region49: #{tpu_custom_call.1} parent=47 // pred_check
        %p278 = pneg %p35
      $region50: #{tpu_custom_call.1} parent=47 // pred_check_branch
        %280 = sbr.rel (%p278) target = $region52
      $region51: #{tpu_custom_call.1} parent=47 // pred_region
        %s281 = smul.u32 16, %s15
        %p282 = scmp.lt.s32.totalorder %s281, 31
        %s283 = scalar_select %p282, %s281, 31
        %s284 = smul.addr %s283, 8
        %s285 = scalar_lea.vmem %s0, %s284
        %s286 = smul.u32 16, %s15
      $region52: #{tpu_custom_call.1} parent=47 // pred_fallthru
        _
    $region48: #{tpu_custom_call.1} parent=5 // pred_fallthru
      _
    %p287 = scmp.le.s32.totalorder 1, %s15
    %p288 = scmp.lt.s32.totalorder %s15, 3
    %p289 = pnand %p287, %p288
    %p290 = pneg %p289
    // Predicated region
    $region53: #{tpu_custom_call.1} parent=5 // pred_check
      _
    $region54: #{tpu_custom_call.1} parent=5 // pred_check_branch
      %292 = sbr.rel (%p289) target = $region56
    $region55: #{tpu_custom_call.1} parent=5 // pred_region
      %s293 = ssub.s32 %s15, 1
      %s294 = smul.u32 16, %s20
      %p295 = scmp.lt.s32.totalorder %s294, 31
      %s296 = scalar_select %p295, %s294, 31
      %s297 = smul.addr %s296, 8
      %s298 = scalar_lea.vmem %s0, %s297
      %p299 = pneg %p41
      %p300 = pneg %p38
      %p301 = pneg %p62
      %p302 = pneg %p59
      %p303 = pneg %p83
      %p304 = pneg %p80
      %p305 = pneg %p104
      %p306 = pneg %p101
      %p307 = pneg %p125
      %p308 = pneg %p122
      %p309 = pneg %p146
      %p310 = pneg %p143
      %p311 = pneg %p167
      %p312 = pneg %p164
      %p313 = pneg %p188
      %p314 = pneg %p185
      %p315 = pneg %p209
      %p316 = pneg %p206
      %p317 = pneg %p235
      %p318 = pneg %p232
      %s319 = smul.u32 16, %s20
      %p320 = scmp.lt.s32.totalorder %s319, 31
      %s321 = scalar_select %p320, %s319, 31
      %s322 = smul.addr %s321, 8
      %s323 = scalar_lea.vmem %s9, %s322
      %s324 = smul.u32 16, %s20
      %p325 = scmp.lt.s32.totalorder %s324, 31
      %s326 = scalar_select %p325, %s324, 31
      %s327 = smul.addr %s326, 8
      %s328 = scalar_lea.vmem %s0, %s327
      %s329 = smul.u32 16, %s20
      %s330 = smul.u32 16, %s20
      %p331 = scmp.lt.s32.totalorder %s330, 31
      %s332 = scalar_select %p331, %s330, 31
      %s333 = smul.addr %s332, 8
      %s334 = scalar_lea.vmem %s9, %s333
      %s335 = smul.u32 16, %s20
      %v336 = vld [vmem:[%s328] sm:$0xff]
      %v337 = vld [vmem:[%s328 + $0x8] sm:$0xff]
      %v338 = vld [vmem:[%s328 + $0x10] sm:$0xff]
      %v339 = vld [vmem:[%s328 + $0x18] sm:$0xff]
      %v340 = vld [vmem:[%s328 + $0x20] sm:$0xff]
      %v341 = vld [vmem:[%s328 + $0x28] sm:$0xff]
      %v342 = vld [vmem:[%s328 + $0x30] sm:$0xff]
      %v343 = vld [vmem:[%s328 + $0x38] sm:$0xff]
      %v344 = vld [vmem:[%s328 + $0x40] sm:$0xff]
      %v345 = vld [vmem:[%s328 + $0x48] sm:$0xff]
      %v346 = vld [vmem:[%s328 + $0x50] sm:$0xff]
      %v347 = vld [vmem:[%s328 + $0x58] sm:$0xff]
      %v348 = vld [vmem:[%s328 + $0x60] sm:$0xff]
      %v349 = vld [vmem:[%s328 + $0x68] sm:$0xff]
      %v350 = vld [vmem:[%s328 + $0x70] sm:$0xff]
      %v351 = vld [vmem:[%s328 + $0x78] sm:$0xff]
      %v352 = vld [vmem:[%s1] sm:$0x3]
      %354 = vset.pattern.permute.xlu0 0
      %355 = vperm.xlu0 %354, %v336
      %v356 = vpop.permute.xlu0 %355
      %359 = vset.pattern.permute.xlu0 0
      %360 = vperm.xlu0 %359, %v337
      %v361 = vpop.permute.xlu0 %360
      %364 = vset.pattern.permute.xlu0 0
      %365 = vperm.xlu0 %364, %v338
      %v366 = vpop.permute.xlu0 %365
      %369 = vset.pattern.permute.xlu0 0
      %370 = vperm.xlu0 %369, %v339
      %v371 = vpop.permute.xlu0 %370
      %374 = vset.pattern.permute.xlu0 0
      %375 = vperm.xlu0 %374, %v340
      %v376 = vpop.permute.xlu0 %375
      %379 = vset.pattern.permute.xlu0 0
      %380 = vperm.xlu0 %379, %v341
      %v381 = vpop.permute.xlu0 %380
      %384 = vset.pattern.permute.xlu0 0
      %385 = vperm.xlu0 %384, %v342
      %v386 = vpop.permute.xlu0 %385
      %389 = vset.pattern.permute.xlu0 0
      %390 = vperm.xlu0 %389, %v343
      %v391 = vpop.permute.xlu0 %390
      %394 = vset.pattern.permute.xlu0 0
      %395 = vperm.xlu0 %394, %v344
      %v396 = vpop.permute.xlu0 %395
      %399 = vset.pattern.permute.xlu0 0
      %400 = vperm.xlu0 %399, %v345
      %v401 = vpop.permute.xlu0 %400
      %404 = vset.pattern.permute.xlu0 0
      %405 = vperm.xlu0 %404, %v346
      %v406 = vpop.permute.xlu0 %405
      %409 = vset.pattern.permute.xlu0 0
      %410 = vperm.xlu0 %409, %v347
      %v411 = vpop.permute.xlu0 %410
      %414 = vset.pattern.permute.xlu0 0
      %415 = vperm.xlu0 %414, %v348
      %v416 = vpop.permute.xlu0 %415
      %419 = vset.pattern.permute.xlu0 0
      %420 = vperm.xlu0 %419, %v349
      %v421 = vpop.permute.xlu0 %420
      %424 = vset.pattern.permute.xlu0 0
      %425 = vperm.xlu0 %424, %v350
      %v426 = vpop.permute.xlu0 %425
      %429 = vset.pattern.permute.xlu0 0
      %430 = vperm.xlu0 %429, %v351
      %v431 = vpop.permute.xlu0 %430
      %v433 = vlaneseq
      %v434 = vshrl.u32 %v433, 7
      %v435 = vsub.s32 0, %v434
      %v436 = vrot.slane %v352, %v435
      %v437 = vmul.f32 %v356, %v436
      %v438 = vmul.f32 %v361, %v436
      %v439 = vmul.f32 %v366, %v436
      %v440 = vmul.f32 %v371, %v436
      %v441 = vmul.f32 %v376, %v436
      %v442 = vmul.f32 %v381, %v436
      %v443 = vmul.f32 %v386, %v436
      %v444 = vmul.f32 %v391, %v436
      %v445 = vmul.f32 %v396, %v436
      %v446 = vmul.f32 %v401, %v436
      %v447 = vmul.f32 %v406, %v436
      %v448 = vmul.f32 %v411, %v436
      %v449 = vmul.f32 %v416, %v436
      %v450 = vmul.f32 %v421, %v436
      %v451 = vmul.f32 %v426, %v436
      %v452 = vmul.f32 %v431, %v436
      %453 = vset.pattern.permute.xlu0 1
      %454 = vperm.xlu0 %453, %v336
      %v455 = vpop.permute.xlu0 %454
      %457 = vset.pattern.permute.xlu0 1
      %458 = vperm.xlu0 %457, %v337
      %v459 = vpop.permute.xlu0 %458
      %461 = vset.pattern.permute.xlu0 1
      %462 = vperm.xlu0 %461, %v338
      %v463 = vpop.permute.xlu0 %462
      %465 = vset.pattern.permute.xlu0 1
      %466 = vperm.xlu0 %465, %v339
      %v467 = vpop.permute.xlu0 %466
      %469 = vset.pattern.permute.xlu0 1
      %470 = vperm.xlu0 %469, %v340
      %v471 = vpop.permute.xlu0 %470
      %473 = vset.pattern.permute.xlu0 1
      %474 = vperm.xlu0 %473, %v341
      %v475 = vpop.permute.xlu0 %474
      %477 = vset.pattern.permute.xlu0 1
      %478 = vperm.xlu0 %477, %v342
      %v479 = vpop.permute.xlu0 %478
      %481 = vset.pattern.permute.xlu0 1
      %482 = vperm.xlu0 %481, %v343
      %v483 = vpop.permute.xlu0 %482
      %485 = vset.pattern.permute.xlu0 1
      %486 = vperm.xlu0 %485, %v344
      %v487 = vpop.permute.xlu0 %486
      %489 = vset.pattern.permute.xlu0 1
      %490 = vperm.xlu0 %489, %v345
      %v491 = vpop.permute.xlu0 %490
      %493 = vset.pattern.permute.xlu0 1
      %494 = vperm.xlu0 %493, %v346
      %v495 = vpop.permute.xlu0 %494
      %497 = vset.pattern.permute.xlu0 1
      %498 = vperm.xlu0 %497, %v347
      %v499 = vpop.permute.xlu0 %498
      %501 = vset.pattern.permute.xlu0 1
      %502 = vperm.xlu0 %501, %v348
      %v503 = vpop.permute.xlu0 %502
      %505 = vset.pattern.permute.xlu0 1
      %506 = vperm.xlu0 %505, %v349
      %v507 = vpop.permute.xlu0 %506
      %509 = vset.pattern.permute.xlu0 1
      %510 = vperm.xlu0 %509, %v350
      %v511 = vpop.permute.xlu0 %510
      %513 = vset.pattern.permute.xlu0 1
      %514 = vperm.xlu0 %513, %v351
      %v515 = vpop.permute.xlu0 %514
      %v517 = vlaneseq
      %v518 = vshrl.u32 %v517, 7
      %v519 = vsub.s32 1, %v518
      %v520 = vrot.slane %v352, %v519
      %v521 = vmul.f32 %v455, %v520
      %v522 = vmul.f32 %v459, %v520
      %v523 = vmul.f32 %v463, %v520
      %v524 = vmul.f32 %v467, %v520
      %v525 = vmul.f32 %v471, %v520
      %v526 = vmul.f32 %v475, %v520
      %v527 = vmul.f32 %v479, %v520
      %v528 = vmul.f32 %v483, %v520
      %v529 = vmul.f32 %v487, %v520
      %v530 = vmul.f32 %v491, %v520
      %v531 = vmul.f32 %v495, %v520
      %v532 = vmul.f32 %v499, %v520
      %v533 = vmul.f32 %v503, %v520
      %v534 = vmul.f32 %v507, %v520
      %v535 = vmul.f32 %v511, %v520
      %v536 = vmul.f32 %v515, %v520
      %v537 = vadd.f32 %v437, %v521
      %v538 = vadd.f32 %v438, %v522
      %v539 = vadd.f32 %v439, %v523
      %v540 = vadd.f32 %v440, %v524
      %v541 = vadd.f32 %v441, %v525
      %v542 = vadd.f32 %v442, %v526
      %v543 = vadd.f32 %v443, %v527
      %v544 = vadd.f32 %v444, %v528
      %v545 = vadd.f32 %v445, %v529
      %v546 = vadd.f32 %v446, %v530
      %v547 = vadd.f32 %v447, %v531
      %v548 = vadd.f32 %v448, %v532
      %v549 = vadd.f32 %v449, %v533
      %v550 = vadd.f32 %v450, %v534
      %v551 = vadd.f32 %v451, %v535
      %v552 = vadd.f32 %v452, %v536
      %v553 = vld [vmem:[%s2] sm:$0x1]
      %v555 = vlaneseq
      %v556 = vshrl.u32 %v555, 7
      %v557 = vsub.s32 0, %v556
      %v558 = vrot.slane %v553, %v557
      %v560 = vadd.f32 %v537, %v558
      %v561 = vadd.f32 %v538, %v558
      %v562 = vadd.f32 %v539, %v558
      %v563 = vadd.f32 %v540, %v558
      %v564 = vadd.f32 %v541, %v558
      %v565 = vadd.f32 %v542, %v558
      %v566 = vadd.f32 %v543, %v558
      %v567 = vadd.f32 %v544, %v558
      %v568 = vadd.f32 %v545, %v558
      %v569 = vadd.f32 %v546, %v558
      %v570 = vadd.f32 %v547, %v558
      %v571 = vadd.f32 %v548, %v558
      %v572 = vadd.f32 %v549, %v558
      %v573 = vadd.f32 %v550, %v558
      %v574 = vadd.f32 %v551, %v558
      %v575 = vadd.f32 %v552, %v558
      %v576 = vtanh.pop %v560
      %v577 = vtanh.pop %v561
      %v578 = vtanh.pop %v562
      %v579 = vtanh.pop %v563
      %v580 = vtanh.pop %v564
      %v581 = vtanh.pop %v565
      %v582 = vtanh.pop %v566
      %v583 = vtanh.pop %v567
      %v584 = vtanh.pop %v568
      %v585 = vtanh.pop %v569
      %v586 = vtanh.pop %v570
      %v587 = vtanh.pop %v571
      %v588 = vtanh.pop %v572
      %v589 = vtanh.pop %v573
      %v590 = vtanh.pop %v574
      %v591 = vtanh.pop %v575
      %v592 = vld [vmem:[%s3] sm:$0xff]
      %v593 = vld [vmem:[%s3 + $0x8] sm:$0xff]
      %v594 = vld [vmem:[%s3 + $0x10] sm:$0xff]
      %v595 = vld [vmem:[%s3 + $0x18] sm:$0xff]
      %v596 = vld [vmem:[%s3 + $0x20] sm:$0xff]
      %v597 = vld [vmem:[%s3 + $0x28] sm:$0xff]
      %v598 = vld [vmem:[%s3 + $0x30] sm:$0xff]
      %v599 = vld [vmem:[%s3 + $0x38] sm:$0xff]
      %v600 = vld [vmem:[%s3 + $0x40] sm:$0xff]
      %v601 = vld [vmem:[%s3 + $0x48] sm:$0xff]
      %v602 = vld [vmem:[%s3 + $0x50] sm:$0xff]
      %v603 = vld [vmem:[%s3 + $0x58] sm:$0xff]
      %v604 = vld [vmem:[%s3 + $0x60] sm:$0xff]
      %v605 = vld [vmem:[%s3 + $0x68] sm:$0xff]
      %v606 = vld [vmem:[%s3 + $0x70] sm:$0xff]
      %v607 = vld [vmem:[%s3 + $0x78] sm:$0xff]
      %v608 = vld [vmem:[%s4] sm:$0x1]
      %v610 = vlaneseq
      %v611 = vshrl.u32 %v610, 7
      %v612 = vsub.s32 0, %v611
      %v613 = vrot.slane %v608, %v612
      %615 = vmatprep.subr.mxu0 0.0
      %616 = vmatpush1.msra.mxu0 %v592
      %617 = vmatprep.subr.mxu0 0.0
      %618 = vmatpush1.msra.mxu0 %v593
      %619 = vmatprep.subr.mxu0 0.0
      %620 = vmatpush1.msra.mxu0 %v594
      %621 = vmatprep.subr.mxu0 0.0
      %622 = vmatpush1.msra.mxu0 %v595
      %623 = vmatprep.subr.mxu0 0.0
      %624 = vmatpush1.msra.mxu0 %v596
      %625 = vmatprep.subr.mxu0 0.0
      %626 = vmatpush1.msra.mxu0 %v597
      %627 = vmatprep.subr.mxu0 0.0
      %628 = vmatpush1.msra.mxu0 %v598
      %629 = vmatprep.subr.mxu0 0.0
      %630 = vmatpush1.msra.mxu0 %v599
      %631 = vmatprep.subr.mxu0 0.0
      %632 = vmatpush1.msra.mxu0 %v600
      %633 = vmatprep.subr.mxu0 0.0
      %634 = vmatpush1.msra.mxu0 %v601
      %635 = vmatprep.subr.mxu0 0.0
      %636 = vmatpush1.msra.mxu0 %v602
      %637 = vmatprep.subr.mxu0 0.0
      %638 = vmatpush1.msra.mxu0 %v603
      %639 = vmatprep.subr.mxu0 0.0
      %640 = vmatpush1.msra.mxu0 %v604
      %641 = vmatprep.subr.mxu0 0.0
      %642 = vmatpush1.msra.mxu0 %v605
      %643 = vmatprep.subr.mxu0 0.0
      %644 = vmatpush1.msra.mxu0 %v606
      %645 = vmatprep.subr.mxu0 0.0
      %646 = vmatpush1.msra.mxu0 %v607
      %647 = vmatprep.subr.mxu0 0.0
      %648 = vmatpush1.msra.mxu0 0.0
      %649 = vmatprep.subr.mxu0 0.0
      %650 = vmatpush1.msra.mxu0 0.0
      %651 = vmatprep.subr.mxu0 0.0
      %652 = vmatpush1.msra.mxu0 0.0
      %653 = vmatprep.subr.mxu0 0.0
      %654 = vmatpush1.msra.mxu0 0.0
      %655 = vmatprep.subr.mxu0 0.0
      %656 = vmatpush1.msra.mxu0 0.0
      %657 = vmatprep.subr.mxu0 0.0
      %658 = vmatpush1.msra.mxu0 0.0
      %659 = vmatprep.subr.mxu0 0.0
      %660 = vmatpush1.msra.mxu0 0.0
      %661 = vmatprep.subr.mxu0 0.0
      %662 = vmatpush1.msra.mxu0 0.0
      %663 = vmatprep.subr.mxu0 0.0
      %664 = vmatpush1.msra.mxu0 0.0
      %665 = vmatprep.subr.mxu0 0.0
      %666 = vmatpush1.msra.mxu0 0.0
      %667 = vmatprep.subr.mxu0 0.0
      %668 = vmatpush1.msra.mxu0 0.0
      %669 = vmatprep.subr.mxu0 0.0
      %670 = vmatpush1.msra.mxu0 0.0
      %671 = vmatprep.subr.mxu0 0.0
      %672 = vmatpush1.msra.mxu0 0.0
      %673 = vmatprep.subr.mxu0 0.0
      %674 = vmatpush1.msra.mxu0 0.0
      %675 = vmatprep.subr.mxu0 0.0
      %676 = vmatpush1.msra.mxu0 0.0
      %677 = vmatprep.subr.mxu0 0.0
      %678 = vmatpush1.msra.mxu0 0.0
      %679 = vmatprep.mubr.f32.mxu0 0.0
      %680 = vmatmul.mubr.f32.gmra.mrb[0].mxu0 %v576
      %v681 = vpop.f32.mrb[0].mxu0
      %v682 = vadd.f32 %v613, %v681
      %v683 = vpop.f32.mrb[0].mxu0
      %684 = vmatprep.mubr.f32.mxu0 0.0
      %685 = vmatmul.mubr.f32.gmra.mrb[0].mxu0 %v577
      %v686 = vpop.f32.mrb[0].mxu0
      %v687 = vadd.f32 %v613, %v686
      %v688 = vpop.f32.mrb[0].mxu0
      %689 = vmatprep.mubr.f32.mxu0 0.0
      %690 = vmatmul.mubr.f32.gmra.mrb[0].mxu0 %v578
      %v691 = vpop.f32.mrb[0].mxu0
      %v692 = vadd.f32 %v613, %v691
      %v693 = vpop.f32.mrb[0].mxu0
      %694 = vmatprep.mubr.f32.mxu0 0.0
      %695 = vmatmul.mubr.f32.gmra.mrb[0].mxu0 %v579
      %v696 = vpop.f32.mrb[0].mxu0
      %v697 = vadd.f32 %v613, %v696
      %v698 = vpop.f32.mrb[0].mxu0
      %699 = vmatprep.mubr.f32.mxu0 0.0
      %700 = vmatmul.mubr.f32.gmra.mrb[0].mxu0 %v580
      %v701 = vpop.f32.mrb[0].mxu0
      %v702 = vadd.f32 %v613, %v701
      %v703 = vpop.f32.mrb[0].mxu0
      %704 = vmatprep.mubr.f32.mxu0 0.0
      %705 = vmatmul.mubr.f32.gmra.mrb[0].mxu0 %v581
      %v706 = vpop.f32.mrb[0].mxu0
      %v707 = vadd.f32 %v613, %v706
      %v708 = vpop.f32.mrb[0].mxu0
      %709 = vmatprep.mubr.f32.mxu0 0.0
      %710 = vmatmul.mubr.f32.gmra.mrb[0].mxu0 %v582
      %v711 = vpop.f32.mrb[0].mxu0
      %v712 = vadd.f32 %v613, %v711
      %v713 = vpop.f32.mrb[0].mxu0
      %714 = vmatprep.mubr.f32.mxu0 0.0
      %715 = vmatmul.mubr.f32.gmra.mrb[0].mxu0 %v583
      %v716 = vpop.f32.mrb[0].mxu0
      %v717 = vadd.f32 %v613, %v716
      %v718 = vpop.f32.mrb[0].mxu0
      %719 = vmatprep.mubr.f32.mxu0 0.0
      %720 = vmatmul.mubr.f32.gmra.mrb[0].mxu0 %v584
      %v721 = vpop.f32.mrb[0].mxu0
      %v722 = vadd.f32 %v613, %v721
      %v723 = vpop.f32.mrb[0].mxu0
      %724 = vmatprep.mubr.f32.mxu0 0.0
      %725 = vmatmul.mubr.f32.gmra.mrb[0].mxu0 %v585
      %v726 = vpop.f32.mrb[0].mxu0
      %v727 = vadd.f32 %v613, %v726
      %v728 = vpop.f32.mrb[0].mxu0
      %729 = vmatprep.mubr.f32.mxu0 0.0
      %730 = vmatmul.mubr.f32.gmra.mrb[0].mxu0 %v586
      %v731 = vpop.f32.mrb[0].mxu0
      %v732 = vadd.f32 %v613, %v731
      %v733 = vpop.f32.mrb[0].mxu0
      %734 = vmatprep.mubr.f32.mxu0 0.0
      %735 = vmatmul.mubr.f32.gmra.mrb[0].mxu0 %v587
      %v736 = vpop.f32.mrb[0].mxu0
      %v737 = vadd.f32 %v613, %v736
      %v738 = vpop.f32.mrb[0].mxu0
      %739 = vmatprep.mubr.f32.mxu0 0.0
      %740 = vmatmul.mubr.f32.gmra.mrb[0].mxu0 %v588
      %v741 = vpop.f32.mrb[0].mxu0
      %v742 = vadd.f32 %v613, %v741
      %v743 = vpop.f32.mrb[0].mxu0
      %744 = vmatprep.mubr.f32.mxu0 0.0
      %745 = vmatmul.mubr.f32.gmra.mrb[0].mxu0 %v589
      %v746 = vpop.f32.mrb[0].mxu0
      %v747 = vadd.f32 %v613, %v746
      %v748 = vpop.f32.mrb[0].mxu0
      %749 = vmatprep.mubr.f32.mxu0 0.0
      %750 = vmatmul.mubr.f32.gmra.mrb[0].mxu0 %v590
      %v751 = vpop.f32.mrb[0].mxu0
      %v752 = vadd.f32 %v613, %v751
      %v753 = vpop.f32.mrb[0].mxu0
      %754 = vmatprep.mubr.f32.mxu0 0.0
      %755 = vmatmul.mubr.f32.gmra.mrb[0].mxu0 %v591
      %v756 = vpop.f32.mrb[0].mxu0
      %v757 = vadd.f32 %v613, %v756
      %v758 = vpop.f32.mrb[0].mxu0
      %759 = vdwg.mxu0
      %v760 = vtanh.pop %v682
      %v761 = vtanh.pop %v687
      %v762 = vtanh.pop %v692
      %v763 = vtanh.pop %v697
      %v764 = vtanh.pop %v702
      %v765 = vtanh.pop %v707
      %v766 = vtanh.pop %v712
      %v767 = vtanh.pop %v717
      %v768 = vtanh.pop %v722
      %v769 = vtanh.pop %v727
      %v770 = vtanh.pop %v732
      %v771 = vtanh.pop %v737
      %v772 = vtanh.pop %v742
      %v773 = vtanh.pop %v747
      %v774 = vtanh.pop %v752
      %v775 = vtanh.pop %v757
      %v776 = vld [vmem:[%s5] sm:$0xff]
      %v777 = vld [vmem:[%s5 + $0x8] sm:$0xff]
      %v778 = vld [vmem:[%s5 + $0x10] sm:$0xff]
      %v779 = vld [vmem:[%s5 + $0x18] sm:$0xff]
      %v780 = vld [vmem:[%s5 + $0x20] sm:$0xff]
      %v781 = vld [vmem:[%s5 + $0x28] sm:$0xff]
      %v782 = vld [vmem:[%s5 + $0x30] sm:$0xff]
      %v783 = vld [vmem:[%s5 + $0x38] sm:$0xff]
      %v784 = vld [vmem:[%s5 + $0x40] sm:$0xff]
      %v785 = vld [vmem:[%s5 + $0x48] sm:$0xff]
      %v786 = vld [vmem:[%s5 + $0x50] sm:$0xff]
      %v787 = vld [vmem:[%s5 + $0x58] sm:$0xff]
      %v788 = vld [vmem:[%s5 + $0x60] sm:$0xff]
      %v789 = vld [vmem:[%s5 + $0x68] sm:$0xff]
      %v790 = vld [vmem:[%s5 + $0x70] sm:$0xff]
      %v791 = vld [vmem:[%s5 + $0x78] sm:$0xff]
      %s792 = scalar_lea.vmem %s1, 2
      %v793 = vld [vmem:[%s792] sm:$0x3]
      %v794 = vlaneseq
      %v795 = vshrl.u32 %v794, 7
      %v796 = vsub.s32 0, %v795
      %v797 = vrot.slane %v793, %v796
      %v798 = vmul.f32 %v356, %v797
      %v799 = vmul.f32 %v361, %v797
      %v800 = vmul.f32 %v366, %v797
      %v801 = vmul.f32 %v371, %v797
      %v802 = vmul.f32 %v376, %v797
      %v803 = vmul.f32 %v381, %v797
      %v804 = vmul.f32 %v386, %v797
      %v805 = vmul.f32 %v391, %v797
      %v806 = vmul.f32 %v396, %v797
      %v807 = vmul.f32 %v401, %v797
      %v808 = vmul.f32 %v406, %v797
      %v809 = vmul.f32 %v411, %v797
      %v810 = vmul.f32 %v416, %v797
      %v811 = vmul.f32 %v421, %v797
      %v812 = vmul.f32 %v426, %v797
      %v813 = vmul.f32 %v431, %v797
      %v814 = vlaneseq
      %v815 = vshrl.u32 %v814, 7
      %v816 = vsub.s32 1, %v815
      %v817 = vrot.slane %v793, %v816
      %v818 = vmul.f32 %v455, %v817
      %v819 = vmul.f32 %v459, %v817
      %v820 = vmul.f32 %v463, %v817
      %v821 = vmul.f32 %v467, %v817
      %v822 = vmul.f32 %v471, %v817
      %v823 = vmul.f32 %v475, %v817
      %v824 = vmul.f32 %v479, %v817
      %v825 = vmul.f32 %v483, %v817
      %v826 = vmul.f32 %v487, %v817
      %v827 = vmul.f32 %v491, %v817
      %v828 = vmul.f32 %v495, %v817
      %v829 = vmul.f32 %v499, %v817
      %v830 = vmul.f32 %v503, %v817
      %v831 = vmul.f32 %v507, %v817
      %v832 = vmul.f32 %v511, %v817
      %v833 = vmul.f32 %v515, %v817
      %v834 = vadd.f32 %v798, %v818
      %v835 = vadd.f32 %v799, %v819
      %v836 = vadd.f32 %v800, %v820
      %v837 = vadd.f32 %v801, %v821
      %v838 = vadd.f32 %v802, %v822
      %v839 = vadd.f32 %v803, %v823
      %v840 = vadd.f32 %v804, %v824
      %v841 = vadd.f32 %v805, %v825
      %v842 = vadd.f32 %v806, %v826
      %v843 = vadd.f32 %v807, %v827
      %v844 = vadd.f32 %v808, %v828
      %v845 = vadd.f32 %v809, %v829
      %v846 = vadd.f32 %v810, %v830
      %v847 = vadd.f32 %v811, %v831
      %v848 = vadd.f32 %v812, %v832
      %v849 = vadd.f32 %v813, %v833
      %s850 = scalar_lea.vmem %s2, 1
      %v851 = vld [vmem:[%s850] sm:$0x1]
      %v853 = vlaneseq
      %v854 = vshrl.u32 %v853, 7
      %v855 = vsub.s32 0, %v854
      %v856 = vrot.slane %v851, %v855
      %v858 = vadd.f32 %v834, %v856
      %v859 = vadd.f32 %v835, %v856
      %v860 = vadd.f32 %v836, %v856
      %v861 = vadd.f32 %v837, %v856
      %v862 = vadd.f32 %v838, %v856
      %v863 = vadd.f32 %v839, %v856
      %v864 = vadd.f32 %v840, %v856
      %v865 = vadd.f32 %v841, %v856
      %v866 = vadd.f32 %v842, %v856
      %v867 = vadd.f32 %v843, %v856
      %v868 = vadd.f32 %v844, %v856
      %v869 = vadd.f32 %v845, %v856
      %v870 = vadd.f32 %v846, %v856
      %v871 = vadd.f32 %v847, %v856
      %v872 = vadd.f32 %v848, %v856
      %v873 = vadd.f32 %v849, %v856
      %v874 = vtanh.pop %v858
      %v875 = vtanh.pop %v859
      %v876 = vtanh.pop %v860
      %v877 = vtanh.pop %v861
      %v878 = vtanh.pop %v862
      %v879 = vtanh.pop %v863
      %v880 = vtanh.pop %v864
      %v881 = vtanh.pop %v865
      %v882 = vtanh.pop %v866
      %v883 = vtanh.pop %v867
      %v884 = vtanh.pop %v868
      %v885 = vtanh.pop %v869
      %v886 = vtanh.pop %v870
      %v887 = vtanh.pop %v871
      %v888 = vtanh.pop %v872
      %v889 = vtanh.pop %v873
      %s890 = scalar_lea.vmem %s3, 128
      %v891 = vld [vmem:[%s890] sm:$0xff]
      %v892 = vld [vmem:[%s890 + $0x8] sm:$0xff]
      %v893 = vld [vmem:[%s890 + $0x10] sm:$0xff]
      %v894 = vld [vmem:[%s890 + $0x18] sm:$0xff]
      %v895 = vld [vmem:[%s890 + $0x20] sm:$0xff]
      %v896 = vld [vmem:[%s890 + $0x28] sm:$0xff]
      %v897 = vld [vmem:[%s890 + $0x30] sm:$0xff]
      %v898 = vld [vmem:[%s890 + $0x38] sm:$0xff]
      %v899 = vld [vmem:[%s890 + $0x40] sm:$0xff]
      %v900 = vld [vmem:[%s890 + $0x48] sm:$0xff]
      %v901 = vld [vmem:[%s890 + $0x50] sm:$0xff]
      %v902 = vld [vmem:[%s890 + $0x58] sm:$0xff]
      %v903 = vld [vmem:[%s890 + $0x60] sm:$0xff]
      %v904 = vld [vmem:[%s890 + $0x68] sm:$0xff]
      %v905 = vld [vmem:[%s890 + $0x70] sm:$0xff]
      %v906 = vld [vmem:[%s890 + $0x78] sm:$0xff]
      %s907 = scalar_lea.vmem %s4, 1
      %v908 = vld [vmem:[%s907] sm:$0x1]
      %v910 = vlaneseq
      %v911 = vshrl.u32 %v910, 7
      %v912 = vsub.s32 0, %v911
      %v913 = vrot.slane %v908, %v912
      %915 = vmatprep.subr.mxu0 0.0
      %916 = vmatpush1.msra.mxu0 %v891
      %917 = vmatprep.subr.mxu0 0.0
      %918 = vmatpush1.msra.mxu0 %v892
      %919 = vmatprep.subr.mxu0 0.0
      %920 = vmatpush1.msra.mxu0 %v893
      %921 = vmatprep.subr.mxu0 0.0
      %922 = vmatpush1.msra.mxu0 %v894
      %923 = vmatprep.subr.mxu0 0.0
      %924 = vmatpush1.msra.mxu0 %v895
      %925 = vmatprep.subr.mxu0 0.0
      %926 = vmatpush1.msra.mxu0 %v896
      %927 = vmatprep.subr.mxu0 0.0
      %928 = vmatpush1.msra.mxu0 %v897
      %929 = vmatprep.subr.mxu0 0.0
      %930 = vmatpush1.msra.mxu0 %v898
      %931 = vmatprep.subr.mxu0 0.0
      %932 = vmatpush1.msra.mxu0 %v899
      %933 = vmatprep.subr.mxu0 0.0
      %934 = vmatpush1.msra.mxu0 %v900
      %935 = vmatprep.subr.mxu0 0.0
      %936 = vmatpush1.msra.mxu0 %v901
      %937 = vmatprep.subr.mxu0 0.0
      %938 = vmatpush1.msra.mxu0 %v902
      %939 = vmatprep.subr.mxu0 0.0
      %940 = vmatpush1.msra.mxu0 %v903
      %941 = vmatprep.subr.mxu0 0.0
      %942 = vmatpush1.msra.mxu0 %v904
      %943 = vmatprep.subr.mxu0 0.0
      %944 = vmatpush1.msra.mxu0 %v905
      %945 = vmatprep.subr.mxu0 0.0
      %946 = vmatpush1.msra.mxu0 %v906
      %947 = vmatprep.subr.mxu0 0.0
      %948 = vmatpush1.msra.mxu0 0.0
      %949 = vmatprep.subr.mxu0 0.0
      %950 = vmatpush1.msra.mxu0 0.0
      %951 = vmatprep.subr.mxu0 0.0
      %952 = vmatpush1.msra.mxu0 0.0
      %953 = vmatprep.subr.mxu0 0.0
      %954 = vmatpush1.msra.mxu0 0.0
      %955 = vmatprep.subr.mxu0 0.0
      %956 = vmatpush1.msra.mxu0 0.0
      %957 = vmatprep.subr.mxu0 0.0
      %958 = vmatpush1.msra.mxu0 0.0
      %959 = vmatprep.subr.mxu0 0.0
      %960 = vmatpush1.msra.mxu0 0.0
      %961 = vmatprep.subr.mxu0 0.0
      %962 = vmatpush1.msra.mxu0 0.0
      %963 = vmatprep.subr.mxu0 0.0
      %964 = vmatpush1.msra.mxu0 0.0
      %965 = vmatprep.subr.mxu0 0.0
      %966 = vmatpush1.msra.mxu0 0.0
      %967 = vmatprep.subr.mxu0 0.0
      %968 = vmatpush1.msra.mxu0 0.0
      %969 = vmatprep.subr.mxu0 0.0
      %970 = vmatpush1.msra.mxu0 0.0
      %971 = vmatprep.subr.mxu0 0.0
      %972 = vmatpush1.msra.mxu0 0.0
      %973 = vmatprep.subr.mxu0 0.0
      %974 = vmatpush1.msra.mxu0 0.0
      %975 = vmatprep.subr.mxu0 0.0
      %976 = vmatpush1.msra.mxu0 0.0
      %977 = vmatprep.subr.mxu0 0.0
      %978 = vmatpush1.msra.mxu0 0.0
      %979 = vmatprep.mubr.f32.mxu0 0.0
      %980 = vmatmul.mubr.f32.gmra.mrb[0].mxu0 %v874
      %v981 = vpop.f32.mrb[0].mxu0
      %v982 = vadd.f32 %v913, %v981
      %v983 = vpop.f32.mrb[0].mxu0
      %984 = vmatprep.mubr.f32.mxu0 0.0
      %985 = vmatmul.mubr.f32.gmra.mrb[0].mxu0 %v875
      %v986 = vpop.f32.mrb[0].mxu0
      %v987 = vadd.f32 %v913, %v986
      %v988 = vpop.f32.mrb[0].mxu0
      %989 = vmatprep.mubr.f32.mxu0 0.0
      %990 = vmatmul.mubr.f32.gmra.mrb[0].mxu0 %v876
      %v991 = vpop.f32.mrb[0].mxu0
      %v992 = vadd.f32 %v913, %v991
      %v993 = vpop.f32.mrb[0].mxu0
      %994 = vmatprep.mubr.f32.mxu0 0.0
      %995 = vmatmul.mubr.f32.gmra.mrb[0].mxu0 %v877
      %v996 = vpop.f32.mrb[0].mxu0
      %v997 = vadd.f32 %v913, %v996
      %v998 = vpop.f32.mrb[0].mxu0
      %999 = vmatprep.mubr.f32.mxu0 0.0
      %1000 = vmatmul.mubr.f32.gmra.mrb[0].mxu0 %v878
      %v1001 = vpop.f32.mrb[0].mxu0
      %v1002 = vadd.f32 %v913, %v1001
      %v1003 = vpop.f32.mrb[0].mxu0
      %1004 = vmatprep.mubr.f32.mxu0 0.0
      %1005 = vmatmul.mubr.f32.gmra.mrb[0].mxu0 %v879
      %v1006 = vpop.f32.mrb[0].mxu0
      %v1007 = vadd.f32 %v913, %v1006
      %v1008 = vpop.f32.mrb[0].mxu0
      %1009 = vmatprep.mubr.f32.mxu0 0.0
      %1010 = vmatmul.mubr.f32.gmra.mrb[0].mxu0 %v880
      %v1011 = vpop.f32.mrb[0].mxu0
      %v1012 = vadd.f32 %v913, %v1011
      %v1013 = vpop.f32.mrb[0].mxu0
      %1014 = vmatprep.mubr.f32.mxu0 0.0
      %1015 = vmatmul.mubr.f32.gmra.mrb[0].mxu0 %v881
      %v1016 = vpop.f32.mrb[0].mxu0
      %v1017 = vadd.f32 %v913, %v1016
      %v1018 = vpop.f32.mrb[0].mxu0
      %1019 = vmatprep.mubr.f32.mxu0 0.0
      %1020 = vmatmul.mubr.f32.gmra.mrb[0].mxu0 %v882
      %v1021 = vpop.f32.mrb[0].mxu0
      %v1022 = vadd.f32 %v913, %v1021
      %v1023 = vpop.f32.mrb[0].mxu0
      %1024 = vmatprep.mubr.f32.mxu0 0.0
      %1025 = vmatmul.mubr.f32.gmra.mrb[0].mxu0 %v883
      %v1026 = vpop.f32.mrb[0].mxu0
      %v1027 = vadd.f32 %v913, %v1026
      %v1028 = vpop.f32.mrb[0].mxu0
      %1029 = vmatprep.mubr.f32.mxu0 0.0
      %1030 = vmatmul.mubr.f32.gmra.mrb[0].mxu0 %v884
      %v1031 = vpop.f32.mrb[0].mxu0
      %v1032 = vadd.f32 %v913, %v1031
      %v1033 = vpop.f32.mrb[0].mxu0
      %1034 = vmatprep.mubr.f32.mxu0 0.0
      %1035 = vmatmul.mubr.f32.gmra.mrb[0].mxu0 %v885
      %v1036 = vpop.f32.mrb[0].mxu0
      %v1037 = vadd.f32 %v913, %v1036
      %v1038 = vpop.f32.mrb[0].mxu0
      %1039 = vmatprep.mubr.f32.mxu0 0.0
      %1040 = vmatmul.mubr.f32.gmra.mrb[0].mxu0 %v886
      %v1041 = vpop.f32.mrb[0].mxu0
      %v1042 = vadd.f32 %v913, %v1041
      %v1043 = vpop.f32.mrb[0].mxu0
      %1044 = vmatprep.mubr.f32.mxu0 0.0
      %1045 = vmatmul.mubr.f32.gmra.mrb[0].mxu0 %v887
      %v1046 = vpop.f32.mrb[0].mxu0
      %v1047 = vadd.f32 %v913, %v1046
      %v1048 = vpop.f32.mrb[0].mxu0
      %1049 = vmatprep.mubr.f32.mxu0 0.0
      %1050 = vmatmul.mubr.f32.gmra.mrb[0].mxu0 %v888
      %v1051 = vpop.f32.mrb[0].mxu0
      %v1052 = vadd.f32 %v913, %v1051
      %v1053 = vpop.f32.mrb[0].mxu0
      %1054 = vmatprep.mubr.f32.mxu0 0.0
      %1055 = vmatmul.mubr.f32.gmra.mrb[0].mxu0 %v889
      %v1056 = vpop.f32.mrb[0].mxu0
      %v1057 = vadd.f32 %v913, %v1056
      %v1058 = vpop.f32.mrb[0].mxu0
      %1059 = vdwg.mxu0
      %v1060 = vtanh.pop %v982
      %v1061 = vtanh.pop %v987
      %v1062 = vtanh.pop %v992
      %v1063 = vtanh.pop %v997
      %v1064 = vtanh.pop %v1002
      %v1065 = vtanh.pop %v1007
      %v1066 = vtanh.pop %v1012
      %v1067 = vtanh.pop %v1017
      %v1068 = vtanh.pop %v1022
      %v1069 = vtanh.pop %v1027
      %v1070 = vtanh.pop %v1032
      %v1071 = vtanh.pop %v1037
      %v1072 = vtanh.pop %v1042
      %v1073 = vtanh.pop %v1047
      %v1074 = vtanh.pop %v1052
      %v1075 = vtanh.pop %v1057
      %s1076 = scalar_lea.vmem %s5, 128
      %v1077 = vld [vmem:[%s1076] sm:$0xff]
      %v1078 = vld [vmem:[%s1076 + $0x8] sm:$0xff]
      %v1079 = vld [vmem:[%s1076 + $0x10] sm:$0xff]
      %v1080 = vld [vmem:[%s1076 + $0x18] sm:$0xff]
      %v1081 = vld [vmem:[%s1076 + $0x20] sm:$0xff]
      %v1082 = vld [vmem:[%s1076 + $0x28] sm:$0xff]
      %v1083 = vld [vmem:[%s1076 + $0x30] sm:$0xff]
      %v1084 = vld [vmem:[%s1076 + $0x38] sm:$0xff]
      %v1085 = vld [vmem:[%s1076 + $0x40] sm:$0xff]
      %v1086 = vld [vmem:[%s1076 + $0x48] sm:$0xff]
      %v1087 = vld [vmem:[%s1076 + $0x50] sm:$0xff]
      %v1088 = vld [vmem:[%s1076 + $0x58] sm:$0xff]
      %v1089 = vld [vmem:[%s1076 + $0x60] sm:$0xff]
      %v1090 = vld [vmem:[%s1076 + $0x68] sm:$0xff]
      %v1091 = vld [vmem:[%s1076 + $0x70] sm:$0xff]
      %v1092 = vld [vmem:[%s1076 + $0x78] sm:$0xff]
      %1093 = vmatprep.subr.mxu0 0.0
      %1094 = vmatpush1.msra.mxu0 %v1077
      %1095 = vmatprep.subr.mxu0 0.0
      %1096 = vmatpush1.msra.mxu0 %v1078
      %1097 = vmatprep.subr.mxu0 0.0
      %1098 = vmatpush1.msra.mxu0 %v1079
      %1099 = vmatprep.subr.mxu0 0.0
      %1100 = vmatpush1.msra.mxu0 %v1080
      %1101 = vmatprep.subr.mxu0 0.0
      %1102 = vmatpush1.msra.mxu0 %v1081
      %1103 = vmatprep.subr.mxu0 0.0
      %1104 = vmatpush1.msra.mxu0 %v1082
      %1105 = vmatprep.subr.mxu0 0.0
      %1106 = vmatpush1.msra.mxu0 %v1083
      %1107 = vmatprep.subr.mxu0 0.0
      %1108 = vmatpush1.msra.mxu0 %v1084
      %1109 = vmatprep.subr.mxu0 0.0
      %1110 = vmatpush1.msra.mxu0 %v1085
      %1111 = vmatprep.subr.mxu0 0.0
      %1112 = vmatpush1.msra.mxu0 %v1086
      %1113 = vmatprep.subr.mxu0 0.0
      %1114 = vmatpush1.msra.mxu0 %v1087
      %1115 = vmatprep.subr.mxu0 0.0
      %1116 = vmatpush1.msra.mxu0 %v1088
      %1117 = vmatprep.subr.mxu0 0.0
      %1118 = vmatpush1.msra.mxu0 %v1089
      %1119 = vmatprep.subr.mxu0 0.0
      %1120 = vmatpush1.msra.mxu0 %v1090
      %1121 = vmatprep.subr.mxu0 0.0
      %1122 = vmatpush1.msra.mxu0 %v1091
      %1123 = vmatprep.subr.mxu0 0.0
      %1124 = vmatpush1.msra.mxu0 %v1092
      %1125 = vmatprep.subr.mxu0 0.0
      %1126 = vmatpush1.msra.mxu0 0.0
      %1127 = vmatprep.subr.mxu0 0.0
      %1128 = vmatpush1.msra.mxu0 0.0
      %1129 = vmatprep.subr.mxu0 0.0
      %1130 = vmatpush1.msra.mxu0 0.0
      %1131 = vmatprep.subr.mxu0 0.0
      %1132 = vmatpush1.msra.mxu0 0.0
      %1133 = vmatprep.subr.mxu0 0.0
      %1134 = vmatpush1.msra.mxu0 0.0
      %1135 = vmatprep.subr.mxu0 0.0
      %1136 = vmatpush1.msra.mxu0 0.0
      %1137 = vmatprep.subr.mxu0 0.0
      %1138 = vmatpush1.msra.mxu0 0.0
      %1139 = vmatprep.subr.mxu0 0.0
      %1140 = vmatpush1.msra.mxu0 0.0
      %1141 = vmatprep.subr.mxu0 0.0
      %1142 = vmatpush1.msra.mxu0 0.0
      %1143 = vmatprep.subr.mxu0 0.0
      %1144 = vmatpush1.msra.mxu0 0.0
      %1145 = vmatprep.subr.mxu0 0.0
      %1146 = vmatpush1.msra.mxu0 0.0
      %1147 = vmatprep.subr.mxu0 0.0
      %1148 = vmatpush1.msra.mxu0 0.0
      %1149 = vmatprep.subr.mxu0 0.0
      %1150 = vmatpush1.msra.mxu0 0.0
      %1151 = vmatprep.subr.mxu0 0.0
      %1152 = vmatpush1.msra.mxu0 0.0
      %1153 = vmatprep.subr.mxu0 0.0
      %1154 = vmatpush1.msra.mxu0 0.0
      %1155 = vmatprep.subr.mxu0 0.0
      %1156 = vmatpush1.msra.mxu0 0.0
      %1157 = vmatprep.mubr.f32.mxu0 0.0
      %1158 = vmatmul.mubr.f32.gmra.mrb[0].mxu0 %v1060
      %v1159 = vpop.f32.mrb[0].mxu0
      %v1160 = vadd.f32 0.0, %v1159
      %v1161 = vpop.f32.mrb[0].mxu0
      %1162 = vmatprep.mubr.f32.mxu0 0.0
      %1163 = vmatmul.mubr.f32.gmra.mrb[0].mxu0 %v1061
      %v1164 = vpop.f32.mrb[0].mxu0
      %v1165 = vadd.f32 0.0, %v1164
      %v1166 = vpop.f32.mrb[0].mxu0
      %1167 = vmatprep.mubr.f32.mxu0 0.0
      %1168 = vmatmul.mubr.f32.gmra.mrb[0].mxu0 %v1062
      %v1169 = vpop.f32.mrb[0].mxu0
      %v1170 = vadd.f32 0.0, %v1169
      %v1171 = vpop.f32.mrb[0].mxu0
      %1172 = vmatprep.mubr.f32.mxu0 0.0
      %1173 = vmatmul.mubr.f32.gmra.mrb[0].mxu0 %v1063
      %v1174 = vpop.f32.mrb[0].mxu0
      %v1175 = vadd.f32 0.0, %v1174
      %v1176 = vpop.f32.mrb[0].mxu0
      %1177 = vmatprep.mubr.f32.mxu0 0.0
      %1178 = vmatmul.mubr.f32.gmra.mrb[0].mxu0 %v1064
      %v1179 = vpop.f32.mrb[0].mxu0
      %v1180 = vadd.f32 0.0, %v1179
      %v1181 = vpop.f32.mrb[0].mxu0
      %1182 = vmatprep.mubr.f32.mxu0 0.0
      %1183 = vmatmul.mubr.f32.gmra.mrb[0].mxu0 %v1065
      %v1184 = vpop.f32.mrb[0].mxu0
      %v1185 = vadd.f32 0.0, %v1184
      %v1186 = vpop.f32.mrb[0].mxu0
      %1187 = vmatprep.mubr.f32.mxu0 0.0
      %1188 = vmatmul.mubr.f32.gmra.mrb[0].mxu0 %v1066
      %v1189 = vpop.f32.mrb[0].mxu0
      %v1190 = vadd.f32 0.0, %v1189
      %v1191 = vpop.f32.mrb[0].mxu0
      %1192 = vmatprep.mubr.f32.mxu0 0.0
      %1193 = vmatmul.mubr.f32.gmra.mrb[0].mxu0 %v1067
      %v1194 = vpop.f32.mrb[0].mxu0
      %v1195 = vadd.f32 0.0, %v1194
      %v1196 = vpop.f32.mrb[0].mxu0
      %1197 = vmatprep.mubr.f32.mxu0 0.0
      %1198 = vmatmul.mubr.f32.gmra.mrb[0].mxu0 %v1068
      %v1199 = vpop.f32.mrb[0].mxu0
      %v1200 = vadd.f32 0.0, %v1199
      %v1201 = vpop.f32.mrb[0].mxu0
      %1202 = vmatprep.mubr.f32.mxu0 0.0
      %1203 = vmatmul.mubr.f32.gmra.mrb[0].mxu0 %v1069
      %v1204 = vpop.f32.mrb[0].mxu0
      %v1205 = vadd.f32 0.0, %v1204
      %v1206 = vpop.f32.mrb[0].mxu0
      %1207 = vmatprep.mubr.f32.mxu0 0.0
      %1208 = vmatmul.mubr.f32.gmra.mrb[0].mxu0 %v1070
      %v1209 = vpop.f32.mrb[0].mxu0
      %v1210 = vadd.f32 0.0, %v1209
      %v1211 = vpop.f32.mrb[0].mxu0
      %1212 = vmatprep.mubr.f32.mxu0 0.0
      %1213 = vmatmul.mubr.f32.gmra.mrb[0].mxu0 %v1071
      %v1214 = vpop.f32.mrb[0].mxu0
      %v1215 = vadd.f32 0.0, %v1214
      %v1216 = vpop.f32.mrb[0].mxu0
      %1217 = vmatprep.mubr.f32.mxu0 0.0
      %1218 = vmatmul.mubr.f32.gmra.mrb[0].mxu0 %v1072
      %v1219 = vpop.f32.mrb[0].mxu0
      %v1220 = vadd.f32 0.0, %v1219
      %v1221 = vpop.f32.mrb[0].mxu0
      %1222 = vmatprep.mubr.f32.mxu0 0.0
      %1223 = vmatmul.mubr.f32.gmra.mrb[0].mxu0 %v1073
      %v1224 = vpop.f32.mrb[0].mxu0
      %v1225 = vadd.f32 0.0, %v1224
      %v1226 = vpop.f32.mrb[0].mxu0
      %1227 = vmatprep.mubr.f32.mxu0 0.0
      %1228 = vmatmul.mubr.f32.gmra.mrb[0].mxu0 %v1074
      %v1229 = vpop.f32.mrb[0].mxu0
      %v1230 = vadd.f32 0.0, %v1229
      %v1231 = vpop.f32.mrb[0].mxu0
      %1232 = vmatprep.mubr.f32.mxu0 0.0
      %1233 = vmatmul.mubr.f32.gmra.mrb[0].mxu0 %v1075
      %v1234 = vpop.f32.mrb[0].mxu0
      %v1235 = vadd.f32 0.0, %v1234
      %v1236 = vpop.f32.mrb[0].mxu0
      %1237 = vdwg.mxu0
      %1238 = vmatprep.subr.mxu0 0.0
      %1239 = vmatpush1.msra.mxu0 %v776
      %1240 = vmatprep.subr.mxu0 0.0
      %1241 = vmatpush1.msra.mxu0 %v777
      %1242 = vmatprep.subr.mxu0 0.0
      %1243 = vmatpush1.msra.mxu0 %v778
      %1244 = vmatprep.subr.mxu0 0.0
      %1245 = vmatpush1.msra.mxu0 %v779
      %1246 = vmatprep.subr.mxu0 0.0
      %1247 = vmatpush1.msra.mxu0 %v780
      %1248 = vmatprep.subr.mxu0 0.0
      %1249 = vmatpush1.msra.mxu0 %v781
      %1250 = vmatprep.subr.mxu0 0.0
      %1251 = vmatpush1.msra.mxu0 %v782
      %1252 = vmatprep.subr.mxu0 0.0
      %1253 = vmatpush1.msra.mxu0 %v783
      %1254 = vmatprep.subr.mxu0 0.0
      %1255 = vmatpush1.msra.mxu0 %v784
      %1256 = vmatprep.subr.mxu0 0.0
      %1257 = vmatpush1.msra.mxu0 %v785
      %1258 = vmatprep.subr.mxu0 0.0
      %1259 = vmatpush1.msra.mxu0 %v786
      %1260 = vmatprep.subr.mxu0 0.0
      %1261 = vmatpush1.msra.mxu0 %v787
      %1262 = vmatprep.subr.mxu0 0.0
      %1263 = vmatpush1.msra.mxu0 %v788
      %1264 = vmatprep.subr.mxu0 0.0
      %1265 = vmatpush1.msra.mxu0 %v789
      %1266 = vmatprep.subr.mxu0 0.0
      %1267 = vmatpush1.msra.mxu0 %v790
      %1268 = vmatprep.subr.mxu0 0.0
      %1269 = vmatpush1.msra.mxu0 %v791
      %1270 = vmatprep.subr.mxu0 0.0
      %1271 = vmatpush1.msra.mxu0 0.0
      %1272 = vmatprep.subr.mxu0 0.0
      %1273 = vmatpush1.msra.mxu0 0.0
      %1274 = vmatprep.subr.mxu0 0.0
      %1275 = vmatpush1.msra.mxu0 0.0
      %1276 = vmatprep.subr.mxu0 0.0
      %1277 = vmatpush1.msra.mxu0 0.0
      %1278 = vmatprep.subr.mxu0 0.0
      %1279 = vmatpush1.msra.mxu0 0.0
      %1280 = vmatprep.subr.mxu0 0.0
      %1281 = vmatpush1.msra.mxu0 0.0
      %1282 = vmatprep.subr.mxu0 0.0
      %1283 = vmatpush1.msra.mxu0 0.0
      %1284 = vmatprep.subr.mxu0 0.0
      %1285 = vmatpush1.msra.mxu0 0.0
      %1286 = vmatprep.subr.mxu0 0.0
      %1287 = vmatpush1.msra.mxu0 0.0
      %1288 = vmatprep.subr.mxu0 0.0
      %1289 = vmatpush1.msra.mxu0 0.0
      %1290 = vmatprep.subr.mxu0 0.0
      %1291 = vmatpush1.msra.mxu0 0.0
      %1292 = vmatprep.subr.mxu0 0.0
      %1293 = vmatpush1.msra.mxu0 0.0
      %1294 = vmatprep.subr.mxu0 0.0
      %1295 = vmatpush1.msra.mxu0 0.0
      %1296 = vmatprep.subr.mxu0 0.0
      %1297 = vmatpush1.msra.mxu0 0.0
      %1298 = vmatprep.subr.mxu0 0.0
      %1299 = vmatpush1.msra.mxu0 0.0
      %1300 = vmatprep.subr.mxu0 0.0
      %1301 = vmatpush1.msra.mxu0 0.0
      %1302 = vmatprep.mubr.f32.mxu0 0.0
      %1303 = vmatmul.mubr.f32.gmra.mrb[0].mxu0 %v760
      %v1304 = vpop.f32.mrb[0].mxu0
      %v1305 = vadd.f32 %v1160, %v1304
      %v1306 = vpop.f32.mrb[0].mxu0
      %1307 = vmatprep.mubr.f32.mxu0 0.0
      %1308 = vmatmul.mubr.f32.gmra.mrb[0].mxu0 %v761
      %v1309 = vpop.f32.mrb[0].mxu0
      %v1310 = vadd.f32 %v1165, %v1309
      %v1311 = vpop.f32.mrb[0].mxu0
      %1312 = vmatprep.mubr.f32.mxu0 0.0
      %1313 = vmatmul.mubr.f32.gmra.mrb[0].mxu0 %v762
      %v1314 = vpop.f32.mrb[0].mxu0
      %v1315 = vadd.f32 %v1170, %v1314
      %v1316 = vpop.f32.mrb[0].mxu0
      %1317 = vmatprep.mubr.f32.mxu0 0.0
      %1318 = vmatmul.mubr.f32.gmra.mrb[0].mxu0 %v763
      %v1319 = vpop.f32.mrb[0].mxu0
      %v1320 = vadd.f32 %v1175, %v1319
      %v1321 = vpop.f32.mrb[0].mxu0
      %1322 = vmatprep.mubr.f32.mxu0 0.0
      %1323 = vmatmul.mubr.f32.gmra.mrb[0].mxu0 %v764
      %v1324 = vpop.f32.mrb[0].mxu0
      %v1325 = vadd.f32 %v1180, %v1324
      %v1326 = vpop.f32.mrb[0].mxu0
      %1327 = vmatprep.mubr.f32.mxu0 0.0
      %1328 = vmatmul.mubr.f32.gmra.mrb[0].mxu0 %v765
      %v1329 = vpop.f32.mrb[0].mxu0
      %v1330 = vadd.f32 %v1185, %v1329
      %v1331 = vpop.f32.mrb[0].mxu0
      %1332 = vmatprep.mubr.f32.mxu0 0.0
      %1333 = vmatmul.mubr.f32.gmra.mrb[0].mxu0 %v766
      %v1334 = vpop.f32.mrb[0].mxu0
      %v1335 = vadd.f32 %v1190, %v1334
      %v1336 = vpop.f32.mrb[0].mxu0
      %1337 = vmatprep.mubr.f32.mxu0 0.0
      %1338 = vmatmul.mubr.f32.gmra.mrb[0].mxu0 %v767
      %v1339 = vpop.f32.mrb[0].mxu0
      %v1340 = vadd.f32 %v1195, %v1339
      %v1341 = vpop.f32.mrb[0].mxu0
      %1342 = vmatprep.mubr.f32.mxu0 0.0
      %1343 = vmatmul.mubr.f32.gmra.mrb[0].mxu0 %v768
      %v1344 = vpop.f32.mrb[0].mxu0
      %v1345 = vadd.f32 %v1200, %v1344
      %v1346 = vpop.f32.mrb[0].mxu0
      %1347 = vmatprep.mubr.f32.mxu0 0.0
      %1348 = vmatmul.mubr.f32.gmra.mrb[0].mxu0 %v769
      %v1349 = vpop.f32.mrb[0].mxu0
      %v1350 = vadd.f32 %v1205, %v1349
      %v1351 = vpop.f32.mrb[0].mxu0
      %1352 = vmatprep.mubr.f32.mxu0 0.0
      %1353 = vmatmul.mubr.f32.gmra.mrb[0].mxu0 %v770
      %v1354 = vpop.f32.mrb[0].mxu0
      %v1355 = vadd.f32 %v1210, %v1354
      %v1356 = vpop.f32.mrb[0].mxu0
      %1357 = vmatprep.mubr.f32.mxu0 0.0
      %1358 = vmatmul.mubr.f32.gmra.mrb[0].mxu0 %v771
      %v1359 = vpop.f32.mrb[0].mxu0
      %v1360 = vadd.f32 %v1215, %v1359
      %v1361 = vpop.f32.mrb[0].mxu0
      %1362 = vmatprep.mubr.f32.mxu0 0.0
      %1363 = vmatmul.mubr.f32.gmra.mrb[0].mxu0 %v772
      %v1364 = vpop.f32.mrb[0].mxu0
      %v1365 = vadd.f32 %v1220, %v1364
      %v1366 = vpop.f32.mrb[0].mxu0
      %1367 = vmatprep.mubr.f32.mxu0 0.0
      %1368 = vmatmul.mubr.f32.gmra.mrb[0].mxu0 %v773
      %v1369 = vpop.f32.mrb[0].mxu0
      %v1370 = vadd.f32 %v1225, %v1369
      %v1371 = vpop.f32.mrb[0].mxu0
      %1372 = vmatprep.mubr.f32.mxu0 0.0
      %1373 = vmatmul.mubr.f32.gmra.mrb[0].mxu0 %v774
      %v1374 = vpop.f32.mrb[0].mxu0
      %v1375 = vadd.f32 %v1230, %v1374
      %v1376 = vpop.f32.mrb[0].mxu0
      %1377 = vmatprep.mubr.f32.mxu0 0.0
      %1378 = vmatmul.mubr.f32.gmra.mrb[0].mxu0 %v775
      %v1379 = vpop.f32.mrb[0].mxu0
      %v1380 = vadd.f32 %v1235, %v1379
      %v1381 = vpop.f32.mrb[0].mxu0
      %1382 = vdwg.mxu0
      %s1383 = scalar_lea.vmem %s1, 4
      %v1384 = vld [vmem:[%s1383] sm:$0x3]
      %v1385 = vlaneseq
      %v1386 = vshrl.u32 %v1385, 7
      %v1387 = vsub.s32 0, %v1386
      %v1388 = vrot.slane %v1384, %v1387
      %v1389 = vmul.f32 %v356, %v1388
      %v1390 = vmul.f32 %v361, %v1388
      %v1391 = vmul.f32 %v366, %v1388
      %v1392 = vmul.f32 %v371, %v1388
      %v1393 = vmul.f32 %v376, %v1388
      %v1394 = vmul.f32 %v381, %v1388
      %v1395 = vmul.f32 %v386, %v1388
      %v1396 = vmul.f32 %v391, %v1388
      %v1397 = vmul.f32 %v396, %v1388
      %v1398 = vmul.f32 %v401, %v1388
      %v1399 = vmul.f32 %v406, %v1388
      %v1400 = vmul.f32 %v411, %v1388
      %v1401 = vmul.f32 %v416, %v1388
      %v1402 = vmul.f32 %v421, %v1388
      %v1403 = vmul.f32 %v426, %v1388
      %v1404 = vmul.f32 %v431, %v1388
      %v1405 = vlaneseq
      %v1406 = vshrl.u32 %v1405, 7
      %v1407 = vsub.s32 1, %v1406
      %v1408 = vrot.slane %v1384, %v1407
      %v1409 = vmul.f32 %v455, %v1408
      %v1410 = vmul.f32 %v459, %v1408
      %v1411 = vmul.f32 %v463, %v1408
      %v1412 = vmul.f32 %v467, %v1408
      %v1413 = vmul.f32 %v471, %v1408
      %v1414 = vmul.f32 %v475, %v1408
      %v1415 = vmul.f32 %v479, %v1408
      %v1416 = vmul.f32 %v483, %v1408
      %v1417 = vmul.f32 %v487, %v1408
      %v1418 = vmul.f32 %v491, %v1408
      %v1419 = vmul.f32 %v495, %v1408
      %v1420 = vmul.f32 %v499, %v1408
      %v1421 = vmul.f32 %v503, %v1408
      %v1422 = vmul.f32 %v507, %v1408
      %v1423 = vmul.f32 %v511, %v1408
      %v1424 = vmul.f32 %v515, %v1408
      %v1425 = vadd.f32 %v1389, %v1409
      %v1426 = vadd.f32 %v1390, %v1410
      %v1427 = vadd.f32 %v1391, %v1411
      %v1428 = vadd.f32 %v1392, %v1412
      %v1429 = vadd.f32 %v1393, %v1413
      %v1430 = vadd.f32 %v1394, %v1414
      %v1431 = vadd.f32 %v1395, %v1415
      %v1432 = vadd.f32 %v1396, %v1416
      %v1433 = vadd.f32 %v1397, %v1417
      %v1434 = vadd.f32 %v1398, %v1418
      %v1435 = vadd.f32 %v1399, %v1419
      %v1436 = vadd.f32 %v1400, %v1420
      %v1437 = vadd.f32 %v1401, %v1421
      %v1438 = vadd.f32 %v1402, %v1422
      %v1439 = vadd.f32 %v1403, %v1423
      %v1440 = vadd.f32 %v1404, %v1424
      %s1441 = scalar_lea.vmem %s2, 2
      %v1442 = vld [vmem:[%s1441] sm:$0x1]
      %v1444 = vlaneseq
      %v1445 = vshrl.u32 %v1444, 7
      %v1446 = vsub.s32 0, %v1445
      %v1447 = vrot.slane %v1442, %v1446
      %v1449 = vadd.f32 %v1425, %v1447
      %v1450 = vadd.f32 %v1426, %v1447
      %v1451 = vadd.f32 %v1427, %v1447
      %v1452 = vadd.f32 %v1428, %v1447
      %v1453 = vadd.f32 %v1429, %v1447
      %v1454 = vadd.f32 %v1430, %v1447
      %v1455 = vadd.f32 %v1431, %v1447
      %v1456 = vadd.f32 %v1432, %v1447
      %v1457 = vadd.f32 %v1433, %v1447
      %v1458 = vadd.f32 %v1434, %v1447
      %v1459 = vadd.f32 %v1435, %v1447
      %v1460 = vadd.f32 %v1436, %v1447
      %v1461 = vadd.f32 %v1437, %v1447
      %v1462 = vadd.f32 %v1438, %v1447
      %v1463 = vadd.f32 %v1439, %v1447
      %v1464 = vadd.f32 %v1440, %v1447
      %v1465 = vtanh.pop %v1449
      %v1466 = vtanh.pop %v1450
      %v1467 = vtanh.pop %v1451
      %v1468 = vtanh.pop %v1452
      %v1469 = vtanh.pop %v1453
      %v1470 = vtanh.pop %v1454
      %v1471 = vtanh.pop %v1455
      %v1472 = vtanh.pop %v1456
      %v1473 = vtanh.pop %v1457
      %v1474 = vtanh.pop %v1458
      %v1475 = vtanh.pop %v1459
      %v1476 = vtanh.pop %v1460
      %v1477 = vtanh.pop %v1461
      %v1478 = vtanh.pop %v1462
      %v1479 = vtanh.pop %v1463
      %v1480 = vtanh.pop %v1464
      %s1481 = scalar_lea.vmem %s3, 256
      %v1482 = vld [vmem:[%s1481] sm:$0xff]
      %v1483 = vld [vmem:[%s1481 + $0x8] sm:$0xff]
      %v1484 = vld [vmem:[%s1481 + $0x10] sm:$0xff]
      %v1485 = vld [vmem:[%s1481 + $0x18] sm:$0xff]
      %v1486 = vld [vmem:[%s1481 + $0x20] sm:$0xff]
      %v1487 = vld [vmem:[%s1481 + $0x28] sm:$0xff]
      %v1488 = vld [vmem:[%s1481 + $0x30] sm:$0xff]
      %v1489 = vld [vmem:[%s1481 + $0x38] sm:$0xff]
      %v1490 = vld [vmem:[%s1481 + $0x40] sm:$0xff]
      %v1491 = vld [vmem:[%s1481 + $0x48] sm:$0xff]
      %v1492 = vld [vmem:[%s1481 + $0x50] sm:$0xff]
      %v1493 = vld [vmem:[%s1481 + $0x58] sm:$0xff]
      %v1494 = vld [vmem:[%s1481 + $0x60] sm:$0xff]
      %v1495 = vld [vmem:[%s1481 + $0x68] sm:$0xff]
      %v1496 = vld [vmem:[%s1481 + $0x70] sm:$0xff]
      %v1497 = vld [vmem:[%s1481 + $0x78] sm:$0xff]
      %s1498 = scalar_lea.vmem %s4, 2
      %v1499 = vld [vmem:[%s1498] sm:$0x1]
      %v1501 = vlaneseq
      %v1502 = vshrl.u32 %v1501, 7
      %v1503 = vsub.s32 0, %v1502
      %v1504 = vrot.slane %v1499, %v1503
      %1506 = vmatprep.subr.mxu0 0.0
      %1507 = vmatpush1.msra.mxu0 %v1482
      %1508 = vmatprep.subr.mxu0 0.0
      %1509 = vmatpush1.msra.mxu0 %v1483
      %1510 = vmatprep.subr.mxu0 0.0
      %1511 = vmatpush1.msra.mxu0 %v1484
      %1512 = vmatprep.subr.mxu0 0.0
      %1513 = vmatpush1.msra.mxu0 %v1485
      %1514 = vmatprep.subr.mxu0 0.0
      %1515 = vmatpush1.msra.mxu0 %v1486
      %1516 = vmatprep.subr.mxu0 0.0
      %1517 = vmatpush1.msra.mxu0 %v1487
      %1518 = vmatprep.subr.mxu0 0.0
      %1519 = vmatpush1.msra.mxu0 %v1488
      %1520 = vmatprep.subr.mxu0 0.0
      %1521 = vmatpush1.msra.mxu0 %v1489
      %1522 = vmatprep.subr.mxu0 0.0
      %1523 = vmatpush1.msra.mxu0 %v1490
      %1524 = vmatprep.subr.mxu0 0.0
      %1525 = vmatpush1.msra.mxu0 %v1491
      %1526 = vmatprep.subr.mxu0 0.0
      %1527 = vmatpush1.msra.mxu0 %v1492
      %1528 = vmatprep.subr.mxu0 0.0
      %1529 = vmatpush1.msra.mxu0 %v1493
      %1530 = vmatprep.subr.mxu0 0.0
      %1531 = vmatpush1.msra.mxu0 %v1494
      %1532 = vmatprep.subr.mxu0 0.0
      %1533 = vmatpush1.msra.mxu0 %v1495
      %1534 = vmatprep.subr.mxu0 0.0
      %1535 = vmatpush1.msra.mxu0 %v1496
      %1536 = vmatprep.subr.mxu0 0.0
      %1537 = vmatpush1.msra.mxu0 %v1497
      %1538 = vmatprep.subr.mxu0 0.0
      %1539 = vmatpush1.msra.mxu0 0.0
      %1540 = vmatprep.subr.mxu0 0.0
      %1541 = vmatpush1.msra.mxu0 0.0
      %1542 = vmatprep.subr.mxu0 0.0
      %1543 = vmatpush1.msra.mxu0 0.0
      %1544 = vmatprep.subr.mxu0 0.0
      %1545 = vmatpush1.msra.mxu0 0.0
      %1546 = vmatprep.subr.mxu0 0.0
      %1547 = vmatpush1.msra.mxu0 0.0
      %1548 = vmatprep.subr.mxu0 0.0
      %1549 = vmatpush1.msra.mxu0 0.0
      %1550 = vmatprep.subr.mxu0 0.0
      %1551 = vmatpush1.msra.mxu0 0.0
      %1552 = vmatprep.subr.mxu0 0.0
      %1553 = vmatpush1.msra.mxu0 0.0
      %1554 = vmatprep.subr.mxu0 0.0
      %1555 = vmatpush1.msra.mxu0 0.0
      %1556 = vmatprep.subr.mxu0 0.0
      %1557 = vmatpush1.msra.mxu0 0.0
      %1558 = vmatprep.subr.mxu0 0.0
      %1559 = vmatpush1.msra.mxu0 0.0
      %1560 = vmatprep.subr.mxu0 0.0
      %1561 = vmatpush1.msra.mxu0 0.0
      %1562 = vmatprep.subr.mxu0 0.0
      %1563 = vmatpush1.msra.mxu0 0.0
      %1564 = vmatprep.subr.mxu0 0.0
      %1565 = vmatpush1.msra.mxu0 0.0
      %1566 = vmatprep.subr.mxu0 0.0
      %1567 = vmatpush1.msra.mxu0 0.0
      %1568 = vmatprep.subr.mxu0 0.0
      %1569 = vmatpush1.msra.mxu0 0.0
      %1570 = vmatprep.mubr.f32.mxu0 0.0
      %1571 = vmatmul.mubr.f32.gmra.mrb[0].mxu0 %v1465
      %v1572 = vpop.f32.mrb[0].mxu0
      %v1573 = vadd.f32 %v1504, %v1572
      %v1574 = vpop.f32.mrb[0].mxu0
      %1575 = vmatprep.mubr.f32.mxu0 0.0
      %1576 = vmatmul.mubr.f32.gmra.mrb[0].mxu0 %v1466
      %v1577 = vpop.f32.mrb[0].mxu0
      %v1578 = vadd.f32 %v1504, %v1577
      %v1579 = vpop.f32.mrb[0].mxu0
      %1580 = vmatprep.mubr.f32.mxu0 0.0
      %1581 = vmatmul.mubr.f32.gmra.mrb[0].mxu0 %v1467
      %v1582 = vpop.f32.mrb[0].mxu0
      %v1583 = vadd.f32 %v1504, %v1582
      %v1584 = vpop.f32.mrb[0].mxu0
      %1585 = vmatprep.mubr.f32.mxu0 0.0
      %1586 = vmatmul.mubr.f32.gmra.mrb[0].mxu0 %v1468
      %v1587 = vpop.f32.mrb[0].mxu0
      %v1588 = vadd.f32 %v1504, %v1587
      %v1589 = vpop.f32.mrb[0].mxu0
      %1590 = vmatprep.mubr.f32.mxu0 0.0
      %1591 = vmatmul.mubr.f32.gmra.mrb[0].mxu0 %v1469
      %v1592 = vpop.f32.mrb[0].mxu0
      %v1593 = vadd.f32 %v1504, %v1592
      %v1594 = vpop.f32.mrb[0].mxu0
      %1595 = vmatprep.mubr.f32.mxu0 0.0
      %1596 = vmatmul.mubr.f32.gmra.mrb[0].mxu0 %v1470
      %v1597 = vpop.f32.mrb[0].mxu0
      %v1598 = vadd.f32 %v1504, %v1597
      %v1599 = vpop.f32.mrb[0].mxu0
      %1600 = vmatprep.mubr.f32.mxu0 0.0
      %1601 = vmatmul.mubr.f32.gmra.mrb[0].mxu0 %v1471
      %v1602 = vpop.f32.mrb[0].mxu0
      %v1603 = vadd.f32 %v1504, %v1602
      %v1604 = vpop.f32.mrb[0].mxu0
      %1605 = vmatprep.mubr.f32.mxu0 0.0
      %1606 = vmatmul.mubr.f32.gmra.mrb[0].mxu0 %v1472
      %v1607 = vpop.f32.mrb[0].mxu0
      %v1608 = vadd.f32 %v1504, %v1607
      %v1609 = vpop.f32.mrb[0].mxu0
      %1610 = vmatprep.mubr.f32.mxu0 0.0
      %1611 = vmatmul.mubr.f32.gmra.mrb[0].mxu0 %v1473
      %v1612 = vpop.f32.mrb[0].mxu0
      %v1613 = vadd.f32 %v1504, %v1612
      %v1614 = vpop.f32.mrb[0].mxu0
      %1615 = vmatprep.mubr.f32.mxu0 0.0
      %1616 = vmatmul.mubr.f32.gmra.mrb[0].mxu0 %v1474
      %v1617 = vpop.f32.mrb[0].mxu0
      %v1618 = vadd.f32 %v1504, %v1617
      %v1619 = vpop.f32.mrb[0].mxu0
      %1620 = vmatprep.mubr.f32.mxu0 0.0
      %1621 = vmatmul.mubr.f32.gmra.mrb[0].mxu0 %v1475
      %v1622 = vpop.f32.mrb[0].mxu0
      %v1623 = vadd.f32 %v1504, %v1622
      %v1624 = vpop.f32.mrb[0].mxu0
      %1625 = vmatprep.mubr.f32.mxu0 0.0
      %1626 = vmatmul.mubr.f32.gmra.mrb[0].mxu0 %v1476
      %v1627 = vpop.f32.mrb[0].mxu0
      %v1628 = vadd.f32 %v1504, %v1627
      %v1629 = vpop.f32.mrb[0].mxu0
      %1630 = vmatprep.mubr.f32.mxu0 0.0
      %1631 = vmatmul.mubr.f32.gmra.mrb[0].mxu0 %v1477
      %v1632 = vpop.f32.mrb[0].mxu0
      %v1633 = vadd.f32 %v1504, %v1632
      %v1634 = vpop.f32.mrb[0].mxu0
      %1635 = vmatprep.mubr.f32.mxu0 0.0
      %1636 = vmatmul.mubr.f32.gmra.mrb[0].mxu0 %v1478
      %v1637 = vpop.f32.mrb[0].mxu0
      %v1638 = vadd.f32 %v1504, %v1637
      %v1639 = vpop.f32.mrb[0].mxu0
      %1640 = vmatprep.mubr.f32.mxu0 0.0
      %1641 = vmatmul.mubr.f32.gmra.mrb[0].mxu0 %v1479
      %v1642 = vpop.f32.mrb[0].mxu0
      %v1643 = vadd.f32 %v1504, %v1642
      %v1644 = vpop.f32.mrb[0].mxu0
      %1645 = vmatprep.mubr.f32.mxu0 0.0
      %1646 = vmatmul.mubr.f32.gmra.mrb[0].mxu0 %v1480
      %v1647 = vpop.f32.mrb[0].mxu0
      %v1648 = vadd.f32 %v1504, %v1647
      %v1649 = vpop.f32.mrb[0].mxu0
      %1650 = vdwg.mxu0
      %v1651 = vtanh.pop %v1573
      %v1652 = vtanh.pop %v1578
      %v1653 = vtanh.pop %v1583
      %v1654 = vtanh.pop %v1588
      %v1655 = vtanh.pop %v1593
      %v1656 = vtanh.pop %v1598
      %v1657 = vtanh.pop %v1603
      %v1658 = vtanh.pop %v1608
      %v1659 = vtanh.pop %v1613
      %v1660 = vtanh.pop %v1618
      %v1661 = vtanh.pop %v1623
      %v1662 = vtanh.pop %v1628
      %v1663 = vtanh.pop %v1633
      %v1664 = vtanh.pop %v1638
      %v1665 = vtanh.pop %v1643
      %v1666 = vtanh.pop %v1648
      %s1667 = scalar_lea.vmem %s5, 256
      %v1668 = vld [vmem:[%s1667] sm:$0xff]
      %v1669 = vld [vmem:[%s1667 + $0x8] sm:$0xff]
      %v1670 = vld [vmem:[%s1667 + $0x10] sm:$0xff]
      %v1671 = vld [vmem:[%s1667 + $0x18] sm:$0xff]
      %v1672 = vld [vmem:[%s1667 + $0x20] sm:$0xff]
      %v1673 = vld [vmem:[%s1667 + $0x28] sm:$0xff]
      %v1674 = vld [vmem:[%s1667 + $0x30] sm:$0xff]
      %v1675 = vld [vmem:[%s1667 + $0x38] sm:$0xff]
      %v1676 = vld [vmem:[%s1667 + $0x40] sm:$0xff]
      %v1677 = vld [vmem:[%s1667 + $0x48] sm:$0xff]
      %v1678 = vld [vmem:[%s1667 + $0x50] sm:$0xff]
      %v1679 = vld [vmem:[%s1667 + $0x58] sm:$0xff]
      %v1680 = vld [vmem:[%s1667 + $0x60] sm:$0xff]
      %v1681 = vld [vmem:[%s1667 + $0x68] sm:$0xff]
      %v1682 = vld [vmem:[%s1667 + $0x70] sm:$0xff]
      %v1683 = vld [vmem:[%s1667 + $0x78] sm:$0xff]
      %1684 = vmatprep.subr.mxu0 0.0
      %1685 = vmatpush1.msra.mxu0 %v1668
      %1686 = vmatprep.subr.mxu0 0.0
      %1687 = vmatpush1.msra.mxu0 %v1669
      %1688 = vmatprep.subr.mxu0 0.0
      %1689 = vmatpush1.msra.mxu0 %v1670
      %1690 = vmatprep.subr.mxu0 0.0
      %1691 = vmatpush1.msra.mxu0 %v1671
      %1692 = vmatprep.subr.mxu0 0.0
      %1693 = vmatpush1.msra.mxu0 %v1672
      %1694 = vmatprep.subr.mxu0 0.0
      %1695 = vmatpush1.msra.mxu0 %v1673
      %1696 = vmatprep.subr.mxu0 0.0
      %1697 = vmatpush1.msra.mxu0 %v1674
      %1698 = vmatprep.subr.mxu0 0.0
      %1699 = vmatpush1.msra.mxu0 %v1675
      %1700 = vmatprep.subr.mxu0 0.0
      %1701 = vmatpush1.msra.mxu0 %v1676
      %1702 = vmatprep.subr.mxu0 0.0
      %1703 = vmatpush1.msra.mxu0 %v1677
      %1704 = vmatprep.subr.mxu0 0.0
      %1705 = vmatpush1.msra.mxu0 %v1678
      %1706 = vmatprep.subr.mxu0 0.0
      %1707 = vmatpush1.msra.mxu0 %v1679
      %1708 = vmatprep.subr.mxu0 0.0
      %1709 = vmatpush1.msra.mxu0 %v1680
      %1710 = vmatprep.subr.mxu0 0.0
      %1711 = vmatpush1.msra.mxu0 %v1681
      %1712 = vmatprep.subr.mxu0 0.0
      %1713 = vmatpush1.msra.mxu0 %v1682
      %1714 = vmatprep.subr.mxu0 0.0
      %1715 = vmatpush1.msra.mxu0 %v1683
      %1716 = vmatprep.subr.mxu0 0.0
      %1717 = vmatpush1.msra.mxu0 0.0
      %1718 = vmatprep.subr.mxu0 0.0
      %1719 = vmatpush1.msra.mxu0 0.0
      %1720 = vmatprep.subr.mxu0 0.0
      %1721 = vmatpush1.msra.mxu0 0.0
      %1722 = vmatprep.subr.mxu0 0.0
      %1723 = vmatpush1.msra.mxu0 0.0
      %1724 = vmatprep.subr.mxu0 0.0
      %1725 = vmatpush1.msra.mxu0 0.0
      %1726 = vmatprep.subr.mxu0 0.0
      %1727 = vmatpush1.msra.mxu0 0.0
      %1728 = vmatprep.subr.mxu0 0.0
      %1729 = vmatpush1.msra.mxu0 0.0
      %1730 = vmatprep.subr.mxu0 0.0
      %1731 = vmatpush1.msra.mxu0 0.0
      %1732 = vmatprep.subr.mxu0 0.0
      %1733 = vmatpush1.msra.mxu0 0.0
      %1734 = vmatprep.subr.mxu0 0.0
      %1735 = vmatpush1.msra.mxu0 0.0
      %1736 = vmatprep.subr.mxu0 0.0
      %1737 = vmatpush1.msra.mxu0 0.0
      %1738 = vmatprep.subr.mxu0 0.0
      %1739 = vmatpush1.msra.mxu0 0.0
      %1740 = vmatprep.subr.mxu0 0.0
      %1741 = vmatpush1.msra.mxu0 0.0
      %1742 = vmatprep.subr.mxu0 0.0
      %1743 = vmatpush1.msra.mxu0 0.0
      %1744 = vmatprep.subr.mxu0 0.0
      %1745 = vmatpush1.msra.mxu0 0.0
      %1746 = vmatprep.subr.mxu0 0.0
      %1747 = vmatpush1.msra.mxu0 0.0
      %1748 = vmatprep.mubr.f32.mxu0 0.0
      %1749 = vmatmul.mubr.f32.gmra.mrb[0].mxu0 %v1651
      %v1750 = vpop.f32.mrb[0].mxu0
      %v1751 = vadd.f32 0.0, %v1750
      %v1752 = vpop.f32.mrb[0].mxu0
      %1753 = vmatprep.mubr.f32.mxu0 0.0
      %1754 = vmatmul.mubr.f32.gmra.mrb[0].mxu0 %v1652
      %v1755 = vpop.f32.mrb[0].mxu0
      %v1756 = vadd.f32 0.0, %v1755
      %v1757 = vpop.f32.mrb[0].mxu0
      %1758 = vmatprep.mubr.f32.mxu0 0.0
      %1759 = vmatmul.mubr.f32.gmra.mrb[0].mxu0 %v1653
      %v1760 = vpop.f32.mrb[0].mxu0
      %v1761 = vadd.f32 0.0, %v1760
      %v1762 = vpop.f32.mrb[0].mxu0
      %1763 = vmatprep.mubr.f32.mxu0 0.0
      %1764 = vmatmul.mubr.f32.gmra.mrb[0].mxu0 %v1654
      %v1765 = vpop.f32.mrb[0].mxu0
      %v1766 = vadd.f32 0.0, %v1765
      %v1767 = vpop.f32.mrb[0].mxu0
      %1768 = vmatprep.mubr.f32.mxu0 0.0
      %1769 = vmatmul.mubr.f32.gmra.mrb[0].mxu0 %v1655
      %v1770 = vpop.f32.mrb[0].mxu0
      %v1771 = vadd.f32 0.0, %v1770
      %v1772 = vpop.f32.mrb[0].mxu0
      %1773 = vmatprep.mubr.f32.mxu0 0.0
      %1774 = vmatmul.mubr.f32.gmra.mrb[0].mxu0 %v1656
      %v1775 = vpop.f32.mrb[0].mxu0
      %v1776 = vadd.f32 0.0, %v1775
      %v1777 = vpop.f32.mrb[0].mxu0
      %1778 = vmatprep.mubr.f32.mxu0 0.0
      %1779 = vmatmul.mubr.f32.gmra.mrb[0].mxu0 %v1657
      %v1780 = vpop.f32.mrb[0].mxu0
      %v1781 = vadd.f32 0.0, %v1780
      %v1782 = vpop.f32.mrb[0].mxu0
      %1783 = vmatprep.mubr.f32.mxu0 0.0
      %1784 = vmatmul.mubr.f32.gmra.mrb[0].mxu0 %v1658
      %v1785 = vpop.f32.mrb[0].mxu0
      %v1786 = vadd.f32 0.0, %v1785
      %v1787 = vpop.f32.mrb[0].mxu0
      %1788 = vmatprep.mubr.f32.mxu0 0.0
      %1789 = vmatmul.mubr.f32.gmra.mrb[0].mxu0 %v1659
      %v1790 = vpop.f32.mrb[0].mxu0
      %v1791 = vadd.f32 0.0, %v1790
      %v1792 = vpop.f32.mrb[0].mxu0
      %1793 = vmatprep.mubr.f32.mxu0 0.0
      %1794 = vmatmul.mubr.f32.gmra.mrb[0].mxu0 %v1660
      %v1795 = vpop.f32.mrb[0].mxu0
      %v1796 = vadd.f32 0.0, %v1795
      %v1797 = vpop.f32.mrb[0].mxu0
      %1798 = vmatprep.mubr.f32.mxu0 0.0
      %1799 = vmatmul.mubr.f32.gmra.mrb[0].mxu0 %v1661
      %v1800 = vpop.f32.mrb[0].mxu0
      %v1801 = vadd.f32 0.0, %v1800
      %v1802 = vpop.f32.mrb[0].mxu0
      %1803 = vmatprep.mubr.f32.mxu0 0.0
      %1804 = vmatmul.mubr.f32.gmra.mrb[0].mxu0 %v1662
      %v1805 = vpop.f32.mrb[0].mxu0
      %v1806 = vadd.f32 0.0, %v1805
      %v1807 = vpop.f32.mrb[0].mxu0
      %1808 = vmatprep.mubr.f32.mxu0 0.0
      %1809 = vmatmul.mubr.f32.gmra.mrb[0].mxu0 %v1663
      %v1810 = vpop.f32.mrb[0].mxu0
      %v1811 = vadd.f32 0.0, %v1810
      %v1812 = vpop.f32.mrb[0].mxu0
      %1813 = vmatprep.mubr.f32.mxu0 0.0
      %1814 = vmatmul.mubr.f32.gmra.mrb[0].mxu0 %v1664
      %v1815 = vpop.f32.mrb[0].mxu0
      %v1816 = vadd.f32 0.0, %v1815
      %v1817 = vpop.f32.mrb[0].mxu0
      %1818 = vmatprep.mubr.f32.mxu0 0.0
      %1819 = vmatmul.mubr.f32.gmra.mrb[0].mxu0 %v1665
      %v1820 = vpop.f32.mrb[0].mxu0
      %v1821 = vadd.f32 0.0, %v1820
      %v1822 = vpop.f32.mrb[0].mxu0
      %1823 = vmatprep.mubr.f32.mxu0 0.0
      %1824 = vmatmul.mubr.f32.gmra.mrb[0].mxu0 %v1666
      %v1825 = vpop.f32.mrb[0].mxu0
      %v1826 = vadd.f32 0.0, %v1825
      %v1827 = vpop.f32.mrb[0].mxu0
      %1828 = vdwg.mxu0
      %v1829 = vadd.f32 %v1305, %v1751
      %v1830 = vadd.f32 %v1310, %v1756
      %v1831 = vadd.f32 %v1315, %v1761
      %v1832 = vadd.f32 %v1320, %v1766
      %v1833 = vadd.f32 %v1325, %v1771
      %v1834 = vadd.f32 %v1330, %v1776
      %v1835 = vadd.f32 %v1335, %v1781
      %v1836 = vadd.f32 %v1340, %v1786
      %v1837 = vadd.f32 %v1345, %v1791
      %v1838 = vadd.f32 %v1350, %v1796
      %v1839 = vadd.f32 %v1355, %v1801
      %v1840 = vadd.f32 %v1360, %v1806
      %v1841 = vadd.f32 %v1365, %v1811
      %v1842 = vadd.f32 %v1370, %v1816
      %v1843 = vadd.f32 %v1375, %v1821
      %v1844 = vadd.f32 %v1380, %v1826
      %s1845 = scalar_lea.vmem %s1, 6
      %v1846 = vld [vmem:[%s1845] sm:$0x3]
      %v1847 = vlaneseq
      %v1848 = vshrl.u32 %v1847, 7
      %v1849 = vsub.s32 0, %v1848
      %v1850 = vrot.slane %v1846, %v1849
      %v1851 = vmul.f32 %v356, %v1850
      %v1852 = vmul.f32 %v361, %v1850
      %v1853 = vmul.f32 %v366, %v1850
      %v1854 = vmul.f32 %v371, %v1850
      %v1855 = vmul.f32 %v376, %v1850
      %v1856 = vmul.f32 %v381, %v1850
      %v1857 = vmul.f32 %v386, %v1850
      %v1858 = vmul.f32 %v391, %v1850
      %v1859 = vmul.f32 %v396, %v1850
      %v1860 = vmul.f32 %v401, %v1850
      %v1861 = vmul.f32 %v406, %v1850
      %v1862 = vmul.f32 %v411, %v1850
      %v1863 = vmul.f32 %v416, %v1850
      %v1864 = vmul.f32 %v421, %v1850
      %v1865 = vmul.f32 %v426, %v1850
      %v1866 = vmul.f32 %v431, %v1850
      %v1867 = vlaneseq
      %v1868 = vshrl.u32 %v1867, 7
      %v1869 = vsub.s32 1, %v1868
      %v1870 = vrot.slane %v1846, %v1869
      %v1871 = vmul.f32 %v455, %v1870
      %v1872 = vmul.f32 %v459, %v1870
      %v1873 = vmul.f32 %v463, %v1870
      %v1874 = vmul.f32 %v467, %v1870
      %v1875 = vmul.f32 %v471, %v1870
      %v1876 = vmul.f32 %v475, %v1870
      %v1877 = vmul.f32 %v479, %v1870
      %v1878 = vmul.f32 %v483, %v1870
      %v1879 = vmul.f32 %v487, %v1870
      %v1880 = vmul.f32 %v491, %v1870
      %v1881 = vmul.f32 %v495, %v1870
      %v1882 = vmul.f32 %v499, %v1870
      %v1883 = vmul.f32 %v503, %v1870
      %v1884 = vmul.f32 %v507, %v1870
      %v1885 = vmul.f32 %v511, %v1870
      %v1886 = vmul.f32 %v515, %v1870
      %v1887 = vadd.f32 %v1851, %v1871
      %v1888 = vadd.f32 %v1852, %v1872
      %v1889 = vadd.f32 %v1853, %v1873
      %v1890 = vadd.f32 %v1854, %v1874
      %v1891 = vadd.f32 %v1855, %v1875
      %v1892 = vadd.f32 %v1856, %v1876
      %v1893 = vadd.f32 %v1857, %v1877
      %v1894 = vadd.f32 %v1858, %v1878
      %v1895 = vadd.f32 %v1859, %v1879
      %v1896 = vadd.f32 %v1860, %v1880
      %v1897 = vadd.f32 %v1861, %v1881
      %v1898 = vadd.f32 %v1862, %v1882
      %v1899 = vadd.f32 %v1863, %v1883
      %v1900 = vadd.f32 %v1864, %v1884
      %v1901 = vadd.f32 %v1865, %v1885
      %v1902 = vadd.f32 %v1866, %v1886
      %s1903 = scalar_lea.vmem %s2, 3
      %v1904 = vld [vmem:[%s1903] sm:$0x1]
      %v1906 = vlaneseq
      %v1907 = vshrl.u32 %v1906, 7
      %v1908 = vsub.s32 0, %v1907
      %v1909 = vrot.slane %v1904, %v1908
      %v1911 = vadd.f32 %v1887, %v1909
      %v1912 = vadd.f32 %v1888, %v1909
      %v1913 = vadd.f32 %v1889, %v1909
      %v1914 = vadd.f32 %v1890, %v1909
      %v1915 = vadd.f32 %v1891, %v1909
      %v1916 = vadd.f32 %v1892, %v1909
      %v1917 = vadd.f32 %v1893, %v1909
      %v1918 = vadd.f32 %v1894, %v1909
      %v1919 = vadd.f32 %v1895, %v1909
      %v1920 = vadd.f32 %v1896, %v1909
      %v1921 = vadd.f32 %v1897, %v1909
      %v1922 = vadd.f32 %v1898, %v1909
      %v1923 = vadd.f32 %v1899, %v1909
      %v1924 = vadd.f32 %v1900, %v1909
      %v1925 = vadd.f32 %v1901, %v1909
      %v1926 = vadd.f32 %v1902, %v1909
      %v1927 = vtanh.pop %v1911
      %v1928 = vtanh.pop %v1912
      %v1929 = vtanh.pop %v1913
      %v1930 = vtanh.pop %v1914
      %v1931 = vtanh.pop %v1915
      %v1932 = vtanh.pop %v1916
      %v1933 = vtanh.pop %v1917
      %v1934 = vtanh.pop %v1918
      %v1935 = vtanh.pop %v1919
      %v1936 = vtanh.pop %v1920
      %v1937 = vtanh.pop %v1921
      %v1938 = vtanh.pop %v1922
      %v1939 = vtanh.pop %v1923
      %v1940 = vtanh.pop %v1924
      %v1941 = vtanh.pop %v1925
      %v1942 = vtanh.pop %v1926
      %s1943 = scalar_lea.vmem %s3, 384
      %v1944 = vld [vmem:[%s1943] sm:$0xff]
      %v1945 = vld [vmem:[%s1943 + $0x8] sm:$0xff]
      %v1946 = vld [vmem:[%s1943 + $0x10] sm:$0xff]
      %v1947 = vld [vmem:[%s1943 + $0x18] sm:$0xff]
      %v1948 = vld [vmem:[%s1943 + $0x20] sm:$0xff]
      %v1949 = vld [vmem:[%s1943 + $0x28] sm:$0xff]
      %v1950 = vld [vmem:[%s1943 + $0x30] sm:$0xff]
      %v1951 = vld [vmem:[%s1943 + $0x38] sm:$0xff]
      %v1952 = vld [vmem:[%s1943 + $0x40] sm:$0xff]
      %v1953 = vld [vmem:[%s1943 + $0x48] sm:$0xff]
      %v1954 = vld [vmem:[%s1943 + $0x50] sm:$0xff]
      %v1955 = vld [vmem:[%s1943 + $0x58] sm:$0xff]
      %v1956 = vld [vmem:[%s1943 + $0x60] sm:$0xff]
      %v1957 = vld [vmem:[%s1943 + $0x68] sm:$0xff]
      %v1958 = vld [vmem:[%s1943 + $0x70] sm:$0xff]
      %v1959 = vld [vmem:[%s1943 + $0x78] sm:$0xff]
      %s1960 = scalar_lea.vmem %s4, 3
      %v1961 = vld [vmem:[%s1960] sm:$0x1]
      %v1963 = vlaneseq
      %v1964 = vshrl.u32 %v1963, 7
      %v1965 = vsub.s32 0, %v1964
      %v1966 = vrot.slane %v1961, %v1965
      %1968 = vmatprep.subr.mxu0 0.0
      %1969 = vmatpush1.msra.mxu0 %v1944
      %1970 = vmatprep.subr.mxu0 0.0
      %1971 = vmatpush1.msra.mxu0 %v1945
      %1972 = vmatprep.subr.mxu0 0.0
      %1973 = vmatpush1.msra.mxu0 %v1946
      %1974 = vmatprep.subr.mxu0 0.0
      %1975 = vmatpush1.msra.mxu0 %v1947
      %1976 = vmatprep.subr.mxu0 0.0
      %1977 = vmatpush1.msra.mxu0 %v1948
      %1978 = vmatprep.subr.mxu0 0.0
      %1979 = vmatpush1.msra.mxu0 %v1949
      %1980 = vmatprep.subr.mxu0 0.0
      %1981 = vmatpush1.msra.mxu0 %v1950
      %1982 = vmatprep.subr.mxu0 0.0
      %1983 = vmatpush1.msra.mxu0 %v1951
      %1984 = vmatprep.subr.mxu0 0.0
      %1985 = vmatpush1.msra.mxu0 %v1952
      %1986 = vmatprep.subr.mxu0 0.0
      %1987 = vmatpush1.msra.mxu0 %v1953
      %1988 = vmatprep.subr.mxu0 0.0
      %1989 = vmatpush1.msra.mxu0 %v1954
      %1990 = vmatprep.subr.mxu0 0.0
      %1991 = vmatpush1.msra.mxu0 %v1955
      %1992 = vmatprep.subr.mxu0 0.0
      %1993 = vmatpush1.msra.mxu0 %v1956
      %1994 = vmatprep.subr.mxu0 0.0
      %1995 = vmatpush1.msra.mxu0 %v1957
      %1996 = vmatprep.subr.mxu0 0.0
      %1997 = vmatpush1.msra.mxu0 %v1958
      %1998 = vmatprep.subr.mxu0 0.0
      %1999 = vmatpush1.msra.mxu0 %v1959
      %2000 = vmatprep.subr.mxu0 0.0
      %2001 = vmatpush1.msra.mxu0 0.0
      %2002 = vmatprep.subr.mxu0 0.0
      %2003 = vmatpush1.msra.mxu0 0.0
      %2004 = vmatprep.subr.mxu0 0.0
      %2005 = vmatpush1.msra.mxu0 0.0
      %2006 = vmatprep.subr.mxu0 0.0
      %2007 = vmatpush1.msra.mxu0 0.0
      %2008 = vmatprep.subr.mxu0 0.0
      %2009 = vmatpush1.msra.mxu0 0.0
      %2010 = vmatprep.subr.mxu0 0.0
      %2011 = vmatpush1.msra.mxu0 0.0
      %2012 = vmatprep.subr.mxu0 0.0
      %2013 = vmatpush1.msra.mxu0 0.0
      %2014 = vmatprep.subr.mxu0 0.0
      %2015 = vmatpush1.msra.mxu0 0.0
      %2016 = vmatprep.subr.mxu0 0.0
      %2017 = vmatpush1.msra.mxu0 0.0
      %2018 = vmatprep.subr.mxu0 0.0
      %2019 = vmatpush1.msra.mxu0 0.0
      %2020 = vmatprep.subr.mxu0 0.0
      %2021 = vmatpush1.msra.mxu0 0.0
      %2022 = vmatprep.subr.mxu0 0.0
      %2023 = vmatpush1.msra.mxu0 0.0
      %2024 = vmatprep.subr.mxu0 0.0
      %2025 = vmatpush1.msra.mxu0 0.0
      %2026 = vmatprep.subr.mxu0 0.0
      %2027 = vmatpush1.msra.mxu0 0.0
      %2028 = vmatprep.subr.mxu0 0.0
      %2029 = vmatpush1.msra.mxu0 0.0
      %2030 = vmatprep.subr.mxu0 0.0
      %2031 = vmatpush1.msra.mxu0 0.0
      %2032 = vmatprep.mubr.f32.mxu0 0.0
      %2033 = vmatmul.mubr.f32.gmra.mrb[0].mxu0 %v1927
      %v2034 = vpop.f32.mrb[0].mxu0
      %v2035 = vadd.f32 %v1966, %v2034
      %v2036 = vpop.f32.mrb[0].mxu0
      %2037 = vmatprep.mubr.f32.mxu0 0.0
      %2038 = vmatmul.mubr.f32.gmra.mrb[0].mxu0 %v1928
      %v2039 = vpop.f32.mrb[0].mxu0
      %v2040 = vadd.f32 %v1966, %v2039
      %v2041 = vpop.f32.mrb[0].mxu0
      %2042 = vmatprep.mubr.f32.mxu0 0.0
      %2043 = vmatmul.mubr.f32.gmra.mrb[0].mxu0 %v1929
      %v2044 = vpop.f32.mrb[0].mxu0
      %v2045 = vadd.f32 %v1966, %v2044
      %v2046 = vpop.f32.mrb[0].mxu0
      %2047 = vmatprep.mubr.f32.mxu0 0.0
      %2048 = vmatmul.mubr.f32.gmra.mrb[0].mxu0 %v1930
      %v2049 = vpop.f32.mrb[0].mxu0
      %v2050 = vadd.f32 %v1966, %v2049
      %v2051 = vpop.f32.mrb[0].mxu0
      %2052 = vmatprep.mubr.f32.mxu0 0.0
      %2053 = vmatmul.mubr.f32.gmra.mrb[0].mxu0 %v1931
      %v2054 = vpop.f32.mrb[0].mxu0
      %v2055 = vadd.f32 %v1966, %v2054
      %v2056 = vpop.f32.mrb[0].mxu0
      %2057 = vmatprep.mubr.f32.mxu0 0.0
      %2058 = vmatmul.mubr.f32.gmra.mrb[0].mxu0 %v1932
      %v2059 = vpop.f32.mrb[0].mxu0
      %v2060 = vadd.f32 %v1966, %v2059
      %v2061 = vpop.f32.mrb[0].mxu0
      %2062 = vmatprep.mubr.f32.mxu0 0.0
      %2063 = vmatmul.mubr.f32.gmra.mrb[0].mxu0 %v1933
      %v2064 = vpop.f32.mrb[0].mxu0
      %v2065 = vadd.f32 %v1966, %v2064
      %v2066 = vpop.f32.mrb[0].mxu0
      %2067 = vmatprep.mubr.f32.mxu0 0.0
      %2068 = vmatmul.mubr.f32.gmra.mrb[0].mxu0 %v1934
      %v2069 = vpop.f32.mrb[0].mxu0
      %v2070 = vadd.f32 %v1966, %v2069
      %v2071 = vpop.f32.mrb[0].mxu0
      %2072 = vmatprep.mubr.f32.mxu0 0.0
      %2073 = vmatmul.mubr.f32.gmra.mrb[0].mxu0 %v1935
      %v2074 = vpop.f32.mrb[0].mxu0
      %v2075 = vadd.f32 %v1966, %v2074
      %v2076 = vpop.f32.mrb[0].mxu0
      %2077 = vmatprep.mubr.f32.mxu0 0.0
      %2078 = vmatmul.mubr.f32.gmra.mrb[0].mxu0 %v1936
      %v2079 = vpop.f32.mrb[0].mxu0
      %v2080 = vadd.f32 %v1966, %v2079
      %v2081 = vpop.f32.mrb[0].mxu0
      %2082 = vmatprep.mubr.f32.mxu0 0.0
      %2083 = vmatmul.mubr.f32.gmra.mrb[0].mxu0 %v1937
      %v2084 = vpop.f32.mrb[0].mxu0
      %v2085 = vadd.f32 %v1966, %v2084
      %v2086 = vpop.f32.mrb[0].mxu0
      %2087 = vmatprep.mubr.f32.mxu0 0.0
      %2088 = vmatmul.mubr.f32.gmra.mrb[0].mxu0 %v1938
      %v2089 = vpop.f32.mrb[0].mxu0
      %v2090 = vadd.f32 %v1966, %v2089
      %v2091 = vpop.f32.mrb[0].mxu0
      %2092 = vmatprep.mubr.f32.mxu0 0.0
      %2093 = vmatmul.mubr.f32.gmra.mrb[0].mxu0 %v1939
      %v2094 = vpop.f32.mrb[0].mxu0
      %v2095 = vadd.f32 %v1966, %v2094
      %v2096 = vpop.f32.mrb[0].mxu0
      %2097 = vmatprep.mubr.f32.mxu0 0.0
      %2098 = vmatmul.mubr.f32.gmra.mrb[0].mxu0 %v1940
      %v2099 = vpop.f32.mrb[0].mxu0
      %v2100 = vadd.f32 %v1966, %v2099
      %v2101 = vpop.f32.mrb[0].mxu0
      %2102 = vmatprep.mubr.f32.mxu0 0.0
      %2103 = vmatmul.mubr.f32.gmra.mrb[0].mxu0 %v1941
      %v2104 = vpop.f32.mrb[0].mxu0
      %v2105 = vadd.f32 %v1966, %v2104
      %v2106 = vpop.f32.mrb[0].mxu0
      %2107 = vmatprep.mubr.f32.mxu0 0.0
      %2108 = vmatmul.mubr.f32.gmra.mrb[0].mxu0 %v1942
      %v2109 = vpop.f32.mrb[0].mxu0
      %v2110 = vadd.f32 %v1966, %v2109
      %v2111 = vpop.f32.mrb[0].mxu0
      %2112 = vdwg.mxu0
      %v2113 = vtanh.pop %v2035
      %v2114 = vtanh.pop %v2040
      %v2115 = vtanh.pop %v2045
      %v2116 = vtanh.pop %v2050
      %v2117 = vtanh.pop %v2055
      %v2118 = vtanh.pop %v2060
      %v2119 = vtanh.pop %v2065
      %v2120 = vtanh.pop %v2070
      %v2121 = vtanh.pop %v2075
      %v2122 = vtanh.pop %v2080
      %v2123 = vtanh.pop %v2085
      %v2124 = vtanh.pop %v2090
      %v2125 = vtanh.pop %v2095
      %v2126 = vtanh.pop %v2100
      %v2127 = vtanh.pop %v2105
      %v2128 = vtanh.pop %v2110
      %s2129 = scalar_lea.vmem %s5, 384
      %v2130 = vld [vmem:[%s2129] sm:$0xff]
      %v2131 = vld [vmem:[%s2129 + $0x8] sm:$0xff]
      %v2132 = vld [vmem:[%s2129 + $0x10] sm:$0xff]
      %v2133 = vld [vmem:[%s2129 + $0x18] sm:$0xff]
      %v2134 = vld [vmem:[%s2129 + $0x20] sm:$0xff]
      %v2135 = vld [vmem:[%s2129 + $0x28] sm:$0xff]
      %v2136 = vld [vmem:[%s2129 + $0x30] sm:$0xff]
      %v2137 = vld [vmem:[%s2129 + $0x38] sm:$0xff]
      %v2138 = vld [vmem:[%s2129 + $0x40] sm:$0xff]
      %v2139 = vld [vmem:[%s2129 + $0x48] sm:$0xff]
      %v2140 = vld [vmem:[%s2129 + $0x50] sm:$0xff]
      %v2141 = vld [vmem:[%s2129 + $0x58] sm:$0xff]
      %v2142 = vld [vmem:[%s2129 + $0x60] sm:$0xff]
      %v2143 = vld [vmem:[%s2129 + $0x68] sm:$0xff]
      %v2144 = vld [vmem:[%s2129 + $0x70] sm:$0xff]
      %v2145 = vld [vmem:[%s2129 + $0x78] sm:$0xff]
      %2146 = vmatprep.subr.mxu0 0.0
      %2147 = vmatpush1.msra.mxu0 %v2130
      %2148 = vmatprep.subr.mxu0 0.0
      %2149 = vmatpush1.msra.mxu0 %v2131
      %2150 = vmatprep.subr.mxu0 0.0
      %2151 = vmatpush1.msra.mxu0 %v2132
      %2152 = vmatprep.subr.mxu0 0.0
      %2153 = vmatpush1.msra.mxu0 %v2133
      %2154 = vmatprep.subr.mxu0 0.0
      %2155 = vmatpush1.msra.mxu0 %v2134
      %2156 = vmatprep.subr.mxu0 0.0
      %2157 = vmatpush1.msra.mxu0 %v2135
      %2158 = vmatprep.subr.mxu0 0.0
      %2159 = vmatpush1.msra.mxu0 %v2136
      %2160 = vmatprep.subr.mxu0 0.0
      %2161 = vmatpush1.msra.mxu0 %v2137
      %2162 = vmatprep.subr.mxu0 0.0
      %2163 = vmatpush1.msra.mxu0 %v2138
      %2164 = vmatprep.subr.mxu0 0.0
      %2165 = vmatpush1.msra.mxu0 %v2139
      %2166 = vmatprep.subr.mxu0 0.0
      %2167 = vmatpush1.msra.mxu0 %v2140
      %2168 = vmatprep.subr.mxu0 0.0
      %2169 = vmatpush1.msra.mxu0 %v2141
      %2170 = vmatprep.subr.mxu0 0.0
      %2171 = vmatpush1.msra.mxu0 %v2142
      %2172 = vmatprep.subr.mxu0 0.0
      %2173 = vmatpush1.msra.mxu0 %v2143
      %2174 = vmatprep.subr.mxu0 0.0
      %2175 = vmatpush1.msra.mxu0 %v2144
      %2176 = vmatprep.subr.mxu0 0.0
      %2177 = vmatpush1.msra.mxu0 %v2145
      %2178 = vmatprep.subr.mxu0 0.0
      %2179 = vmatpush1.msra.mxu0 0.0
      %2180 = vmatprep.subr.mxu0 0.0
      %2181 = vmatpush1.msra.mxu0 0.0
      %2182 = vmatprep.subr.mxu0 0.0
      %2183 = vmatpush1.msra.mxu0 0.0
      %2184 = vmatprep.subr.mxu0 0.0
      %2185 = vmatpush1.msra.mxu0 0.0
      %2186 = vmatprep.subr.mxu0 0.0
      %2187 = vmatpush1.msra.mxu0 0.0
      %2188 = vmatprep.subr.mxu0 0.0
      %2189 = vmatpush1.msra.mxu0 0.0
      %2190 = vmatprep.subr.mxu0 0.0
      %2191 = vmatpush1.msra.mxu0 0.0
      %2192 = vmatprep.subr.mxu0 0.0
      %2193 = vmatpush1.msra.mxu0 0.0
      %2194 = vmatprep.subr.mxu0 0.0
      %2195 = vmatpush1.msra.mxu0 0.0
      %2196 = vmatprep.subr.mxu0 0.0
      %2197 = vmatpush1.msra.mxu0 0.0
      %2198 = vmatprep.subr.mxu0 0.0
      %2199 = vmatpush1.msra.mxu0 0.0
      %2200 = vmatprep.subr.mxu0 0.0
      %2201 = vmatpush1.msra.mxu0 0.0
      %2202 = vmatprep.subr.mxu0 0.0
      %2203 = vmatpush1.msra.mxu0 0.0
      %2204 = vmatprep.subr.mxu0 0.0
      %2205 = vmatpush1.msra.mxu0 0.0
      %2206 = vmatprep.subr.mxu0 0.0
      %2207 = vmatpush1.msra.mxu0 0.0
      %2208 = vmatprep.subr.mxu0 0.0
      %2209 = vmatpush1.msra.mxu0 0.0
      %2210 = vmatprep.mubr.f32.mxu0 0.0
      %2211 = vmatmul.mubr.f32.gmra.mrb[0].mxu0 %v2113
      %v2212 = vpop.f32.mrb[0].mxu0
      %v2213 = vadd.f32 0.0, %v2212
      %v2214 = vpop.f32.mrb[0].mxu0
      %2215 = vmatprep.mubr.f32.mxu0 0.0
      %2216 = vmatmul.mubr.f32.gmra.mrb[0].mxu0 %v2114
      %v2217 = vpop.f32.mrb[0].mxu0
      %v2218 = vadd.f32 0.0, %v2217
      %v2219 = vpop.f32.mrb[0].mxu0
      %2220 = vmatprep.mubr.f32.mxu0 0.0
      %2221 = vmatmul.mubr.f32.gmra.mrb[0].mxu0 %v2115
      %v2222 = vpop.f32.mrb[0].mxu0
      %v2223 = vadd.f32 0.0, %v2222
      %v2224 = vpop.f32.mrb[0].mxu0
      %2225 = vmatprep.mubr.f32.mxu0 0.0
      %2226 = vmatmul.mubr.f32.gmra.mrb[0].mxu0 %v2116
      %v2227 = vpop.f32.mrb[0].mxu0
      %v2228 = vadd.f32 0.0, %v2227
      %v2229 = vpop.f32.mrb[0].mxu0
      %2230 = vmatprep.mubr.f32.mxu0 0.0
      %2231 = vmatmul.mubr.f32.gmra.mrb[0].mxu0 %v2117
      %v2232 = vpop.f32.mrb[0].mxu0
      %v2233 = vadd.f32 0.0, %v2232
      %v2234 = vpop.f32.mrb[0].mxu0
      %2235 = vmatprep.mubr.f32.mxu0 0.0
      %2236 = vmatmul.mubr.f32.gmra.mrb[0].mxu0 %v2118
      %v2237 = vpop.f32.mrb[0].mxu0
      %v2238 = vadd.f32 0.0, %v2237
      %v2239 = vpop.f32.mrb[0].mxu0
      %2240 = vmatprep.mubr.f32.mxu0 0.0
      %2241 = vmatmul.mubr.f32.gmra.mrb[0].mxu0 %v2119
      %v2242 = vpop.f32.mrb[0].mxu0
      %v2243 = vadd.f32 0.0, %v2242
      %v2244 = vpop.f32.mrb[0].mxu0
      %2245 = vmatprep.mubr.f32.mxu0 0.0
      %2246 = vmatmul.mubr.f32.gmra.mrb[0].mxu0 %v2120
      %v2247 = vpop.f32.mrb[0].mxu0
      %v2248 = vadd.f32 0.0, %v2247
      %v2249 = vpop.f32.mrb[0].mxu0
      %2250 = vmatprep.mubr.f32.mxu0 0.0
      %2251 = vmatmul.mubr.f32.gmra.mrb[0].mxu0 %v2121
      %v2252 = vpop.f32.mrb[0].mxu0
      %v2253 = vadd.f32 0.0, %v2252
      %v2254 = vpop.f32.mrb[0].mxu0
      %2255 = vmatprep.mubr.f32.mxu0 0.0
      %2256 = vmatmul.mubr.f32.gmra.mrb[0].mxu0 %v2122
      %v2257 = vpop.f32.mrb[0].mxu0
      %v2258 = vadd.f32 0.0, %v2257
      %v2259 = vpop.f32.mrb[0].mxu0
      %2260 = vmatprep.mubr.f32.mxu0 0.0
      %2261 = vmatmul.mubr.f32.gmra.mrb[0].mxu0 %v2123
      %v2262 = vpop.f32.mrb[0].mxu0
      %v2263 = vadd.f32 0.0, %v2262
      %v2264 = vpop.f32.mrb[0].mxu0
      %2265 = vmatprep.mubr.f32.mxu0 0.0
      %2266 = vmatmul.mubr.f32.gmra.mrb[0].mxu0 %v2124
      %v2267 = vpop.f32.mrb[0].mxu0
      %v2268 = vadd.f32 0.0, %v2267
      %v2269 = vpop.f32.mrb[0].mxu0
      %2270 = vmatprep.mubr.f32.mxu0 0.0
      %2271 = vmatmul.mubr.f32.gmra.mrb[0].mxu0 %v2125
      %v2272 = vpop.f32.mrb[0].mxu0
      %v2273 = vadd.f32 0.0, %v2272
      %v2274 = vpop.f32.mrb[0].mxu0
      %2275 = vmatprep.mubr.f32.mxu0 0.0
      %2276 = vmatmul.mubr.f32.gmra.mrb[0].mxu0 %v2126
      %v2277 = vpop.f32.mrb[0].mxu0
      %v2278 = vadd.f32 0.0, %v2277
      %v2279 = vpop.f32.mrb[0].mxu0
      %2280 = vmatprep.mubr.f32.mxu0 0.0
      %2281 = vmatmul.mubr.f32.gmra.mrb[0].mxu0 %v2127
      %v2282 = vpop.f32.mrb[0].mxu0
      %v2283 = vadd.f32 0.0, %v2282
      %v2284 = vpop.f32.mrb[0].mxu0
      %2285 = vmatprep.mubr.f32.mxu0 0.0
      %2286 = vmatmul.mubr.f32.gmra.mrb[0].mxu0 %v2128
      %v2287 = vpop.f32.mrb[0].mxu0
      %v2288 = vadd.f32 0.0, %v2287
      %v2289 = vpop.f32.mrb[0].mxu0
      %2290 = vdwg.mxu0
      %v2291 = vadd.f32 %v1829, %v2213
      %v2292 = vadd.f32 %v1830, %v2218
      %v2293 = vadd.f32 %v1831, %v2223
      %v2294 = vadd.f32 %v1832, %v2228
      %v2295 = vadd.f32 %v1833, %v2233
      %v2296 = vadd.f32 %v1834, %v2238
      %v2297 = vadd.f32 %v1835, %v2243
      %v2298 = vadd.f32 %v1836, %v2248
      %v2299 = vadd.f32 %v1837, %v2253
      %v2300 = vadd.f32 %v1838, %v2258
      %v2301 = vadd.f32 %v1839, %v2263
      %v2302 = vadd.f32 %v1840, %v2268
      %v2303 = vadd.f32 %v1841, %v2273
      %v2304 = vadd.f32 %v1842, %v2278
      %v2305 = vadd.f32 %v1843, %v2283
      %v2306 = vadd.f32 %v1844, %v2288
      %v2307 = vld [vmem:[%s6] sm:$0x1]
      %v2309 = vlaneseq
      %v2310 = vshrl.u32 %v2309, 7
      %v2311 = vsub.s32 0, %v2310
      %v2312 = vrot.slane %v2307, %v2311
      %v2314 = vadd.f32 %v2291, %v2312
      %v2315 = vadd.f32 %v2292, %v2312
      %v2316 = vadd.f32 %v2293, %v2312
      %v2317 = vadd.f32 %v2294, %v2312
      %v2318 = vadd.f32 %v2295, %v2312
      %v2319 = vadd.f32 %v2296, %v2312
      %v2320 = vadd.f32 %v2297, %v2312
      %v2321 = vadd.f32 %v2298, %v2312
      %v2322 = vadd.f32 %v2299, %v2312
      %v2323 = vadd.f32 %v2300, %v2312
      %v2324 = vadd.f32 %v2301, %v2312
      %v2325 = vadd.f32 %v2302, %v2312
      %v2326 = vadd.f32 %v2303, %v2312
      %v2327 = vadd.f32 %v2304, %v2312
      %v2328 = vadd.f32 %v2305, %v2312
      %v2329 = vadd.f32 %v2306, %v2312
      %v2330 = vld [vmem:[%s7] sm:$0xf]
      %v2331 = vlaneseq
      %v2332 = vshrl.u32 %v2331, 7
      %v2333 = vsub.s32 0, %v2332
      %v2334 = vrot.slane %v2330, %v2333
      %vm2335 = vcmp.ge.f32.partialorder %v356, %v2334
      %vm2336 = vcmp.ge.f32.partialorder %v361, %v2334
      %vm2337 = vcmp.ge.f32.partialorder %v366, %v2334
      %vm2338 = vcmp.ge.f32.partialorder %v371, %v2334
      %vm2339 = vcmp.ge.f32.partialorder %v376, %v2334
      %vm2340 = vcmp.ge.f32.partialorder %v381, %v2334
      %vm2341 = vcmp.ge.f32.partialorder %v386, %v2334
      %vm2342 = vcmp.ge.f32.partialorder %v391, %v2334
      %vm2343 = vcmp.ge.f32.partialorder %v396, %v2334
      %vm2344 = vcmp.ge.f32.partialorder %v401, %v2334
      %vm2345 = vcmp.ge.f32.partialorder %v406, %v2334
      %vm2346 = vcmp.ge.f32.partialorder %v411, %v2334
      %vm2347 = vcmp.ge.f32.partialorder %v416, %v2334
      %vm2348 = vcmp.ge.f32.partialorder %v421, %v2334
      %vm2349 = vcmp.ge.f32.partialorder %v426, %v2334
      %vm2350 = vcmp.ge.f32.partialorder %v431, %v2334
      %v2351 = vlaneseq
      %v2352 = vshrl.u32 %v2351, 7
      %v2353 = vsub.s32 1, %v2352
      %v2354 = vrot.slane %v2330, %v2353
      %vm2355 = vcmp.le.f32.partialorder %v356, %v2354
      %vm2356 = vcmp.le.f32.partialorder %v361, %v2354
      %vm2357 = vcmp.le.f32.partialorder %v366, %v2354
      %vm2358 = vcmp.le.f32.partialorder %v371, %v2354
      %vm2359 = vcmp.le.f32.partialorder %v376, %v2354
      %vm2360 = vcmp.le.f32.partialorder %v381, %v2354
      %vm2361 = vcmp.le.f32.partialorder %v386, %v2354
      %vm2362 = vcmp.le.f32.partialorder %v391, %v2354
      %vm2363 = vcmp.le.f32.partialorder %v396, %v2354
      %vm2364 = vcmp.le.f32.partialorder %v401, %v2354
      %vm2365 = vcmp.le.f32.partialorder %v406, %v2354
      %vm2366 = vcmp.le.f32.partialorder %v411, %v2354
      %vm2367 = vcmp.le.f32.partialorder %v416, %v2354
      %vm2368 = vcmp.le.f32.partialorder %v421, %v2354
      %vm2369 = vcmp.le.f32.partialorder %v426, %v2354
      %vm2370 = vcmp.le.f32.partialorder %v431, %v2354
      %vm2371 = vmand %vm2335, %vm2355
      %vm2372 = vmand %vm2336, %vm2356
      %vm2373 = vmand %vm2337, %vm2357
      %vm2374 = vmand %vm2338, %vm2358
      %vm2375 = vmand %vm2339, %vm2359
      %vm2376 = vmand %vm2340, %vm2360
      %vm2377 = vmand %vm2341, %vm2361
      %vm2378 = vmand %vm2342, %vm2362
      %vm2379 = vmand %vm2343, %vm2363
      %vm2380 = vmand %vm2344, %vm2364
      %vm2381 = vmand %vm2345, %vm2365
      %vm2382 = vmand %vm2346, %vm2366
      %vm2383 = vmand %vm2347, %vm2367
      %vm2384 = vmand %vm2348, %vm2368
      %vm2385 = vmand %vm2349, %vm2369
      %vm2386 = vmand %vm2350, %vm2370
      %v2387 = vlaneseq
      %v2388 = vshrl.u32 %v2387, 7
      %v2389 = vsub.s32 2, %v2388
      %v2390 = vrot.slane %v2330, %v2389
      %vm2391 = vcmp.ge.f32.partialorder %v455, %v2390
      %vm2392 = vcmp.ge.f32.partialorder %v459, %v2390
      %vm2393 = vcmp.ge.f32.partialorder %v463, %v2390
      %vm2394 = vcmp.ge.f32.partialorder %v467, %v2390
      %vm2395 = vcmp.ge.f32.partialorder %v471, %v2390
      %vm2396 = vcmp.ge.f32.partialorder %v475, %v2390
      %vm2397 = vcmp.ge.f32.partialorder %v479, %v2390
      %vm2398 = vcmp.ge.f32.partialorder %v483, %v2390
      %vm2399 = vcmp.ge.f32.partialorder %v487, %v2390
      %vm2400 = vcmp.ge.f32.partialorder %v491, %v2390
      %vm2401 = vcmp.ge.f32.partialorder %v495, %v2390
      %vm2402 = vcmp.ge.f32.partialorder %v499, %v2390
      %vm2403 = vcmp.ge.f32.partialorder %v503, %v2390
      %vm2404 = vcmp.ge.f32.partialorder %v507, %v2390
      %vm2405 = vcmp.ge.f32.partialorder %v511, %v2390
      %vm2406 = vcmp.ge.f32.partialorder %v515, %v2390
      %vm2407 = vmand %vm2371, %vm2391
      %vm2408 = vmand %vm2372, %vm2392
      %vm2409 = vmand %vm2373, %vm2393
      %vm2410 = vmand %vm2374, %vm2394
      %vm2411 = vmand %vm2375, %vm2395
      %vm2412 = vmand %vm2376, %vm2396
      %vm2413 = vmand %vm2377, %vm2397
      %vm2414 = vmand %vm2378, %vm2398
      %vm2415 = vmand %vm2379, %vm2399
      %vm2416 = vmand %vm2380, %vm2400
      %vm2417 = vmand %vm2381, %vm2401
      %vm2418 = vmand %vm2382, %vm2402
      %vm2419 = vmand %vm2383, %vm2403
      %vm2420 = vmand %vm2384, %vm2404
      %vm2421 = vmand %vm2385, %vm2405
      %vm2422 = vmand %vm2386, %vm2406
      %v2423 = vlaneseq
      %v2424 = vshrl.u32 %v2423, 7
      %v2425 = vsub.s32 3, %v2424
      %v2426 = vrot.slane %v2330, %v2425
      %vm2427 = vcmp.le.f32.partialorder %v455, %v2426
      %vm2428 = vcmp.le.f32.partialorder %v459, %v2426
      %vm2429 = vcmp.le.f32.partialorder %v463, %v2426
      %vm2430 = vcmp.le.f32.partialorder %v467, %v2426
      %vm2431 = vcmp.le.f32.partialorder %v471, %v2426
      %vm2432 = vcmp.le.f32.partialorder %v475, %v2426
      %vm2433 = vcmp.le.f32.partialorder %v479, %v2426
      %vm2434 = vcmp.le.f32.partialorder %v483, %v2426
      %vm2435 = vcmp.le.f32.partialorder %v487, %v2426
      %vm2436 = vcmp.le.f32.partialorder %v491, %v2426
      %vm2437 = vcmp.le.f32.partialorder %v495, %v2426
      %vm2438 = vcmp.le.f32.partialorder %v499, %v2426
      %vm2439 = vcmp.le.f32.partialorder %v503, %v2426
      %vm2440 = vcmp.le.f32.partialorder %v507, %v2426
      %vm2441 = vcmp.le.f32.partialorder %v511, %v2426
      %vm2442 = vcmp.le.f32.partialorder %v515, %v2426
      %vm2443 = vmand %vm2407, %vm2427
      %vm2444 = vmand %vm2408, %vm2428
      %vm2445 = vmand %vm2409, %vm2429
      %vm2446 = vmand %vm2410, %vm2430
      %vm2447 = vmand %vm2411, %vm2431
      %vm2448 = vmand %vm2412, %vm2432
      %vm2449 = vmand %vm2413, %vm2433
      %vm2450 = vmand %vm2414, %vm2434
      %vm2451 = vmand %vm2415, %vm2435
      %vm2452 = vmand %vm2416, %vm2436
      %vm2453 = vmand %vm2417, %vm2437
      %vm2454 = vmand %vm2418, %vm2438
      %vm2455 = vmand %vm2419, %vm2439
      %vm2456 = vmand %vm2420, %vm2440
      %vm2457 = vmand %vm2421, %vm2441
      %vm2458 = vmand %vm2422, %vm2442
      %v2459 = vsel %vm2443, 1, 0
      %v2460 = vsel %vm2444, 1, 0
      %v2461 = vsel %vm2445, 1, 0
      %v2462 = vsel %vm2446, 1, 0
      %v2463 = vsel %vm2447, 1, 0
      %v2464 = vsel %vm2448, 1, 0
      %v2465 = vsel %vm2449, 1, 0
      %v2466 = vsel %vm2450, 1, 0
      %v2467 = vsel %vm2451, 1, 0
      %v2468 = vsel %vm2452, 1, 0
      %v2469 = vsel %vm2453, 1, 0
      %v2470 = vsel %vm2454, 1, 0
      %v2471 = vsel %vm2455, 1, 0
      %v2472 = vsel %vm2456, 1, 0
      %v2473 = vsel %vm2457, 1, 0
      %v2474 = vsel %vm2458, 1, 0
      %v2475 = vcvt.s32.f32 %v2459
      %v2476 = vcvt.s32.f32 %v2460
      %v2477 = vcvt.s32.f32 %v2461
      %v2478 = vcvt.s32.f32 %v2462
      %v2479 = vcvt.s32.f32 %v2463
      %v2480 = vcvt.s32.f32 %v2464
      %v2481 = vcvt.s32.f32 %v2465
      %v2482 = vcvt.s32.f32 %v2466
      %v2483 = vcvt.s32.f32 %v2467
      %v2484 = vcvt.s32.f32 %v2468
      %v2485 = vcvt.s32.f32 %v2469
      %v2486 = vcvt.s32.f32 %v2470
      %v2487 = vcvt.s32.f32 %v2471
      %v2488 = vcvt.s32.f32 %v2472
      %v2489 = vcvt.s32.f32 %v2473
      %v2490 = vcvt.s32.f32 %v2474
      %v2491 = vmul.f32 %v2475, %v2314
      %v2492 = vmul.f32 %v2476, %v2315
      %v2493 = vmul.f32 %v2477, %v2316
      %v2494 = vmul.f32 %v2478, %v2317
      %v2495 = vmul.f32 %v2479, %v2318
      %v2496 = vmul.f32 %v2480, %v2319
      %v2497 = vmul.f32 %v2481, %v2320
      %v2498 = vmul.f32 %v2482, %v2321
      %v2499 = vmul.f32 %v2483, %v2322
      %v2500 = vmul.f32 %v2484, %v2323
      %v2501 = vmul.f32 %v2485, %v2324
      %v2502 = vmul.f32 %v2486, %v2325
      %v2503 = vmul.f32 %v2487, %v2326
      %v2504 = vmul.f32 %v2488, %v2327
      %v2505 = vmul.f32 %v2489, %v2328
      %v2506 = vmul.f32 %v2490, %v2329
      %vm2507 = vcmask 31744
      %v2508 = vsel %vm2507, %v2491, 0.0
      %2509 = vadd.xlane.f32.xlu0 %v2508
      %v2510 = vpop.xlane.xlu0 %2509
      %v2511 = vsel %vm2507, %v2492, 0.0
      %2512 = vadd.xlane.f32.xlu0 %v2511
      %v2513 = vpop.xlane.xlu0 %2512
      %v2514 = vsel %vm2507, %v2493, 0.0
      %2515 = vadd.xlane.f32.xlu0 %v2514
      %v2516 = vpop.xlane.xlu0 %2515
      %v2517 = vsel %vm2507, %v2494, 0.0
      %2518 = vadd.xlane.f32.xlu0 %v2517
      %v2519 = vpop.xlane.xlu0 %2518
      %v2520 = vsel %vm2507, %v2495, 0.0
      %2521 = vadd.xlane.f32.xlu0 %v2520
      %v2522 = vpop.xlane.xlu0 %2521
      %v2523 = vsel %vm2507, %v2496, 0.0
      %2524 = vadd.xlane.f32.xlu0 %v2523
      %v2525 = vpop.xlane.xlu0 %2524
      %v2526 = vsel %vm2507, %v2497, 0.0
      %2527 = vadd.xlane.f32.xlu0 %v2526
      %v2528 = vpop.xlane.xlu0 %2527
      %v2529 = vsel %vm2507, %v2498, 0.0
      %2530 = vadd.xlane.f32.xlu0 %v2529
      %v2531 = vpop.xlane.xlu0 %2530
      %v2532 = vsel %vm2507, %v2499, 0.0
      %2533 = vadd.xlane.f32.xlu0 %v2532
      %v2534 = vpop.xlane.xlu0 %2533
      %v2535 = vsel %vm2507, %v2500, 0.0
      %2536 = vadd.xlane.f32.xlu0 %v2535
      %v2537 = vpop.xlane.xlu0 %2536
      %v2538 = vsel %vm2507, %v2501, 0.0
      %2539 = vadd.xlane.f32.xlu0 %v2538
      %v2540 = vpop.xlane.xlu0 %2539
      %v2541 = vsel %vm2507, %v2502, 0.0
      %2542 = vadd.xlane.f32.xlu0 %v2541
      %v2543 = vpop.xlane.xlu0 %2542
      %v2544 = vsel %vm2507, %v2503, 0.0
      %2545 = vadd.xlane.f32.xlu0 %v2544
      %v2546 = vpop.xlane.xlu0 %2545
      %v2547 = vsel %vm2507, %v2504, 0.0
      %2548 = vadd.xlane.f32.xlu0 %v2547
      %v2549 = vpop.xlane.xlu0 %2548
      %v2550 = vsel %vm2507, %v2505, 0.0
      %2551 = vadd.xlane.f32.xlu0 %v2550
      %v2552 = vpop.xlane.xlu0 %2551
      %v2553 = vsel %vm2507, %v2506, 0.0
      %2554 = vadd.xlane.f32.xlu0 %v2553
      %v2555 = vpop.xlane.xlu0 %2554
      %v2556 = vld [vmem:[%s8] sm:$0xf]
      %v2558 = vsel %vm2507, %v2314, 0
      %v2561 = vsel %vm2507, %v2315, 0
      %v2564 = vsel %vm2507, %v2316, 0
      %v2567 = vsel %vm2507, %v2317, 0
      %v2570 = vsel %vm2507, %v2318, 0
      %v2573 = vsel %vm2507, %v2319, 0
      %v2576 = vsel %vm2507, %v2320, 0
      %v2579 = vsel %vm2507, %v2321, 0
      %v2582 = vsel %vm2507, %v2322, 0
      %v2585 = vsel %vm2507, %v2323, 0
      %v2588 = vsel %vm2507, %v2324, 0
      %v2591 = vsel %vm2507, %v2325, 0
      %v2594 = vsel %vm2507, %v2326, 0
      %v2597 = vsel %vm2507, %v2327, 0
      %v2600 = vsel %vm2507, %v2328, 0
      %v2603 = vsel %vm2507, %v2329, 0
      %vm2605 = vcmask 1043456
      %v2607 = vsel %vm2605, %v2556, 0
      %2609 = vmatprep.subr.mxu0 0.0
      %2610 = vmatpush1.msra.mxu0 %v2607
      %2611 = vmatprep.subr.mxu0 0.0
      %2612 = vmatpush1.msra.mxu0 0.0
      %2613 = vmatprep.subr.mxu0 0.0
      %2614 = vmatpush1.msra.mxu0 0.0
      %2615 = vmatprep.subr.mxu0 0.0
      %2616 = vmatpush1.msra.mxu0 0.0
      %2617 = vmatprep.subr.mxu0 0.0
      %2618 = vmatpush1.msra.mxu0 0.0
      %2619 = vmatprep.subr.mxu0 0.0
      %2620 = vmatpush1.msra.mxu0 0.0
      %2621 = vmatprep.subr.mxu0 0.0
      %2622 = vmatpush1.msra.mxu0 0.0
      %2623 = vmatprep.subr.mxu0 0.0
      %2624 = vmatpush1.msra.mxu0 0.0
      %2625 = vmatprep.subr.mxu0 0.0
      %2626 = vmatpush1.msra.mxu0 0.0
      %2627 = vmatprep.subr.mxu0 0.0
      %2628 = vmatpush1.msra.mxu0 0.0
      %2629 = vmatprep.subr.mxu0 0.0
      %2630 = vmatpush1.msra.mxu0 0.0
      %2631 = vmatprep.subr.mxu0 0.0
      %2632 = vmatpush1.msra.mxu0 0.0
      %2633 = vmatprep.subr.mxu0 0.0
      %2634 = vmatpush1.msra.mxu0 0.0
      %2635 = vmatprep.subr.mxu0 0.0
      %2636 = vmatpush1.msra.mxu0 0.0
      %2637 = vmatprep.subr.mxu0 0.0
      %2638 = vmatpush1.msra.mxu0 0.0
      %2639 = vmatprep.subr.mxu0 0.0
      %2640 = vmatpush1.msra.mxu0 0.0
      %2641 = vmatprep.subr.mxu0 0.0
      %2642 = vmatpush1.msra.mxu0 0.0
      %2643 = vmatprep.subr.mxu0 0.0
      %2644 = vmatpush1.msra.mxu0 0.0
      %2645 = vmatprep.subr.mxu0 0.0
      %2646 = vmatpush1.msra.mxu0 0.0
      %2647 = vmatprep.subr.mxu0 0.0
      %2648 = vmatpush1.msra.mxu0 0.0
      %2649 = vmatprep.subr.mxu0 0.0
      %2650 = vmatpush1.msra.mxu0 0.0
      %2651 = vmatprep.subr.mxu0 0.0
      %2652 = vmatpush1.msra.mxu0 0.0
      %2653 = vmatprep.subr.mxu0 0.0
      %2654 = vmatpush1.msra.mxu0 0.0
      %2655 = vmatprep.subr.mxu0 0.0
      %2656 = vmatpush1.msra.mxu0 0.0
      %2657 = vmatprep.subr.mxu0 0.0
      %2658 = vmatpush1.msra.mxu0 0.0
      %2659 = vmatprep.subr.mxu0 0.0
      %2660 = vmatpush1.msra.mxu0 0.0
      %2661 = vmatprep.subr.mxu0 0.0
      %2662 = vmatpush1.msra.mxu0 0.0
      %2663 = vmatprep.subr.mxu0 0.0
      %2664 = vmatpush1.msra.mxu0 0.0
      %2665 = vmatprep.subr.mxu0 0.0
      %2666 = vmatpush1.msra.mxu0 0.0
      %2667 = vmatprep.subr.mxu0 0.0
      %2668 = vmatpush1.msra.mxu0 0.0
      %2669 = vmatprep.subr.mxu0 0.0
      %2670 = vmatpush1.msra.mxu0 0.0
      %2671 = vmatprep.subr.mxu0 0.0
      %2672 = vmatpush1.msra.mxu0 0.0
      %2673 = vmatprep.mubr.f32.mxu0 0.0
      %2674 = vmatmul.mubr.f32.gmra.mrb[0].mxu0 %v2558
      %v2675 = vpop.f32.mrb[0].mxu0
      %v2676 = vadd.f32 0.0, %v2675
      %v2677 = vpop.f32.mrb[0].mxu0
      %2678 = vmatprep.mubr.f32.mxu0 0.0
      %2679 = vmatmul.mubr.f32.gmra.mrb[0].mxu0 %v2561
      %v2680 = vpop.f32.mrb[0].mxu0
      %v2681 = vadd.f32 0.0, %v2680
      %v2682 = vpop.f32.mrb[0].mxu0
      %2683 = vmatprep.mubr.f32.mxu0 0.0
      %2684 = vmatmul.mubr.f32.gmra.mrb[0].mxu0 %v2564
      %v2685 = vpop.f32.mrb[0].mxu0
      %v2686 = vadd.f32 0.0, %v2685
      %v2687 = vpop.f32.mrb[0].mxu0
      %2688 = vmatprep.mubr.f32.mxu0 0.0
      %2689 = vmatmul.mubr.f32.gmra.mrb[0].mxu0 %v2567
      %v2690 = vpop.f32.mrb[0].mxu0
      %v2691 = vadd.f32 0.0, %v2690
      %v2692 = vpop.f32.mrb[0].mxu0
      %2693 = vmatprep.mubr.f32.mxu0 0.0
      %2694 = vmatmul.mubr.f32.gmra.mrb[0].mxu0 %v2570
      %v2695 = vpop.f32.mrb[0].mxu0
      %v2696 = vadd.f32 0.0, %v2695
      %v2697 = vpop.f32.mrb[0].mxu0
      %2698 = vmatprep.mubr.f32.mxu0 0.0
      %2699 = vmatmul.mubr.f32.gmra.mrb[0].mxu0 %v2573
      %v2700 = vpop.f32.mrb[0].mxu0
      %v2701 = vadd.f32 0.0, %v2700
      %v2702 = vpop.f32.mrb[0].mxu0
      %2703 = vmatprep.mubr.f32.mxu0 0.0
      %2704 = vmatmul.mubr.f32.gmra.mrb[0].mxu0 %v2576
      %v2705 = vpop.f32.mrb[0].mxu0
      %v2706 = vadd.f32 0.0, %v2705
      %v2707 = vpop.f32.mrb[0].mxu0
      %2708 = vmatprep.mubr.f32.mxu0 0.0
      %2709 = vmatmul.mubr.f32.gmra.mrb[0].mxu0 %v2579
      %v2710 = vpop.f32.mrb[0].mxu0
      %v2711 = vadd.f32 0.0, %v2710
      %v2712 = vpop.f32.mrb[0].mxu0
      %2713 = vmatprep.mubr.f32.mxu0 0.0
      %2714 = vmatmul.mubr.f32.gmra.mrb[0].mxu0 %v2582
      %v2715 = vpop.f32.mrb[0].mxu0
      %v2716 = vadd.f32 0.0, %v2715
      %v2717 = vpop.f32.mrb[0].mxu0
      %2718 = vmatprep.mubr.f32.mxu0 0.0
      %2719 = vmatmul.mubr.f32.gmra.mrb[0].mxu0 %v2585
      %v2720 = vpop.f32.mrb[0].mxu0
      %v2721 = vadd.f32 0.0, %v2720
      %v2722 = vpop.f32.mrb[0].mxu0
      %2723 = vmatprep.mubr.f32.mxu0 0.0
      %2724 = vmatmul.mubr.f32.gmra.mrb[0].mxu0 %v2588
      %v2725 = vpop.f32.mrb[0].mxu0
      %v2726 = vadd.f32 0.0, %v2725
      %v2727 = vpop.f32.mrb[0].mxu0
      %2728 = vmatprep.mubr.f32.mxu0 0.0
      %2729 = vmatmul.mubr.f32.gmra.mrb[0].mxu0 %v2591
      %v2730 = vpop.f32.mrb[0].mxu0
      %v2731 = vadd.f32 0.0, %v2730
      %v2732 = vpop.f32.mrb[0].mxu0
      %2733 = vmatprep.mubr.f32.mxu0 0.0
      %2734 = vmatmul.mubr.f32.gmra.mrb[0].mxu0 %v2594
      %v2735 = vpop.f32.mrb[0].mxu0
      %v2736 = vadd.f32 0.0, %v2735
      %v2737 = vpop.f32.mrb[0].mxu0
      %2738 = vmatprep.mubr.f32.mxu0 0.0
      %2739 = vmatmul.mubr.f32.gmra.mrb[0].mxu0 %v2597
      %v2740 = vpop.f32.mrb[0].mxu0
      %v2741 = vadd.f32 0.0, %v2740
      %v2742 = vpop.f32.mrb[0].mxu0
      %2743 = vmatprep.mubr.f32.mxu0 0.0
      %2744 = vmatmul.mubr.f32.gmra.mrb[0].mxu0 %v2600
      %v2745 = vpop.f32.mrb[0].mxu0
      %v2746 = vadd.f32 0.0, %v2745
      %v2747 = vpop.f32.mrb[0].mxu0
      %2748 = vmatprep.mubr.f32.mxu0 0.0
      %2749 = vmatmul.mubr.f32.gmra.mrb[0].mxu0 %v2603
      %v2750 = vpop.f32.mrb[0].mxu0
      %v2751 = vadd.f32 0.0, %v2750
      %v2752 = vpop.f32.mrb[0].mxu0
      %2753 = vdwg.mxu0
      %v2754 = vmul.f32 %v2314, %v2314
      %v2755 = vmul.f32 %v2315, %v2315
      %v2756 = vmul.f32 %v2316, %v2316
      %v2757 = vmul.f32 %v2317, %v2317
      %v2758 = vmul.f32 %v2318, %v2318
      %v2759 = vmul.f32 %v2319, %v2319
      %v2760 = vmul.f32 %v2320, %v2320
      %v2761 = vmul.f32 %v2321, %v2321
      %v2762 = vmul.f32 %v2322, %v2322
      %v2763 = vmul.f32 %v2323, %v2323
      %v2764 = vmul.f32 %v2324, %v2324
      %v2765 = vmul.f32 %v2325, %v2325
      %v2766 = vmul.f32 %v2326, %v2326
      %v2767 = vmul.f32 %v2327, %v2327
      %v2768 = vmul.f32 %v2328, %v2328
      %v2769 = vmul.f32 %v2329, %v2329
      %v2771 = vsel %vm2507, %v2754, 0
      %v2774 = vsel %vm2507, %v2755, 0
      %v2777 = vsel %vm2507, %v2756, 0
      %v2780 = vsel %vm2507, %v2757, 0
      %v2783 = vsel %vm2507, %v2758, 0
      %v2786 = vsel %vm2507, %v2759, 0
      %v2789 = vsel %vm2507, %v2760, 0
      %v2792 = vsel %vm2507, %v2761, 0
      %v2795 = vsel %vm2507, %v2762, 0
      %v2798 = vsel %vm2507, %v2763, 0
      %v2801 = vsel %vm2507, %v2764, 0
      %v2804 = vsel %vm2507, %v2765, 0
      %v2807 = vsel %vm2507, %v2766, 0
      %v2810 = vsel %vm2507, %v2767, 0
      %v2813 = vsel %vm2507, %v2768, 0
      %v2816 = vsel %vm2507, %v2769, 0
      %2818 = vmatprep.subr.mxu0 0.0
      %2819 = vmatpush1.msra.mxu0 %v2607
      %2820 = vmatprep.subr.mxu0 0.0
      %2821 = vmatpush1.msra.mxu0 0.0
      %2822 = vmatprep.subr.mxu0 0.0
      %2823 = vmatpush1.msra.mxu0 0.0
      %2824 = vmatprep.subr.mxu0 0.0
      %2825 = vmatpush1.msra.mxu0 0.0
      %2826 = vmatprep.subr.mxu0 0.0
      %2827 = vmatpush1.msra.mxu0 0.0
      %2828 = vmatprep.subr.mxu0 0.0
      %2829 = vmatpush1.msra.mxu0 0.0
      %2830 = vmatprep.subr.mxu0 0.0
      %2831 = vmatpush1.msra.mxu0 0.0
      %2832 = vmatprep.subr.mxu0 0.0
      %2833 = vmatpush1.msra.mxu0 0.0
      %2834 = vmatprep.subr.mxu0 0.0
      %2835 = vmatpush1.msra.mxu0 0.0
      %2836 = vmatprep.subr.mxu0 0.0
      %2837 = vmatpush1.msra.mxu0 0.0
      %2838 = vmatprep.subr.mxu0 0.0
      %2839 = vmatpush1.msra.mxu0 0.0
      %2840 = vmatprep.subr.mxu0 0.0
      %2841 = vmatpush1.msra.mxu0 0.0
      %2842 = vmatprep.subr.mxu0 0.0
      %2843 = vmatpush1.msra.mxu0 0.0
      %2844 = vmatprep.subr.mxu0 0.0
      %2845 = vmatpush1.msra.mxu0 0.0
      %2846 = vmatprep.subr.mxu0 0.0
      %2847 = vmatpush1.msra.mxu0 0.0
      %2848 = vmatprep.subr.mxu0 0.0
      %2849 = vmatpush1.msra.mxu0 0.0
      %2850 = vmatprep.subr.mxu0 0.0
      %2851 = vmatpush1.msra.mxu0 0.0
      %2852 = vmatprep.subr.mxu0 0.0
      %2853 = vmatpush1.msra.mxu0 0.0
      %2854 = vmatprep.subr.mxu0 0.0
      %2855 = vmatpush1.msra.mxu0 0.0
      %2856 = vmatprep.subr.mxu0 0.0
      %2857 = vmatpush1.msra.mxu0 0.0
      %2858 = vmatprep.subr.mxu0 0.0
      %2859 = vmatpush1.msra.mxu0 0.0
      %2860 = vmatprep.subr.mxu0 0.0
      %2861 = vmatpush1.msra.mxu0 0.0
      %2862 = vmatprep.subr.mxu0 0.0
      %2863 = vmatpush1.msra.mxu0 0.0
      %2864 = vmatprep.subr.mxu0 0.0
      %2865 = vmatpush1.msra.mxu0 0.0
      %2866 = vmatprep.subr.mxu0 0.0
      %2867 = vmatpush1.msra.mxu0 0.0
      %2868 = vmatprep.subr.mxu0 0.0
      %2869 = vmatpush1.msra.mxu0 0.0
      %2870 = vmatprep.subr.mxu0 0.0
      %2871 = vmatpush1.msra.mxu0 0.0
      %2872 = vmatprep.subr.mxu0 0.0
      %2873 = vmatpush1.msra.mxu0 0.0
      %2874 = vmatprep.subr.mxu0 0.0
      %2875 = vmatpush1.msra.mxu0 0.0
      %2876 = vmatprep.subr.mxu0 0.0
      %2877 = vmatpush1.msra.mxu0 0.0
      %2878 = vmatprep.subr.mxu0 0.0
      %2879 = vmatpush1.msra.mxu0 0.0
      %2880 = vmatprep.subr.mxu0 0.0
      %2881 = vmatpush1.msra.mxu0 0.0
      %2882 = vmatprep.mubr.f32.mxu0 0.0
      %2883 = vmatmul.mubr.f32.gmra.mrb[0].mxu0 %v2771
      %v2884 = vpop.f32.mrb[0].mxu0
      %v2885 = vadd.f32 0.0, %v2884
      %v2886 = vpop.f32.mrb[0].mxu0
      %2887 = vmatprep.mubr.f32.mxu0 0.0
      %2888 = vmatmul.mubr.f32.gmra.mrb[0].mxu0 %v2774
      %v2889 = vpop.f32.mrb[0].mxu0
      %v2890 = vadd.f32 0.0, %v2889
      %v2891 = vpop.f32.mrb[0].mxu0
      %2892 = vmatprep.mubr.f32.mxu0 0.0
      %2893 = vmatmul.mubr.f32.gmra.mrb[0].mxu0 %v2777
      %v2894 = vpop.f32.mrb[0].mxu0
      %v2895 = vadd.f32 0.0, %v2894
      %v2896 = vpop.f32.mrb[0].mxu0
      %2897 = vmatprep.mubr.f32.mxu0 0.0
      %2898 = vmatmul.mubr.f32.gmra.mrb[0].mxu0 %v2780
      %v2899 = vpop.f32.mrb[0].mxu0
      %v2900 = vadd.f32 0.0, %v2899
      %v2901 = vpop.f32.mrb[0].mxu0
      %2902 = vmatprep.mubr.f32.mxu0 0.0
      %2903 = vmatmul.mubr.f32.gmra.mrb[0].mxu0 %v2783
      %v2904 = vpop.f32.mrb[0].mxu0
      %v2905 = vadd.f32 0.0, %v2904
      %v2906 = vpop.f32.mrb[0].mxu0
      %2907 = vmatprep.mubr.f32.mxu0 0.0
      %2908 = vmatmul.mubr.f32.gmra.mrb[0].mxu0 %v2786
      %v2909 = vpop.f32.mrb[0].mxu0
      %v2910 = vadd.f32 0.0, %v2909
      %v2911 = vpop.f32.mrb[0].mxu0
      %2912 = vmatprep.mubr.f32.mxu0 0.0
      %2913 = vmatmul.mubr.f32.gmra.mrb[0].mxu0 %v2789
      %v2914 = vpop.f32.mrb[0].mxu0
      %v2915 = vadd.f32 0.0, %v2914
      %v2916 = vpop.f32.mrb[0].mxu0
      %2917 = vmatprep.mubr.f32.mxu0 0.0
      %2918 = vmatmul.mubr.f32.gmra.mrb[0].mxu0 %v2792
      %v2919 = vpop.f32.mrb[0].mxu0
      %v2920 = vadd.f32 0.0, %v2919
      %v2921 = vpop.f32.mrb[0].mxu0
      %2922 = vmatprep.mubr.f32.mxu0 0.0
      %2923 = vmatmul.mubr.f32.gmra.mrb[0].mxu0 %v2795
      %v2924 = vpop.f32.mrb[0].mxu0
      %v2925 = vadd.f32 0.0, %v2924
      %v2926 = vpop.f32.mrb[0].mxu0
      %2927 = vmatprep.mubr.f32.mxu0 0.0
      %2928 = vmatmul.mubr.f32.gmra.mrb[0].mxu0 %v2798
      %v2929 = vpop.f32.mrb[0].mxu0
      %v2930 = vadd.f32 0.0, %v2929
      %v2931 = vpop.f32.mrb[0].mxu0
      %2932 = vmatprep.mubr.f32.mxu0 0.0
      %2933 = vmatmul.mubr.f32.gmra.mrb[0].mxu0 %v2801
      %v2934 = vpop.f32.mrb[0].mxu0
      %v2935 = vadd.f32 0.0, %v2934
      %v2936 = vpop.f32.mrb[0].mxu0
      %2937 = vmatprep.mubr.f32.mxu0 0.0
      %2938 = vmatmul.mubr.f32.gmra.mrb[0].mxu0 %v2804
      %v2939 = vpop.f32.mrb[0].mxu0
      %v2940 = vadd.f32 0.0, %v2939
      %v2941 = vpop.f32.mrb[0].mxu0
      %2942 = vmatprep.mubr.f32.mxu0 0.0
      %2943 = vmatmul.mubr.f32.gmra.mrb[0].mxu0 %v2807
      %v2944 = vpop.f32.mrb[0].mxu0
      %v2945 = vadd.f32 0.0, %v2944
      %v2946 = vpop.f32.mrb[0].mxu0
      %2947 = vmatprep.mubr.f32.mxu0 0.0
      %2948 = vmatmul.mubr.f32.gmra.mrb[0].mxu0 %v2810
      %v2949 = vpop.f32.mrb[0].mxu0
      %v2950 = vadd.f32 0.0, %v2949
      %v2951 = vpop.f32.mrb[0].mxu0
      %2952 = vmatprep.mubr.f32.mxu0 0.0
      %2953 = vmatmul.mubr.f32.gmra.mrb[0].mxu0 %v2813
      %v2954 = vpop.f32.mrb[0].mxu0
      %v2955 = vadd.f32 0.0, %v2954
      %v2956 = vpop.f32.mrb[0].mxu0
      %2957 = vmatprep.mubr.f32.mxu0 0.0
      %2958 = vmatmul.mubr.f32.gmra.mrb[0].mxu0 %v2816
      %v2959 = vpop.f32.mrb[0].mxu0
      %v2960 = vadd.f32 0.0, %v2959
      %v2961 = vpop.f32.mrb[0].mxu0
      %2962 = vdwg.mxu0
      %v2963 = vmul.f32 %v2676, 0.25
      %v2964 = vmul.f32 %v2681, 0.25
      %v2965 = vmul.f32 %v2686, 0.25
      %v2966 = vmul.f32 %v2691, 0.25
      %v2967 = vmul.f32 %v2696, 0.25
      %v2968 = vmul.f32 %v2701, 0.25
      %v2969 = vmul.f32 %v2706, 0.25
      %v2970 = vmul.f32 %v2711, 0.25
      %v2971 = vmul.f32 %v2716, 0.25
      %v2972 = vmul.f32 %v2721, 0.25
      %v2973 = vmul.f32 %v2726, 0.25
      %v2974 = vmul.f32 %v2731, 0.25
      %v2975 = vmul.f32 %v2736, 0.25
      %v2976 = vmul.f32 %v2741, 0.25
      %v2977 = vmul.f32 %v2746, 0.25
      %v2978 = vmul.f32 %v2751, 0.25
      %v2979 = vmul.f32 %v2963, %v2676
      %v2980 = vmul.f32 %v2964, %v2681
      %v2981 = vmul.f32 %v2965, %v2686
      %v2982 = vmul.f32 %v2966, %v2691
      %v2983 = vmul.f32 %v2967, %v2696
      %v2984 = vmul.f32 %v2968, %v2701
      %v2985 = vmul.f32 %v2969, %v2706
      %v2986 = vmul.f32 %v2970, %v2711
      %v2987 = vmul.f32 %v2971, %v2716
      %v2988 = vmul.f32 %v2972, %v2721
      %v2989 = vmul.f32 %v2973, %v2726
      %v2990 = vmul.f32 %v2974, %v2731
      %v2991 = vmul.f32 %v2975, %v2736
      %v2992 = vmul.f32 %v2976, %v2741
      %v2993 = vmul.f32 %v2977, %v2746
      %v2994 = vmul.f32 %v2978, %v2751
      %v2995 = vmul.f32 %v2885, %v2885
      %v2996 = vmul.f32 %v2890, %v2890
      %v2997 = vmul.f32 %v2895, %v2895
      %v2998 = vmul.f32 %v2900, %v2900
      %v2999 = vmul.f32 %v2905, %v2905
      %v3000 = vmul.f32 %v2910, %v2910
      %v3001 = vmul.f32 %v2915, %v2915
      %v3002 = vmul.f32 %v2920, %v2920
      %v3003 = vmul.f32 %v2925, %v2925
      %v3004 = vmul.f32 %v2930, %v2930
      %v3005 = vmul.f32 %v2935, %v2935
      %v3006 = vmul.f32 %v2940, %v2940
      %v3007 = vmul.f32 %v2945, %v2945
      %v3008 = vmul.f32 %v2950, %v2950
      %v3009 = vmul.f32 %v2955, %v2955
      %v3010 = vmul.f32 %v2960, %v2960
      %v3011 = vadd.f32 %v2979, %v2995
      %v3012 = vadd.f32 %v2980, %v2996
      %v3013 = vadd.f32 %v2981, %v2997
      %v3014 = vadd.f32 %v2982, %v2998
      %v3015 = vadd.f32 %v2983, %v2999
      %v3016 = vadd.f32 %v2984, %v3000
      %v3017 = vadd.f32 %v2985, %v3001
      %v3018 = vadd.f32 %v2986, %v3002
      %v3019 = vadd.f32 %v2987, %v3003
      %v3020 = vadd.f32 %v2988, %v3004
      %v3021 = vadd.f32 %v2989, %v3005
      %v3022 = vadd.f32 %v2990, %v3006
      %v3023 = vadd.f32 %v2991, %v3007
      %v3024 = vadd.f32 %v2992, %v3008
      %v3025 = vadd.f32 %v2993, %v3009
      %v3026 = vadd.f32 %v2994, %v3010
      %v3027 = vrsqrt.pop %v3011
      %v3028 = vmul.f32 %v3011, %v3027
      %vm3029 = vcmp.eq.f32.partialorder %v3011, inf
      %v3030 = vsel %vm3029, %v3011, %v3028
      %vm3031 = vcmp.eq.f32.partialorder %v3011, 0.0
      %v3032 = vand.u32 %v3011, 2147483648
      %v3033 = vsel %vm3031, %v3032, %v3030
      %v3034 = vrsqrt.pop %v3012
      %v3035 = vmul.f32 %v3012, %v3034
      %vm3036 = vcmp.eq.f32.partialorder %v3012, inf
      %v3037 = vsel %vm3036, %v3012, %v3035
      %vm3038 = vcmp.eq.f32.partialorder %v3012, 0.0
      %v3039 = vand.u32 %v3012, 2147483648
      %v3040 = vsel %vm3038, %v3039, %v3037
      %v3041 = vrsqrt.pop %v3013
      %v3042 = vmul.f32 %v3013, %v3041
      %vm3043 = vcmp.eq.f32.partialorder %v3013, inf
      %v3044 = vsel %vm3043, %v3013, %v3042
      %vm3045 = vcmp.eq.f32.partialorder %v3013, 0.0
      %v3046 = vand.u32 %v3013, 2147483648
      %v3047 = vsel %vm3045, %v3046, %v3044
      %v3048 = vrsqrt.pop %v3014
      %v3049 = vmul.f32 %v3014, %v3048
      %vm3050 = vcmp.eq.f32.partialorder %v3014, inf
      %v3051 = vsel %vm3050, %v3014, %v3049
      %vm3052 = vcmp.eq.f32.partialorder %v3014, 0.0
      %v3053 = vand.u32 %v3014, 2147483648
      %v3054 = vsel %vm3052, %v3053, %v3051
      %v3055 = vrsqrt.pop %v3015
      %v3056 = vmul.f32 %v3015, %v3055
      %vm3057 = vcmp.eq.f32.partialorder %v3015, inf
      %v3058 = vsel %vm3057, %v3015, %v3056
      %vm3059 = vcmp.eq.f32.partialorder %v3015, 0.0
      %v3060 = vand.u32 %v3015, 2147483648
      %v3061 = vsel %vm3059, %v3060, %v3058
      %v3062 = vrsqrt.pop %v3016
      %v3063 = vmul.f32 %v3016, %v3062
      %vm3064 = vcmp.eq.f32.partialorder %v3016, inf
      %v3065 = vsel %vm3064, %v3016, %v3063
      %vm3066 = vcmp.eq.f32.partialorder %v3016, 0.0
      %v3067 = vand.u32 %v3016, 2147483648
      %v3068 = vsel %vm3066, %v3067, %v3065
      %v3069 = vrsqrt.pop %v3017
      %v3070 = vmul.f32 %v3017, %v3069
      %vm3071 = vcmp.eq.f32.partialorder %v3017, inf
      %v3072 = vsel %vm3071, %v3017, %v3070
      %vm3073 = vcmp.eq.f32.partialorder %v3017, 0.0
      %v3074 = vand.u32 %v3017, 2147483648
      %v3075 = vsel %vm3073, %v3074, %v3072
      %v3076 = vrsqrt.pop %v3018
      %v3077 = vmul.f32 %v3018, %v3076
      %vm3078 = vcmp.eq.f32.partialorder %v3018, inf
      %v3079 = vsel %vm3078, %v3018, %v3077
      %vm3080 = vcmp.eq.f32.partialorder %v3018, 0.0
      %v3081 = vand.u32 %v3018, 2147483648
      %v3082 = vsel %vm3080, %v3081, %v3079
      %v3083 = vrsqrt.pop %v3019
      %v3084 = vmul.f32 %v3019, %v3083
      %vm3085 = vcmp.eq.f32.partialorder %v3019, inf
      %v3086 = vsel %vm3085, %v3019, %v3084
      %vm3087 = vcmp.eq.f32.partialorder %v3019, 0.0
      %v3088 = vand.u32 %v3019, 2147483648
      %v3089 = vsel %vm3087, %v3088, %v3086
      %v3090 = vrsqrt.pop %v3020
      %v3091 = vmul.f32 %v3020, %v3090
      %vm3092 = vcmp.eq.f32.partialorder %v3020, inf
      %v3093 = vsel %vm3092, %v3020, %v3091
      %vm3094 = vcmp.eq.f32.partialorder %v3020, 0.0
      %v3095 = vand.u32 %v3020, 2147483648
      %v3096 = vsel %vm3094, %v3095, %v3093
      %v3097 = vrsqrt.pop %v3021
      %v3098 = vmul.f32 %v3021, %v3097
      %vm3099 = vcmp.eq.f32.partialorder %v3021, inf
      %v3100 = vsel %vm3099, %v3021, %v3098
      %vm3101 = vcmp.eq.f32.partialorder %v3021, 0.0
      %v3102 = vand.u32 %v3021, 2147483648
      %v3103 = vsel %vm3101, %v3102, %v3100
      %v3104 = vrsqrt.pop %v3022
      %v3105 = vmul.f32 %v3022, %v3104
      %vm3106 = vcmp.eq.f32.partialorder %v3022, inf
      %v3107 = vsel %vm3106, %v3022, %v3105
      %vm3108 = vcmp.eq.f32.partialorder %v3022, 0.0
      %v3109 = vand.u32 %v3022, 2147483648
      %v3110 = vsel %vm3108, %v3109, %v3107
      %v3111 = vrsqrt.pop %v3023
      %v3112 = vmul.f32 %v3023, %v3111
      %vm3113 = vcmp.eq.f32.partialorder %v3023, inf
      %v3114 = vsel %vm3113, %v3023, %v3112
      %vm3115 = vcmp.eq.f32.partialorder %v3023, 0.0
      %v3116 = vand.u32 %v3023, 2147483648
      %v3117 = vsel %vm3115, %v3116, %v3114
      %v3118 = vrsqrt.pop %v3024
      %v3119 = vmul.f32 %v3024, %v3118
      %vm3120 = vcmp.eq.f32.partialorder %v3024, inf
      %v3121 = vsel %vm3120, %v3024, %v3119
      %vm3122 = vcmp.eq.f32.partialorder %v3024, 0.0
      %v3123 = vand.u32 %v3024, 2147483648
      %v3124 = vsel %vm3122, %v3123, %v3121
      %v3125 = vrsqrt.pop %v3025
      %v3126 = vmul.f32 %v3025, %v3125
      %vm3127 = vcmp.eq.f32.partialorder %v3025, inf
      %v3128 = vsel %vm3127, %v3025, %v3126
      %vm3129 = vcmp.eq.f32.partialorder %v3025, 0.0
      %v3130 = vand.u32 %v3025, 2147483648
      %v3131 = vsel %vm3129, %v3130, %v3128
      %v3132 = vrsqrt.pop %v3026
      %v3133 = vmul.f32 %v3026, %v3132
      %vm3134 = vcmp.eq.f32.partialorder %v3026, inf
      %v3135 = vsel %vm3134, %v3026, %v3133
      %vm3136 = vcmp.eq.f32.partialorder %v3026, 0.0
      %v3137 = vand.u32 %v3026, 2147483648
      %v3138 = vsel %vm3136, %v3137, %v3135
      %vm3139 = vcmask 7168
      %3140 = vst.msk [vmem:[%s334] sm:$0xff] %vm3139, %v2510
      %3141 = vst.msk [vmem:[%s334 + $0x8] sm:$0xff] %vm3139, %v2513
      %3142 = vst.msk [vmem:[%s334 + $0x10] sm:$0xff] %vm3139, %v2516
      %3143 = vst.msk [vmem:[%s334 + $0x18] sm:$0xff] %vm3139, %v2519
      %3144 = vst.msk [vmem:[%s334 + $0x20] sm:$0xff] %vm3139, %v2522
      %3145 = vst.msk [vmem:[%s334 + $0x28] sm:$0xff] %vm3139, %v2525
      %3146 = vst.msk [vmem:[%s334 + $0x30] sm:$0xff] %vm3139, %v2528
      %3147 = vst.msk [vmem:[%s334 + $0x38] sm:$0xff] %vm3139, %v2531
      %3148 = vst.msk [vmem:[%s334 + $0x40] sm:$0xff] %vm3139, %v2534
      %3149 = vst.msk [vmem:[%s334 + $0x48] sm:$0xff] %vm3139, %v2537
      %3150 = vst.msk [vmem:[%s334 + $0x50] sm:$0xff] %vm3139, %v2540
      %3151 = vst.msk [vmem:[%s334 + $0x58] sm:$0xff] %vm3139, %v2543
      %3152 = vst.msk [vmem:[%s334 + $0x60] sm:$0xff] %vm3139, %v2546
      %3153 = vst.msk [vmem:[%s334 + $0x68] sm:$0xff] %vm3139, %v2549
      %3154 = vst.msk [vmem:[%s334 + $0x70] sm:$0xff] %vm3139, %v2552
      %3155 = vst.msk [vmem:[%s334 + $0x78] sm:$0xff] %vm3139, %v2555
      %3172 = vrot.lane.b32.xlu0 %v3033, 1
      %v3173 = vpop.permute.xlu0 %3172
      %3174 = vrot.lane.b32.xlu0 %v3040, 1
      %v3175 = vpop.permute.xlu0 %3174
      %3176 = vrot.lane.b32.xlu0 %v3047, 1
      %v3177 = vpop.permute.xlu0 %3176
      %3178 = vrot.lane.b32.xlu0 %v3054, 1
      %v3179 = vpop.permute.xlu0 %3178
      %3180 = vrot.lane.b32.xlu0 %v3061, 1
      %v3181 = vpop.permute.xlu0 %3180
      %3182 = vrot.lane.b32.xlu0 %v3068, 1
      %v3183 = vpop.permute.xlu0 %3182
      %3184 = vrot.lane.b32.xlu0 %v3075, 1
      %v3185 = vpop.permute.xlu0 %3184
      %3186 = vrot.lane.b32.xlu0 %v3082, 1
      %v3187 = vpop.permute.xlu0 %3186
      %3188 = vrot.lane.b32.xlu0 %v3089, 1
      %v3189 = vpop.permute.xlu0 %3188
      %3190 = vrot.lane.b32.xlu0 %v3096, 1
      %v3191 = vpop.permute.xlu0 %3190
      %3192 = vrot.lane.b32.xlu0 %v3103, 1
      %v3193 = vpop.permute.xlu0 %3192
      %3194 = vrot.lane.b32.xlu0 %v3110, 1
      %v3195 = vpop.permute.xlu0 %3194
      %3196 = vrot.lane.b32.xlu0 %v3117, 1
      %v3197 = vpop.permute.xlu0 %3196
      %3198 = vrot.lane.b32.xlu0 %v3124, 1
      %v3199 = vpop.permute.xlu0 %3198
      %3200 = vrot.lane.b32.xlu0 %v3131, 1
      %v3201 = vpop.permute.xlu0 %3200
      %3202 = vrot.lane.b32.xlu0 %v3138, 1
      %v3203 = vpop.permute.xlu0 %3202
      %vm3220 = vcmask 72712
      %3221 = vst.msk [vmem:[%s334] sm:$0xff] %vm3220, %v3173
      %3222 = vst.msk [vmem:[%s334 + $0x8] sm:$0xff] %vm3220, %v3175
      %3223 = vst.msk [vmem:[%s334 + $0x10] sm:$0xff] %vm3220, %v3177
      %3224 = vst.msk [vmem:[%s334 + $0x18] sm:$0xff] %vm3220, %v3179
      %3225 = vst.msk [vmem:[%s334 + $0x20] sm:$0xff] %vm3220, %v3181
      %3226 = vst.msk [vmem:[%s334 + $0x28] sm:$0xff] %vm3220, %v3183
      %3227 = vst.msk [vmem:[%s334 + $0x30] sm:$0xff] %vm3220, %v3185
      %3228 = vst.msk [vmem:[%s334 + $0x38] sm:$0xff] %vm3220, %v3187
      %3229 = vst.msk [vmem:[%s334 + $0x40] sm:$0xff] %vm3220, %v3189
      %3230 = vst.msk [vmem:[%s334 + $0x48] sm:$0xff] %vm3220, %v3191
      %3231 = vst.msk [vmem:[%s334 + $0x50] sm:$0xff] %vm3220, %v3193
      %3232 = vst.msk [vmem:[%s334 + $0x58] sm:$0xff] %vm3220, %v3195
      %3233 = vst.msk [vmem:[%s334 + $0x60] sm:$0xff] %vm3220, %v3197
      %3234 = vst.msk [vmem:[%s334 + $0x68] sm:$0xff] %vm3220, %v3199
      %3235 = vst.msk [vmem:[%s334 + $0x70] sm:$0xff] %vm3220, %v3201
      %3236 = vst.msk [vmem:[%s334 + $0x78] sm:$0xff] %vm3220, %v3203
      %s3237 = smul.u32 16, %s20
      %p3238 = scmp.lt.s32.totalorder %s3237, 31
      %s3239 = scalar_select %p3238, %s3237, 31
      %s3240 = smul.addr %s3239, 8
      %s3241 = scalar_lea.vmem %s9, %s3240
      // Predicated region
      $region57: #{tpu_custom_call.1} parent=55 // pred_check
        %p3242 = pneg %p232
      $region58: #{tpu_custom_call.1} parent=55 // pred_check_branch
        %3244 = sbr.rel (%p3242) target = $region60
      $region59: #{tpu_custom_call.1} parent=55 // pred_region
        %s3245 = smul.u32 16, %s20
      $region60: #{tpu_custom_call.1} parent=55 // pred_fallthru
        _
    $region56: #{tpu_custom_call.1} parent=5 // pred_fallthru
      _
    %p3246 = scmp.le.s32.totalorder 2, %s15
    // Predicated region
    $region61: #{tpu_custom_call.1} parent=5 // pred_check
      %p3247 = pneg %p3246
    $region62: #{tpu_custom_call.1} parent=5 // pred_check_branch
      %3249 = sbr.rel (%p3247) target = $region64
    $region63: #{tpu_custom_call.1} parent=5 // pred_region
      %s3250 = ssub.s32 %s15, 2
      // Predicated region
      $region65: #{tpu_custom_call.1} parent=63 // pred_check
        %p3251 = pneg %p238
      $region66: #{tpu_custom_call.1} parent=63 // pred_check_branch
        %3253 = sbr.rel (%p3251) target = $region68
      $region67: #{tpu_custom_call.1} parent=63 // pred_region
        %s3254 = smul.u32 16, %s21
        %p3255 = scmp.lt.s32.totalorder %s3254, 31
        %s3256 = scalar_select %p3255, %s3254, 31
        %s3257 = smul.addr %s3256, 8
        %s3258 = scalar_lea.vmem %s9, %s3257
      $region68: #{tpu_custom_call.1} parent=63 // pred_fallthru
        _
    $region64: #{tpu_custom_call.1} parent=5 // pred_fallthru
      _
  $region6: #{tpu_custom_call.1} parent=0 // loop_footer
    %s19 = sadd.s32 1, %s15
  $region7: #{tpu_custom_call.1} parent=0 // loop_footer_branch
    %14 = sbr.rel target = $region3
  $region8: #{tpu_custom_call.1} parent=0 // loop_exit
    _

</llo_original>
